<compile_context>
chip_gen: v5e
topology: v5e:2x2
jax: 0.10.0
libtpu: 0.0.40
codegen_flags: <defaults>
</compile_context>

<pallas_src>
import functools
import math

import jax
import jax.numpy as jnp
from jax import lax
from jax.experimental import pallas as pl
from jax.experimental.pallas import tpu as pltpu


# ----------------------------- helpers --------------------------------------

def _fit_tile(dim, target, align):
    """Largest tile <= target that divides dim and respects `align`; or dim."""
    if dim <= target:
        return dim
    t = (min(target, dim) // align) * align
    while t >= align:
        if dim % t == 0:
            return t
        t -= align
    return dim


# Exact-erf GELU via Abramowitz&Stegun 7.1.26 polynomial (max abs err ~1.5e-7).
# The divide is routed to the EUP (approx reciprocal) -- free bundle slot.
def _erf_approx(x):
    p = 0.3275911
    a1, a2, a3, a4, a5 = (0.254829592, -0.284496736, 1.421413741,
                          -1.453152027, 1.061405429)
    sgn = jnp.where(x >= 0.0, 1.0, -1.0)
    ax = jnp.abs(x)
    t = pl.reciprocal(1.0 + p * ax, approx=True)
    poly = t * (a1 + t * (a2 + t * (a3 + t * (a4 + t * a5))))
    return sgn * (1.0 - poly * jnp.exp(-ax * ax))


def _gelu_exact(x):
    return 0.5 * x * (1.0 + _erf_approx(x * 0.7071067811865476))


def _layernorm(y, gamma, beta, eps):
    mu = jnp.mean(y, axis=-1, keepdims=True)
    yc = y - mu
    var = jnp.mean(yc * yc, axis=-1, keepdims=True)
    return yc * lax.rsqrt(var + eps) * gamma + beta


# ----------------------------- matmul kernels --------------------------------

def _mm_bias_act_fast_kernel(x_ref, w_ref, b_ref, o_ref, *, activation):
    """Single-K-tile fast path: out = act(x @ w + b), no accumulator."""
    y = jnp.dot(x_ref[...].astype(w_ref.dtype), w_ref[...],
                preferred_element_type=jnp.float32)
    y = y + b_ref[...]
    if activation == "gelu":
        y = _gelu_exact(y)
    o_ref[...] = y.astype(o_ref.dtype)


def _mm_res_ln_fast_kernel(x_ref, w_ref, b_ref, r_ref, g_ref, bb_ref, o_ref,
                           *, eps):
    """Single-K-tile fast path: out = LN(x @ w + b + residual)*gamma + beta."""
    y = jnp.dot(x_ref[...].astype(w_ref.dtype), w_ref[...],
                preferred_element_type=jnp.float32)
    y = y + b_ref[...] + r_ref[...].astype(jnp.float32)
    o_ref[...] = _layernorm(y, g_ref[...], bb_ref[...], eps).astype(o_ref.dtype)


def _mm_bias_act_acc_kernel(x_ref, w_ref, b_ref, o_ref, acc_ref, *, activation):
    """K-tiled path (generic shapes): f32 accumulator, direct first assign."""
    k = pl.program_id(2)
    prod = jnp.dot(x_ref[...].astype(w_ref.dtype), w_ref[...],
                   preferred_element_type=jnp.float32)

    @pl.when(k == 0)
    def _():
        acc_ref[...] = prod

    @pl.when(k != 0)
    def _():
        acc_ref[...] += prod

    @pl.when(k == pl.num_programs(2) - 1)
    def _():
        y = acc_ref[...] + b_ref[...]
        if activation == "gelu":
            y = _gelu_exact(y)
        o_ref[...] = y.astype(o_ref.dtype)


def _mm_res_ln_acc_kernel(x_ref, w_ref, b_ref, r_ref, g_ref, bb_ref,
                          o_ref, acc_ref, *, eps):
    k = pl.program_id(2)
    prod = jnp.dot(x_ref[...].astype(w_ref.dtype), w_ref[...],
                   preferred_element_type=jnp.float32)

    @pl.when(k == 0)
    def _():
        acc_ref[...] = prod

    @pl.when(k != 0)
    def _():
        acc_ref[...] += prod

    @pl.when(k == pl.num_programs(2) - 1)
    def _():
        y = acc_ref[...] + b_ref[...] + r_ref[...].astype(jnp.float32)
        o_ref[...] = _layernorm(y, g_ref[...], bb_ref[...], eps).astype(o_ref.dtype)


# ----------------------- fused attention + AO dense + LN ---------------------

def _attn_ao_ln_kernel(qkv_ref, m_ref, aow_ref, aob_ref, r_ref, g_ref, bb_ref,
                       o_ref, *, n_heads, Dh, H, scale, eps):
    """One batch element: per-head softmax attention, head-merge folded into
    the attention-output dense (sum_h ctx_h @ ao_w[h]), + bias + residual + LN."""
    qkv = qkv_ref[0]                                     # (S, 3H) bf16
    key_mask = m_ref[0]                                  # (1, S) additive, f32

    acc = None
    for hd in range(n_heads):                            # static unroll
        q = qkv[:, hd * Dh:(hd + 1) * Dh].astype(jnp.float32) * scale
        k = qkv[:, H + hd * Dh:H + (hd + 1) * Dh].astype(jnp.float32)
        v = qkv[:, 2 * H + hd * Dh:2 * H + (hd + 1) * Dh]          # bf16
        # q @ k^T without materializing a transpose.
        s = lax.dot_general(q, k, (((1,), (1,)), ((), ())),
                            preferred_element_type=jnp.float32)     # (S, S)
        s = s + key_mask                                 # broadcast over rows
        s = s - jnp.max(s, axis=-1, keepdims=True)
        p = jnp.exp(s)
        # approx reciprocal (EUP): ~2^-12 rel err vs exact divide, OK for infer.
        p = p * pl.reciprocal(jnp.sum(p, axis=-1, keepdims=True), approx=True)
        ctx = jnp.dot(p.astype(v.dtype), v,
                      preferred_element_type=jnp.float32)            # (S, Dh)
        contrib = jnp.dot(ctx.astype(aow_ref.dtype), aow_ref[hd],
                          preferred_element_type=jnp.float32)        # (S, H)
        acc = contrib if acc is None else acc + contrib

    y = acc + aob_ref[...] + r_ref[0].astype(jnp.float32)
    o_ref[0] = _layernorm(y, g_ref[...], bb_ref[...], eps).astype(o_ref.dtype)


# ----------------------------- wrappers --------------------------------------

# Conservative scoped-VMEM budget; note v7x only has 64 MiB physical VMEM, so
# any tile scale-up for real BERT shapes must keep 2x-buffered blocks < ~48 MiB.
_VMEM_LIMIT = 32 * 1024 * 1024


def fused_linear(x, w, b, *, activation=None, residual=None,
                 ln_gamma=None, ln_beta=None, eps=1e-12, out_dtype=None,
                 tm_target=256, tn_target=512, tk_target=512):
    """y = epilogue(x @ w + b). epilogue: bias | bias+gelu | bias+res+LayerNorm.
    x/residual f32, w bf16 (cast to bf16 at the MXU, f32 accumulation)."""
    M, K = x.shape
    Kw, N = w.shape
    assert K == Kw
    out_dtype = out_dtype or x.dtype

    if residual is not None:
        tm_target = min(tm_target, 64)   # bound vreg pressure in LN epilogue
    tm = _fit_tile(M, tm_target, 8)
    tk = _fit_tile(K, tk_target, 128)
    tn = N if residual is not None else _fit_tile(N, tn_target, 128)

    # v7x megacore: guarantee >= 2 blocks on the parallel grid axes.
    if (M // tm) * (N // tn) < 2:
        if residual is None and N >= 256 and (N // 2) % 128 == 0:
            tn = N // 2
        elif M >= 16 and (M // 2) % 8 == 0:
            tm = M // 2

    single_k = (tk == K)
    cparams = pltpu.CompilerParams(
        dimension_semantics=(("parallel", "parallel") if single_k
                             else ("parallel", "parallel", "arbitrary")),
        vmem_limit_bytes=_VMEM_LIMIT)

    if single_k:
        grid = (M // tm, N // tn)
        x_spec = pl.BlockSpec((tm, K), lambda m, n: (m, 0))
        w_spec = pl.BlockSpec((K, tn), lambda m, n: (0, n))    # resident over m
        b_spec = pl.BlockSpec((1, tn), lambda m, n: (0, n))
        o_spec = pl.BlockSpec((tm, tn), lambda m, n: (m, n))
        r_spec = pl.BlockSpec((tm, tn), lambda m, n: (m, n))
        g_spec = pl.BlockSpec((1, tn), lambda m, n: (0, n))
        scratch = []
    else:
        grid = (M // tm, N // tn, K // tk)
        x_spec = pl.BlockSpec((tm, tk), lambda m, n, k: (m, k))
        w_spec = pl.BlockSpec((tk, tn), lambda m, n, k: (k, n))
        b_spec = pl.BlockSpec((1, tn), lambda m, n, k: (0, n))
        o_spec = pl.BlockSpec((tm, tn), lambda m, n, k: (m, n))
        r_spec = pl.BlockSpec((tm, tn), lambda m, n, k: (m, n))
        g_spec = pl.BlockSpec((1, tn), lambda m, n, k: (0, n))
        scratch = [pltpu.VMEM((tm, tn), jnp.float32)]

    if residual is None:
        kern = functools.partial(
            _mm_bias_act_fast_kernel if single_k else _mm_bias_act_acc_kernel,
            activation=activation)
        return pl.pallas_call(
            kern,
            out_shape=jax.ShapeDtypeStruct((M, N), out_dtype),
            grid=grid,
            in_specs=[x_spec, w_spec, b_spec],
            out_specs=o_spec,
            scratch_shapes=scratch,
            compiler_params=cparams,
        )(x, w, b.reshape(1, N))

    kern = functools.partial(
        _mm_res_ln_fast_kernel if single_k else _mm_res_ln_acc_kernel, eps=eps)
    return pl.pallas_call(
        kern,
        out_shape=jax.ShapeDtypeStruct((M, N), out_dtype),
        grid=grid,
        in_specs=[x_spec, w_spec, b_spec, r_spec, g_spec, g_spec],
        out_specs=o_spec,
        scratch_shapes=scratch,
        compiler_params=cparams,
    )(x, w, b.reshape(1, N), residual,
      ln_gamma.reshape(1, N), ln_beta.reshape(1, N))


def attention_block(qkv3, add_mask, residual3, ao_w_heads, ao_b, ln_g, ln_b,
                    *, n_heads, eps=1e-12):
    """Fused self-attention + attention-output dense + residual + LayerNorm.

    qkv3:       (B, S, 3H) bf16, [Q|K|V] columns, heads contiguous within each.
    add_mask:   (B, 1, S)  f32 additive key mask.
    residual3:  (B, S, H)  f32 layer input.
    ao_w_heads: (n_heads, Dh, H) bf16 attention-output weights.
    Returns (B, S, H) f32.
    """
    B, S, H3 = qkv3.shape
    H = H3 // 3
    Dh = H // n_heads
    scale = 1.0 / math.sqrt(Dh)
    kern = functools.partial(_attn_ao_ln_kernel, n_heads=n_heads, Dh=Dh, H=H,
                             scale=scale, eps=eps)
    return pl.pallas_call(
        kern,
        out_shape=jax.ShapeDtypeStruct((B, S, H), residual3.dtype),
        grid=(B,),
        in_specs=[
            pl.BlockSpec((1, S, H3), lambda b: (b, 0, 0)),        # qkv (once)
            pl.BlockSpec((1, 1, S), lambda b: (b, 0, 0)),         # key mask
            pl.BlockSpec((n_heads, Dh, H), lambda b: (0, 0, 0)),  # ao_w resident
            pl.BlockSpec((1, H), lambda b: (0, 0)),               # ao_b
            pl.BlockSpec((1, S, H), lambda b: (b, 0, 0)),         # residual
            pl.BlockSpec((1, H), lambda b: (0, 0)),               # gamma
            pl.BlockSpec((1, H), lambda b: (0, 0)),               # beta
        ],
        out_specs=pl.BlockSpec((1, S, H), lambda b: (b, 0, 0)),
        compiler_params=pltpu.CompilerParams(
            dimension_semantics=("parallel",),
            vmem_limit_bytes=_VMEM_LIMIT),
    )(qkv3, add_mask, ao_w_heads, ao_b.reshape(1, H), residual3,
      ln_g.reshape(1, H), ln_b.reshape(1, H))


# ----------------------------- model -----------------------------------------

def bert_layer(h, add_mask, lp, B, S, H, n_heads):
    M = B * S
    # Fused QKV projection: one (H, 3H) matmul, bf16 output slab.
    qkv = fused_linear(h, lp["qkv_w"], lp["qkv_b"],
                       out_dtype=jnp.bfloat16)                          # (M, 3H)
    # Attention + attention-output dense + residual + LayerNorm (one call).
    attn_out = attention_block(qkv.reshape(B, S, 3 * H), add_mask,
                               h.reshape(B, S, H),
                               lp["ao_w"], lp["ao_b"],
                               lp["ln1_g"], lp["ln1_b"],
                               n_heads=n_heads).reshape(M, H)
    # Intermediate dense + GELU (fused epilogue).
    inter = fused_linear(attn_out, lp["i_w"], lp["i_b"], activation="gelu")
    # Output dense + residual + LayerNorm (fused epilogue).
    return fused_linear(inter, lp["o_w"], lp["o_b"],
                        residual=attn_out,
                        ln_gamma=lp["ln2_g"], ln_beta=lp["ln2_b"])


def midibert_back_forward(params, hidden_states, attn_mask, *, n_heads):
    """MidiBertBack.forward: run encoder layers [split_layer:] on hidden_states."""
    B, S, H = hidden_states.shape
    h = hidden_states.reshape(B * S, H)
    if attn_mask is not None:
        add = (1.0 - attn_mask.astype(jnp.float32)) * -10000.0
    else:
        add = jnp.zeros((B, S), jnp.float32)
    add_mask = add.reshape(B, 1, S)               # tiny key mask; bcast in-kernel
    for lp in params["layers"]:
        h = bert_layer(h, add_mask, lp, B, S, H, n_heads)
    return h.reshape(B, S, H)                     # last_hidden_state


# ----------------------------- params -----------------------------------------

def init_params(key, hidden, inter, num_layers, n_heads):
    Dh = hidden // n_heads
    keys = iter(jax.random.split(key, 8 * num_layers + 4))

    def w(shape, scale=0.02):
        # Weights streamed as bf16 (HBM bandwidth / MXU bf16 path); f32 math
        # stays in the kernels' accumulators / epilogues.
        return (scale * jax.random.normal(next(keys), shape)).astype(jnp.bfloat16)

    zeros = lambda s: jnp.zeros(s, jnp.float32)
    ones = lambda s: jnp.ones(s, jnp.float32)

    layers = []
    for _ in range(num_layers):
        layers.append(dict(
            # Q/K/V weights stored pre-concatenated as (H, 3H), (in, out) layout.
            qkv_w=w((hidden, 3 * hidden)), qkv_b=zeros((3 * hidden,)),
            # Attention-output weight stored head-split: (n_heads, Dh, H).
            ao_w=w((hidden, hidden)).reshape(n_heads, Dh, hidden),
            ao_b=zeros((hidden,)),
            ln1_g=ones((hidden,)), ln1_b=zeros((hidden,)),
            i_w=w((hidden, inter)), i_b=zeros((inter,)),
            o_w=w((inter, hidden)), o_b=zeros((hidden,)),
            ln2_g=ones((hidden,)), ln2_b=zeros((hidden,)),
        ))
    return dict(layers=layers)


# ------------------------------- main ------------------------------------------

if __name__ == "__main__":
    # Small config consistent with MidiBertBack: it receives hidden_states from
    # the front half plus the (B, S) attention mask and runs the remaining
    # encoder layers.  Dh chosen = 128 so head slices are lane-dense.
    B, S = 2, 8
    hidden, n_heads, inter = 256, 2, 512           # Dh = 128
    total_layers, split_layer = 4, 2
    num_back_layers = total_layers - split_layer   # layers kept by MidiBertBack

    key = jax.random.PRNGKey(0)
    k_params, k_hidden = jax.random.split(key)
    params = init_params(k_params, hidden, inter, num_back_layers, n_heads)

    hidden_states = jax.random.normal(k_hidden, (B, S, hidden), jnp.float32)
    # last two positions of the second sequence are padding
    attn_mask = jnp.ones((B, S), jnp.float32).at[1, -2:].set(0.0)

    fwd = jax.jit(functools.partial(midibert_back_forward, n_heads=n_heads))
    out = fwd(params, hidden_states, attn_mask)
    out = jax.block_until_ready(out)

    assert out.shape == (B, S, hidden), out.shape
    assert bool(jnp.isfinite(out).all())
    print("KERNEL_OK")
</pallas_src>

<mosaic_0001>
module attributes {stable_mosaic.version = 11 : i64} {
  func.func @_mm_bias_act_fast_kernel(%arg0: i32, %arg1: i32, %arg2: memref<16x256xf32, #tpu.memory_space<vmem>>, %arg3: memref<256x256xbf16, #tpu.memory_space<vmem>>, %arg4: memref<1x256xf32, #tpu.memory_space<vmem>>, %arg5: memref<16x256xf32, #tpu.memory_space<vmem>>) attributes {dimension_semantics = [#tpu.dimension_semantics<parallel>, #tpu.dimension_semantics<parallel>], iteration_bounds = array<i64: 1, 2>, scalar_prefetch = 0 : i64, scratch_operands = 0 : i64, tpu.core_type = #tpu.core_type<tc>, window_params = [{transform_indices = @transform_0, window_bounds = array<i64: 16, 256>}, {transform_indices = @transform_1, window_bounds = array<i64: 256, 256>}, {transform_indices = @transform_2, window_bounds = array<i64: 1, 256>}, {transform_indices = @transform_3, window_bounds = array<i64: 16, 256>}]} {
    %c0 = arith.constant 0 : index
    %c0_0 = arith.constant 0 : index
    %0 = vector.load %arg2[%c0, %c0_0] : memref<16x256xf32, #tpu.memory_space<vmem>>, vector<16x256xf32>
    %1 = arith.truncf %0 : vector<16x256xf32> to vector<16x256xbf16>
    %c0_1 = arith.constant 0 : index
    %c0_2 = arith.constant 0 : index
    %2 = vector.load %arg3[%c0_1, %c0_2] : memref<256x256xbf16, #tpu.memory_space<vmem>>, vector<256x256xbf16>
    %cst = arith.constant dense<0.000000e+00> : vector<16x256xf32>
    %3 = tpu.matmul %1, %2, %cst {dimension_numbers = #tpu.dot_dimension_numbers<[1], [0], [0], [1], [0, 0, 1, 1], [], []>} : vector<16x256xbf16>, vector<256x256xbf16>, vector<16x256xf32> -> vector<16x256xf32>
    %c0_3 = arith.constant 0 : index
    %c0_4 = arith.constant 0 : index
    %4 = vector.load %arg4[%c0_3, %c0_4] : memref<1x256xf32, #tpu.memory_space<vmem>>, vector<1x256xf32>
    %5 = vector.broadcast %4 : vector<1x256xf32> to vector<16x256xf32>
    %6 = arith.addf %3, %5 : vector<16x256xf32>
    %cst_5 = arith.constant 5.000000e-01 : f32
    %7 = vector.broadcast %cst_5 : f32 to vector<16x256xf32>
    %8 = arith.mulf %7, %6 : vector<16x256xf32>
    %cst_6 = arith.constant 0.707106769 : f32
    %9 = vector.broadcast %cst_6 : f32 to vector<16x256xf32>
    %10 = arith.mulf %6, %9 : vector<16x256xf32>
    %cst_7 = arith.constant 0.000000e+00 : f32
    %11 = vector.broadcast %cst_7 : f32 to vector<16x256xf32>
    %12 = arith.cmpf oge, %10, %11 : vector<16x256xf32>
    %cst_8 = arith.constant 1.000000e+00 : f32
    %cst_9 = arith.constant -1.000000e+00 : f32
    %13 = vector.broadcast %cst_8 : f32 to vector<16x256xf32>
    %14 = vector.broadcast %cst_9 : f32 to vector<16x256xf32>
    %15 = arith.select %12, %13, %14 : vector<16x256xi1>, vector<16x256xf32>
    %16 = math.absf %10 : vector<16x256xf32>
    %cst_10 = arith.constant 0.327591091 : f32
    %17 = vector.broadcast %cst_10 : f32 to vector<16x256xf32>
    %18 = arith.mulf %17, %16 : vector<16x256xf32>
    %cst_11 = arith.constant 1.000000e+00 : f32
    %19 = vector.broadcast %cst_11 : f32 to vector<16x256xf32>
    %20 = arith.addf %19, %18 : vector<16x256xf32>
    %21 = tpu.reciprocal %20 {approx = true} : vector<16x256xf32> -> vector<16x256xf32>
    %cst_12 = arith.constant 1.06140542 : f32
    %22 = vector.broadcast %cst_12 : f32 to vector<16x256xf32>
    %23 = arith.mulf %21, %22 : vector<16x256xf32>
    %cst_13 = arith.constant -1.45315206 : f32
    %24 = vector.broadcast %cst_13 : f32 to vector<16x256xf32>
    %25 = arith.addf %24, %23 : vector<16x256xf32>
    %26 = arith.mulf %21, %25 : vector<16x256xf32>
    %cst_14 = arith.constant 1.42141378 : f32
    %27 = vector.broadcast %cst_14 : f32 to vector<16x256xf32>
    %28 = arith.addf %27, %26 : vector<16x256xf32>
    %29 = arith.mulf %21, %28 : vector<16x256xf32>
    %cst_15 = arith.constant -0.284496725 : f32
    %30 = vector.broadcast %cst_15 : f32 to vector<16x256xf32>
    %31 = arith.addf %30, %29 : vector<16x256xf32>
    %32 = arith.mulf %21, %31 : vector<16x256xf32>
    %cst_16 = arith.constant 0.254829586 : f32
    %33 = vector.broadcast %cst_16 : f32 to vector<16x256xf32>
    %34 = arith.addf %33, %32 : vector<16x256xf32>
    %35 = arith.mulf %21, %34 : vector<16x256xf32>
    %cst_17 = arith.constant 0.000000e+00 : f32
    %36 = vector.broadcast %cst_17 : f32 to vector<16x256xf32>
    %37 = arith.subf %36, %16 : vector<16x256xf32>
    %38 = arith.mulf %37, %16 : vector<16x256xf32>
    %39 = math.exp %38 : vector<16x256xf32>
    %40 = arith.mulf %35, %39 : vector<16x256xf32>
    %cst_18 = arith.constant 1.000000e+00 : f32
    %41 = vector.broadcast %cst_18 : f32 to vector<16x256xf32>
    %42 = arith.subf %41, %40 : vector<16x256xf32>
    %43 = arith.mulf %15, %42 : vector<16x256xf32>
    %cst_19 = arith.constant 1.000000e+00 : f32
    %44 = vector.broadcast %cst_19 : f32 to vector<16x256xf32>
    %45 = arith.addf %44, %43 : vector<16x256xf32>
    %46 = arith.mulf %8, %45 : vector<16x256xf32>
    %c0_20 = arith.constant 0 : index
    %c0_21 = arith.constant 0 : index
    %47 = vector.load %arg5[%c0_20, %c0_21] : memref<16x256xf32, #tpu.memory_space<vmem>>, vector<16x256xf32>
    tpu.vector_store %arg5[%c0_20, %c0_21], %46 {strides = array<i32>} : memref<16x256xf32, #tpu.memory_space<vmem>>, vector<16x256xf32>,
    return
  }
  func.func @transform_0(%arg0: i32, %arg1: i32) -> (i32, i32) {
    %c0_i32 = arith.constant 0 : i32
    %c0_i32_0 = arith.constant 0 : i32
    return %arg0, %c0_i32 : i32, i32
  }
  func.func @transform_1(%arg0: i32, %arg1: i32) -> (i32, i32) {
    %c0_i32 = arith.constant 0 : i32
    %c0_i32_0 = arith.constant 0 : i32
    return %c0_i32, %arg1 : i32, i32
  }
  func.func @transform_2(%arg0: i32, %arg1: i32) -> (i32, i32) {
    %c0_i32 = arith.constant 0 : i32
    %c0_i32_0 = arith.constant 0 : i32
    return %c0_i32, %arg1 : i32, i32
  }
  func.func @transform_3(%arg0: i32, %arg1: i32) -> (i32, i32) {
    %c0_i32 = arith.constant 0 : i32
    return %arg0, %arg1 : i32, i32
  }
}

module attributes {stable_mosaic.version = 11 : i64} {
  func.func @_mm_bias_act_fast_kernel(%arg0: i32, %arg1: i32, %arg2: memref<16x256xf32, #tpu.memory_space<vmem>>, %arg3: memref<256x384xbf16, #tpu.memory_space<vmem>>, %arg4: memref<1x384xf32, #tpu.memory_space<vmem>>, %arg5: memref<16x384xbf16, #tpu.memory_space<vmem>>) attributes {dimension_semantics = [#tpu.dimension_semantics<parallel>, #tpu.dimension_semantics<parallel>], iteration_bounds = array<i64: 1, 2>, scalar_prefetch = 0 : i64, scratch_operands = 0 : i64, tpu.core_type = #tpu.core_type<tc>, window_params = [{transform_indices = @transform_0, window_bounds = array<i64: 16, 256>}, {transform_indices = @transform_1, window_bounds = array<i64: 256, 384>}, {transform_indices = @transform_2, window_bounds = array<i64: 1, 384>}, {transform_indices = @transform_3, window_bounds = array<i64: 16, 384>}]} {
    %c0 = arith.constant 0 : index
    %c0_0 = arith.constant 0 : index
    %0 = vector.load %arg2[%c0, %c0_0] : memref<16x256xf32, #tpu.memory_space<vmem>>, vector<16x256xf32>
    %1 = arith.truncf %0 : vector<16x256xf32> to vector<16x256xbf16>
    %c0_1 = arith.constant 0 : index
    %c0_2 = arith.constant 0 : index
    %2 = vector.load %arg3[%c0_1, %c0_2] : memref<256x384xbf16, #tpu.memory_space<vmem>>, vector<256x384xbf16>
    %cst = arith.constant dense<0.000000e+00> : vector<16x384xf32>
    %3 = tpu.matmul %1, %2, %cst {dimension_numbers = #tpu.dot_dimension_numbers<[1], [0], [0], [1], [0, 0, 1, 1], [], []>} : vector<16x256xbf16>, vector<256x384xbf16>, vector<16x384xf32> -> vector<16x384xf32>
    %c0_3 = arith.constant 0 : index
    %c0_4 = arith.constant 0 : index
    %4 = vector.load %arg4[%c0_3, %c0_4] : memref<1x384xf32, #tpu.memory_space<vmem>>, vector<1x384xf32>
    %5 = vector.broadcast %4 : vector<1x384xf32> to vector<16x384xf32>
    %6 = arith.addf %3, %5 : vector<16x384xf32>
    %7 = arith.truncf %6 : vector<16x384xf32> to vector<16x384xbf16>
    %c0_5 = arith.constant 0 : index
    %c0_6 = arith.constant 0 : index
    %8 = vector.load %arg5[%c0_5, %c0_6] : memref<16x384xbf16, #tpu.memory_space<vmem>>, vector<16x384xbf16>
    tpu.vector_store %arg5[%c0_5, %c0_6], %7 {strides = array<i32>} : memref<16x384xbf16, #tpu.memory_space<vmem>>, vector<16x384xbf16>,
    return
  }
  func.func @transform_0(%arg0: i32, %arg1: i32) -> (i32, i32) {
    %c0_i32 = arith.constant 0 : i32
    %c0_i32_0 = arith.constant 0 : i32
    return %arg0, %c0_i32 : i32, i32
  }
  func.func @transform_1(%arg0: i32, %arg1: i32) -> (i32, i32) {
    %c0_i32 = arith.constant 0 : i32
    %c0_i32_0 = arith.constant 0 : i32
    return %c0_i32, %arg1 : i32, i32
  }
  func.func @transform_2(%arg0: i32, %arg1: i32) -> (i32, i32) {
    %c0_i32 = arith.constant 0 : i32
    %c0_i32_0 = arith.constant 0 : i32
    return %c0_i32, %arg1 : i32, i32
  }
  func.func @transform_3(%arg0: i32, %arg1: i32) -> (i32, i32) {
    %c0_i32 = arith.constant 0 : i32
    return %arg0, %arg1 : i32, i32
  }
}

module attributes {stable_mosaic.version = 11 : i64} {
  func.func @_attn_ao_ln_kernel(%arg0: i32, %arg1: memref<1x8x768xbf16, #tpu.memory_space<vmem>>, %arg2: memref<1x1x8xf32, #tpu.memory_space<vmem>>, %arg3: memref<2x128x256xbf16, #tpu.memory_space<vmem>>, %arg4: memref<1x256xf32, #tpu.memory_space<vmem>>, %arg5: memref<1x8x256xf32, #tpu.memory_space<vmem>>, %arg6: memref<1x256xf32, #tpu.memory_space<vmem>>, %arg7: memref<1x256xf32, #tpu.memory_space<vmem>>, %arg8: memref<1x8x256xf32, #tpu.memory_space<vmem>>) attributes {dimension_semantics = [#tpu.dimension_semantics<parallel>], iteration_bounds = array<i64: 2>, scalar_prefetch = 0 : i64, scratch_operands = 0 : i64, tpu.core_type = #tpu.core_type<tc>, window_params = [{transform_indices = @transform_0, window_bounds = array<i64: 1, 8, 768>}, {transform_indices = @transform_1, window_bounds = array<i64: 1, 1, 8>}, {pipeline_mode = #tpu.pipeline_mode<synchronous>, transform_indices = @transform_2, window_bounds = array<i64: 2, 128, 256>}, {pipeline_mode = #tpu.pipeline_mode<synchronous>, transform_indices = @transform_3, window_bounds = array<i64: 1, 256>}, {transform_indices = @transform_4, window_bounds = array<i64: 1, 8, 256>}, {pipeline_mode = #tpu.pipeline_mode<synchronous>, transform_indices = @transform_5, window_bounds = array<i64: 1, 256>}, {pipeline_mode = #tpu.pipeline_mode<synchronous>, transform_indices = @transform_6, window_bounds = array<i64: 1, 256>}, {transform_indices = @transform_7, window_bounds = array<i64: 1, 8, 256>}]} {
    %c0 = arith.constant 0 : index
    %c0_0 = arith.constant 0 : index
    %c0_1 = arith.constant 0 : index
    %0 = vector.load %arg1[%c0, %c0_0, %c0_1] : memref<1x8x768xbf16, #tpu.memory_space<vmem>>, vector<1x8x768xbf16>
    %1 = vector.shape_cast %0 : vector<1x8x768xbf16> to vector<8x768xbf16>
    %c0_2 = arith.constant 0 : index
    %c0_3 = arith.constant 0 : index
    %c0_4 = arith.constant 0 : index
    %2 = vector.load %arg2[%c0_2, %c0_3, %c0_4] : memref<1x1x8xf32, #tpu.memory_space<vmem>>, vector<1x1x8xf32>
    %3 = vector.shape_cast %2 : vector<1x1x8xf32> to vector<1x8xf32>
    %4 = vector.extract_strided_slice %1 {offsets = [0, 0], sizes = [8, 128], strides = [1, 1]} : vector<8x768xbf16> to vector<8x128xbf16>
    %5 = arith.extf %4 : vector<8x128xbf16> to vector<8x128xf32>
    %cst = arith.constant 0.0883883461 : f32
    %6 = vector.broadcast %cst : f32 to vector<8x128xf32>
    %7 = arith.mulf %5, %6 : vector<8x128xf32>
    %8 = vector.extract_strided_slice %1 {offsets = [0, 256], sizes = [8, 128], strides = [1, 1]} : vector<8x768xbf16> to vector<8x128xbf16>
    %9 = arith.extf %8 : vector<8x128xbf16> to vector<8x128xf32>
    %10 = vector.extract_strided_slice %1 {offsets = [0, 512], sizes = [8, 128], strides = [1, 1]} : vector<8x768xbf16> to vector<8x128xbf16>
    %cst_5 = arith.constant dense<0.000000e+00> : vector<8x8xf32>
    %11 = tpu.matmul %7, %9, %cst_5 {dimension_numbers = #tpu.dot_dimension_numbers<[1], [1], [0], [0], [0, 0, 1, 0], [], []>} : vector<8x128xf32>, vector<8x128xf32>, vector<8x8xf32> -> vector<8x8xf32>
    %12 = vector.broadcast %3 : vector<1x8xf32> to vector<8x8xf32>
    %13 = arith.addf %11, %12 : vector<8x8xf32>
    %cst_6 = arith.constant dense<0xFF800000> : vector<8xf32>
    %14 = vector.multi_reduction <maximumf>, %13, %cst_6 [1] : vector<8x8xf32> to vector<8xf32>
    %15 = vector.shape_cast %14 : vector<8xf32> to vector<8x1xf32>
    %16 = vector.broadcast %15 : vector<8x1xf32> to vector<8x8xf32>
    %17 = arith.subf %13, %16 : vector<8x8xf32>
    %18 = math.exp %17 : vector<8x8xf32>
    %cst_7 = arith.constant dense<0.000000e+00> : vector<8xf32>
    %19 = vector.multi_reduction <add>, %18, %cst_7 [1] : vector<8x8xf32> to vector<8xf32>
    %20 = vector.shape_cast %19 : vector<8xf32> to vector<8x1xf32>
    %21 = tpu.reciprocal %20 {approx = true} : vector<8x1xf32> -> vector<8x1xf32>
    %22 = vector.broadcast %21 : vector<8x1xf32> to vector<8x8xf32>
    %23 = arith.mulf %18, %22 : vector<8x8xf32>
    %24 = arith.truncf %23 : vector<8x8xf32> to vector<8x8xbf16>
    %cst_8 = arith.constant dense<0.000000e+00> : vector<8x128xf32>
    %25 = tpu.matmul %24, %10, %cst_8 {dimension_numbers = #tpu.dot_dimension_numbers<[1], [0], [0], [1], [0, 0, 1, 1], [], []>} : vector<8x8xbf16>, vector<8x128xbf16>, vector<8x128xf32> -> vector<8x128xf32>
    %26 = arith.truncf %25 : vector<8x128xf32> to vector<8x128xbf16>
    %c0_9 = arith.constant 0 : index
    %c0_10 = arith.constant 0 : index
    %c0_11 = arith.constant 0 : index
    %27 = vector.load %arg3[%c0_9, %c0_10, %c0_11] : memref<2x128x256xbf16, #tpu.memory_space<vmem>>, vector<1x128x256xbf16>
    %28 = vector.shape_cast %27 : vector<1x128x256xbf16> to vector<128x256xbf16>
    %cst_12 = arith.constant dense<0.000000e+00> : vector<8x256xf32>
    %29 = tpu.matmul %26, %28, %cst_12 {dimension_numbers = #tpu.dot_dimension_numbers<[1], [0], [0], [1], [0, 0, 1, 1], [], []>} : vector<8x128xbf16>, vector<128x256xbf16>, vector<8x256xf32> -> vector<8x256xf32>
    %30 = vector.extract_strided_slice %1 {offsets = [0, 128], sizes = [8, 128], strides = [1, 1]} : vector<8x768xbf16> to vector<8x128xbf16>
    %31 = arith.extf %30 : vector<8x128xbf16> to vector<8x128xf32>
    %cst_13 = arith.constant 0.0883883461 : f32
    %32 = vector.broadcast %cst_13 : f32 to vector<8x128xf32>
    %33 = arith.mulf %31, %32 : vector<8x128xf32>
    %34 = vector.extract_strided_slice %1 {offsets = [0, 384], sizes = [8, 128], strides = [1, 1]} : vector<8x768xbf16> to vector<8x128xbf16>
    %35 = arith.extf %34 : vector<8x128xbf16> to vector<8x128xf32>
    %36 = vector.extract_strided_slice %1 {offsets = [0, 640], sizes = [8, 128], strides = [1, 1]} : vector<8x768xbf16> to vector<8x128xbf16>
    %cst_14 = arith.constant dense<0.000000e+00> : vector<8x8xf32>
    %37 = tpu.matmul %33, %35, %cst_14 {dimension_numbers = #tpu.dot_dimension_numbers<[1], [1], [0], [0], [0, 0, 1, 0], [], []>} : vector<8x128xf32>, vector<8x128xf32>, vector<8x8xf32> -> vector<8x8xf32>
    %38 = vector.broadcast %3 : vector<1x8xf32> to vector<8x8xf32>
    %39 = arith.addf %37, %38 : vector<8x8xf32>
    %cst_15 = arith.constant dense<0xFF800000> : vector<8xf32>
    %40 = vector.multi_reduction <maximumf>, %39, %cst_15 [1] : vector<8x8xf32> to vector<8xf32>
    %41 = vector.shape_cast %40 : vector<8xf32> to vector<8x1xf32>
    %42 = vector.broadcast %41 : vector<8x1xf32> to vector<8x8xf32>
    %43 = arith.subf %39, %42 : vector<8x8xf32>
    %44 = math.exp %43 : vector<8x8xf32>
    %cst_16 = arith.constant dense<0.000000e+00> : vector<8xf32>
    %45 = vector.multi_reduction <add>, %44, %cst_16 [1] : vector<8x8xf32> to vector<8xf32>
    %46 = vector.shape_cast %45 : vector<8xf32> to vector<8x1xf32>
    %47 = tpu.reciprocal %46 {approx = true} : vector<8x1xf32> -> vector<8x1xf32>
    %48 = vector.broadcast %47 : vector<8x1xf32> to vector<8x8xf32>
    %49 = arith.mulf %44, %48 : vector<8x8xf32>
    %50 = arith.truncf %49 : vector<8x8xf32> to vector<8x8xbf16>
    %cst_17 = arith.constant dense<0.000000e+00> : vector<8x128xf32>
    %51 = tpu.matmul %50, %36, %cst_17 {dimension_numbers = #tpu.dot_dimension_numbers<[1], [0], [0], [1], [0, 0, 1, 1], [], []>} : vector<8x8xbf16>, vector<8x128xbf16>, vector<8x128xf32> -> vector<8x128xf32>
    %52 = arith.truncf %51 : vector<8x128xf32> to vector<8x128xbf16>
    %c1 = arith.constant 1 : index
    %c0_18 = arith.constant 0 : index
    %c0_19 = arith.constant 0 : index
    %53 = vector.load %arg3[%c1, %c0_18, %c0_19] : memref<2x128x256xbf16, #tpu.memory_space<vmem>>, vector<1x128x256xbf16>
    %54 = vector.shape_cast %53 : vector<1x128x256xbf16> to vector<128x256xbf16>
    %cst_20 = arith.constant dense<0.000000e+00> : vector<8x256xf32>
    %55 = tpu.matmul %52, %54, %cst_20 {dimension_numbers = #tpu.dot_dimension_numbers<[1], [0], [0], [1], [0, 0, 1, 1], [], []>} : vector<8x128xbf16>, vector<128x256xbf16>, vector<8x256xf32> -> vector<8x256xf32>
    %56 = arith.addf %29, %55 : vector<8x256xf32>
    %c0_21 = arith.constant 0 : index
    %c0_22 = arith.constant 0 : index
    %57 = vector.load %arg4[%c0_21, %c0_22] : memref<1x256xf32, #tpu.memory_space<vmem>>, vector<1x256xf32>
    %58 = vector.broadcast %57 : vector<1x256xf32> to vector<8x256xf32>
    %59 = arith.addf %56, %58 : vector<8x256xf32>
    %c0_23 = arith.constant 0 : index
    %c0_24 = arith.constant 0 : index
    %c0_25 = arith.constant 0 : index
    %60 = vector.load %arg5[%c0_23, %c0_24, %c0_25] : memref<1x8x256xf32, #tpu.memory_space<vmem>>, vector<1x8x256xf32>
    %61 = vector.shape_cast %60 : vector<1x8x256xf32> to vector<8x256xf32>
    %62 = arith.addf %59, %61 : vector<8x256xf32>
    %c0_26 = arith.constant 0 : index
    %c0_27 = arith.constant 0 : index
    %63 = vector.load %arg6[%c0_26, %c0_27] : memref<1x256xf32, #tpu.memory_space<vmem>>, vector<1x256xf32>
    %c0_28 = arith.constant 0 : index
    %c0_29 = arith.constant 0 : index
    %64 = vector.load %arg7[%c0_28, %c0_29] : memref<1x256xf32, #tpu.memory_space<vmem>>, vector<1x256xf32>
    %cst_30 = arith.constant dense<0.000000e+00> : vector<8xf32>
    %65 = vector.multi_reduction <add>, %62, %cst_30 [1] : vector<8x256xf32> to vector<8xf32>
    %66 = vector.shape_cast %65 : vector<8xf32> to vector<8x1xf32>
    %cst_31 = arith.constant 2.560000e+02 : f32
    %67 = vector.broadcast %cst_31 : f32 to vector<8x1xf32>
    %68 = arith.divf %66, %67 : vector<8x1xf32>
    %69 = vector.broadcast %68 : vector<8x1xf32> to vector<8x256xf32>
    %70 = arith.subf %62, %69 : vector<8x256xf32>
    %71 = arith.mulf %70, %70 : vector<8x256xf32>
    %cst_32 = arith.constant dense<0.000000e+00> : vector<8xf32>
    %72 = vector.multi_reduction <add>, %71, %cst_32 [1] : vector<8x256xf32> to vector<8xf32>
    %73 = vector.shape_cast %72 : vector<8xf32> to vector<8x1xf32>
    %cst_33 = arith.constant 2.560000e+02 : f32
    %74 = vector.broadcast %cst_33 : f32 to vector<8x1xf32>
    %75 = arith.divf %73, %74 : vector<8x1xf32>
    %cst_34 = arith.constant 9.99999996E-13 : f32
    %76 = vector.broadcast %cst_34 : f32 to vector<8x1xf32>
    %77 = arith.addf %75, %76 : vector<8x1xf32>
    %78 = math.rsqrt %77 : vector<8x1xf32>
    %79 = vector.broadcast %78 : vector<8x1xf32> to vector<8x256xf32>
    %80 = arith.mulf %70, %79 : vector<8x256xf32>
    %81 = vector.broadcast %63 : vector<1x256xf32> to vector<8x256xf32>
    %82 = arith.mulf %80, %81 : vector<8x256xf32>
    %83 = vector.broadcast %64 : vector<1x256xf32> to vector<8x256xf32>
    %84 = arith.addf %82, %83 : vector<8x256xf32>
    %c0_35 = arith.constant 0 : index
    %c0_36 = arith.constant 0 : index
    %c0_37 = arith.constant 0 : index
    %85 = vector.load %arg8[%c0_35, %c0_36, %c0_37] : memref<1x8x256xf32, #tpu.memory_space<vmem>>, vector<1x8x256xf32>
    %86 = vector.shape_cast %85 : vector<1x8x256xf32> to vector<8x256xf32>
    %87 = vector.shape_cast %84 : vector<8x256xf32> to vector<1x8x256xf32>
    tpu.vector_store %arg8[%c0_35, %c0_36, %c0_37], %87 {strides = array<i32>} : memref<1x8x256xf32, #tpu.memory_space<vmem>>, vector<1x8x256xf32>,
    return
  }
  func.func @transform_0(%arg0: i32) -> (i32, i32, i32) {
    %c0_i32 = arith.constant 0 : i32
    %c0_i32_0 = arith.constant 0 : i32
    %c0_i32_1 = arith.constant 0 : i32
    return %arg0, %c0_i32, %c0_i32_0 : i32, i32, i32
  }
  func.func @transform_1(%arg0: i32) -> (i32, i32, i32) {
    %c0_i32 = arith.constant 0 : i32
    %c0_i32_0 = arith.constant 0 : i32
    %c0_i32_1 = arith.constant 0 : i32
    return %arg0, %c0_i32, %c0_i32_0 : i32, i32, i32
  }
  func.func @transform_2(%arg0: i32) -> (i32, i32, i32) {
    %c0_i32 = arith.constant 0 : i32
    %c0_i32_0 = arith.constant 0 : i32
    %c0_i32_1 = arith.constant 0 : i32
    %c0_i32_2 = arith.constant 0 : i32
    return %c0_i32, %c0_i32_0, %c0_i32_1 : i32, i32, i32
  }
  func.func @transform_3(%arg0: i32) -> (i32, i32) {
    %c0_i32 = arith.constant 0 : i32
    %c0_i32_0 = arith.constant 0 : i32
    %c0_i32_1 = arith.constant 0 : i32
    return %c0_i32, %c0_i32_0 : i32, i32
  }
  func.func @transform_4(%arg0: i32) -> (i32, i32, i32) {
    %c0_i32 = arith.constant 0 : i32
    %c0_i32_0 = arith.constant 0 : i32
    %c0_i32_1 = arith.constant 0 : i32
    return %arg0, %c0_i32, %c0_i32_0 : i32, i32, i32
  }
  func.func @transform_5(%arg0: i32) -> (i32, i32) {
    %c0_i32 = arith.constant 0 : i32
    %c0_i32_0 = arith.constant 0 : i32
    %c0_i32_1 = arith.constant 0 : i32
    return %c0_i32, %c0_i32_0 : i32, i32
  }
  func.func @transform_6(%arg0: i32) -> (i32, i32) {
    %c0_i32 = arith.constant 0 : i32
    %c0_i32_0 = arith.constant 0 : i32
    %c0_i32_1 = arith.constant 0 : i32
    return %c0_i32, %c0_i32_0 : i32, i32
  }
  func.func @transform_7(%arg0: i32) -> (i32, i32, i32) {
    %c0_i32 = arith.constant 0 : i32
    %c0_i32_0 = arith.constant 0 : i32
    %c0_i32_1 = arith.constant 0 : i32
    return %arg0, %c0_i32, %c0_i32_0 : i32, i32, i32
  }
}

module attributes {stable_mosaic.version = 11 : i64} {
  func.func @_mm_res_ln_fast_kernel(%arg0: i32, %arg1: i32, %arg2: memref<8x512xf32, #tpu.memory_space<vmem>>, %arg3: memref<512x256xbf16, #tpu.memory_space<vmem>>, %arg4: memref<1x256xf32, #tpu.memory_space<vmem>>, %arg5: memref<8x256xf32, #tpu.memory_space<vmem>>, %arg6: memref<1x256xf32, #tpu.memory_space<vmem>>, %arg7: memref<1x256xf32, #tpu.memory_space<vmem>>, %arg8: memref<8x256xf32, #tpu.memory_space<vmem>>) attributes {dimension_semantics = [#tpu.dimension_semantics<parallel>, #tpu.dimension_semantics<parallel>], iteration_bounds = array<i64: 2, 1>, scalar_prefetch = 0 : i64, scratch_operands = 0 : i64, tpu.core_type = #tpu.core_type<tc>, window_params = [{transform_indices = @transform_0, window_bounds = array<i64: 8, 512>}, {transform_indices = @transform_1, window_bounds = array<i64: 512, 256>}, {transform_indices = @transform_2, window_bounds = array<i64: 1, 256>}, {transform_indices = @transform_3, window_bounds = array<i64: 8, 256>}, {transform_indices = @transform_4, window_bounds = array<i64: 1, 256>}, {transform_indices = @transform_5, window_bounds = array<i64: 1, 256>}, {transform_indices = @transform_6, window_bounds = array<i64: 8, 256>}]} {
    %c0 = arith.constant 0 : index
    %c0_0 = arith.constant 0 : index
    %0 = vector.load %arg2[%c0, %c0_0] : memref<8x512xf32, #tpu.memory_space<vmem>>, vector<8x512xf32>
    %1 = arith.truncf %0 : vector<8x512xf32> to vector<8x512xbf16>
    %c0_1 = arith.constant 0 : index
    %c0_2 = arith.constant 0 : index
    %2 = vector.load %arg3[%c0_1, %c0_2] : memref<512x256xbf16, #tpu.memory_space<vmem>>, vector<512x256xbf16>
    %cst = arith.constant dense<0.000000e+00> : vector<8x256xf32>
    %3 = tpu.matmul %1, %2, %cst {dimension_numbers = #tpu.dot_dimension_numbers<[1], [0], [0], [1], [0, 0, 1, 1], [], []>} : vector<8x512xbf16>, vector<512x256xbf16>, vector<8x256xf32> -> vector<8x256xf32>
    %c0_3 = arith.constant 0 : index
    %c0_4 = arith.constant 0 : index
    %4 = vector.load %arg4[%c0_3, %c0_4] : memref<1x256xf32, #tpu.memory_space<vmem>>, vector<1x256xf32>
    %5 = vector.broadcast %4 : vector<1x256xf32> to vector<8x256xf32>
    %6 = arith.addf %3, %5 : vector<8x256xf32>
    %c0_5 = arith.constant 0 : index
    %c0_6 = arith.constant 0 : index
    %7 = vector.load %arg5[%c0_5, %c0_6] : memref<8x256xf32, #tpu.memory_space<vmem>>, vector<8x256xf32>
    %8 = arith.addf %6, %7 : vector<8x256xf32>
    %c0_7 = arith.constant 0 : index
    %c0_8 = arith.constant 0 : index
    %9 = vector.load %arg6[%c0_7, %c0_8] : memref<1x256xf32, #tpu.memory_space<vmem>>, vector<1x256xf32>
    %c0_9 = arith.constant 0 : index
    %c0_10 = arith.constant 0 : index
    %10 = vector.load %arg7[%c0_9, %c0_10] : memref<1x256xf32, #tpu.memory_space<vmem>>, vector<1x256xf32>
    %cst_11 = arith.constant dense<0.000000e+00> : vector<8xf32>
    %11 = vector.multi_reduction <add>, %8, %cst_11 [1] : vector<8x256xf32> to vector<8xf32>
    %12 = vector.shape_cast %11 : vector<8xf32> to vector<8x1xf32>
    %cst_12 = arith.constant 2.560000e+02 : f32
    %13 = vector.broadcast %cst_12 : f32 to vector<8x1xf32>
    %14 = arith.divf %12, %13 : vector<8x1xf32>
    %15 = vector.broadcast %14 : vector<8x1xf32> to vector<8x256xf32>
    %16 = arith.subf %8, %15 : vector<8x256xf32>
    %17 = arith.mulf %16, %16 : vector<8x256xf32>
    %cst_13 = arith.constant dense<0.000000e+00> : vector<8xf32>
    %18 = vector.multi_reduction <add>, %17, %cst_13 [1] : vector<8x256xf32> to vector<8xf32>
    %19 = vector.shape_cast %18 : vector<8xf32> to vector<8x1xf32>
    %cst_14 = arith.constant 2.560000e+02 : f32
    %20 = vector.broadcast %cst_14 : f32 to vector<8x1xf32>
    %21 = arith.divf %19, %20 : vector<8x1xf32>
    %cst_15 = arith.constant 9.99999996E-13 : f32
    %22 = vector.broadcast %cst_15 : f32 to vector<8x1xf32>
    %23 = arith.addf %21, %22 : vector<8x1xf32>
    %24 = math.rsqrt %23 : vector<8x1xf32>
    %25 = vector.broadcast %24 : vector<8x1xf32> to vector<8x256xf32>
    %26 = arith.mulf %16, %25 : vector<8x256xf32>
    %27 = vector.broadcast %9 : vector<1x256xf32> to vector<8x256xf32>
    %28 = arith.mulf %26, %27 : vector<8x256xf32>
    %29 = vector.broadcast %10 : vector<1x256xf32> to vector<8x256xf32>
    %30 = arith.addf %28, %29 : vector<8x256xf32>
    %c0_16 = arith.constant 0 : index
    %c0_17 = arith.constant 0 : index
    %31 = vector.load %arg8[%c0_16, %c0_17] : memref<8x256xf32, #tpu.memory_space<vmem>>, vector<8x256xf32>
    tpu.vector_store %arg8[%c0_16, %c0_17], %30 {strides = array<i32>} : memref<8x256xf32, #tpu.memory_space<vmem>>, vector<8x256xf32>,
    return
  }
  func.func @transform_0(%arg0: i32, %arg1: i32) -> (i32, i32) {
    %c0_i32 = arith.constant 0 : i32
    %c0_i32_0 = arith.constant 0 : i32
    return %arg0, %c0_i32 : i32, i32
  }
  func.func @transform_1(%arg0: i32, %arg1: i32) -> (i32, i32) {
    %c0_i32 = arith.constant 0 : i32
    %c0_i32_0 = arith.constant 0 : i32
    return %c0_i32, %arg1 : i32, i32
  }
  func.func @transform_2(%arg0: i32, %arg1: i32) -> (i32, i32) {
    %c0_i32 = arith.constant 0 : i32
    %c0_i32_0 = arith.constant 0 : i32
    return %c0_i32, %arg1 : i32, i32
  }
  func.func @transform_3(%arg0: i32, %arg1: i32) -> (i32, i32) {
    %c0_i32 = arith.constant 0 : i32
    return %arg0, %arg1 : i32, i32
  }
  func.func @transform_4(%arg0: i32, %arg1: i32) -> (i32, i32) {
    %c0_i32 = arith.constant 0 : i32
    %c0_i32_0 = arith.constant 0 : i32
    return %c0_i32, %arg1 : i32, i32
  }
  func.func @transform_5(%arg0: i32, %arg1: i32) -> (i32, i32) {
    %c0_i32 = arith.constant 0 : i32
    %c0_i32_0 = arith.constant 0 : i32
    return %c0_i32, %arg1 : i32, i32
  }
  func.func @transform_6(%arg0: i32, %arg1: i32) -> (i32, i32) {
    %c0_i32 = arith.constant 0 : i32
    return %arg0, %arg1 : i32, i32
  }
}

module attributes {stable_mosaic.version = 11 : i64} {
  func.func @_mm_bias_act_fast_kernel(%arg0: i32, %arg1: i32, %arg2: memref<16x256xf32, #tpu.memory_space<vmem>>, %arg3: memref<256x384xbf16, #tpu.memory_space<vmem>>, %arg4: memref<1x384xf32, #tpu.memory_space<vmem>>, %arg5: memref<16x384xbf16, #tpu.memory_space<vmem>>) attributes {dimension_semantics = [#tpu.dimension_semantics<parallel>, #tpu.dimension_semantics<parallel>], iteration_bounds = array<i64: 1, 2>, scalar_prefetch = 0 : i64, scratch_operands = 0 : i64, tpu.core_type = #tpu.core_type<tc>, window_params = [{transform_indices = @transform_0, window_bounds = array<i64: 16, 256>}, {transform_indices = @transform_1, window_bounds = array<i64: 256, 384>}, {transform_indices = @transform_2, window_bounds = array<i64: 1, 384>}, {transform_indices = @transform_3, window_bounds = array<i64: 16, 384>}]} {
    %c0 = arith.constant 0 : index
    %c0_0 = arith.constant 0 : index
    %0 = vector.load %arg2[%c0, %c0_0] : memref<16x256xf32, #tpu.memory_space<vmem>>, vector<16x256xf32>
    %1 = arith.truncf %0 : vector<16x256xf32> to vector<16x256xbf16>
    %c0_1 = arith.constant 0 : index
    %c0_2 = arith.constant 0 : index
    %2 = vector.load %arg3[%c0_1, %c0_2] : memref<256x384xbf16, #tpu.memory_space<vmem>>, vector<256x384xbf16>
    %cst = arith.constant dense<0.000000e+00> : vector<16x384xf32>
    %3 = tpu.matmul %1, %2, %cst {dimension_numbers = #tpu.dot_dimension_numbers<[1], [0], [0], [1], [0, 0, 1, 1], [], []>} : vector<16x256xbf16>, vector<256x384xbf16>, vector<16x384xf32> -> vector<16x384xf32>
    %c0_3 = arith.constant 0 : index
    %c0_4 = arith.constant 0 : index
    %4 = vector.load %arg4[%c0_3, %c0_4] : memref<1x384xf32, #tpu.memory_space<vmem>>, vector<1x384xf32>
    %5 = vector.broadcast %4 : vector<1x384xf32> to vector<16x384xf32>
    %6 = arith.addf %3, %5 : vector<16x384xf32>
    %7 = arith.truncf %6 : vector<16x384xf32> to vector<16x384xbf16>
    %c0_5 = arith.constant 0 : index
    %c0_6 = arith.constant 0 : index
    %8 = vector.load %arg5[%c0_5, %c0_6] : memref<16x384xbf16, #tpu.memory_space<vmem>>, vector<16x384xbf16>
    tpu.vector_store %arg5[%c0_5, %c0_6], %7 {strides = array<i32>} : memref<16x384xbf16, #tpu.memory_space<vmem>>, vector<16x384xbf16>,
    return
  }
  func.func @transform_0(%arg0: i32, %arg1: i32) -> (i32, i32) {
    %c0_i32 = arith.constant 0 : i32
    %c0_i32_0 = arith.constant 0 : i32
    return %arg0, %c0_i32 : i32, i32
  }
  func.func @transform_1(%arg0: i32, %arg1: i32) -> (i32, i32) {
    %c0_i32 = arith.constant 0 : i32
    %c0_i32_0 = arith.constant 0 : i32
    return %c0_i32, %arg1 : i32, i32
  }
  func.func @transform_2(%arg0: i32, %arg1: i32) -> (i32, i32) {
    %c0_i32 = arith.constant 0 : i32
    %c0_i32_0 = arith.constant 0 : i32
    return %c0_i32, %arg1 : i32, i32
  }
  func.func @transform_3(%arg0: i32, %arg1: i32) -> (i32, i32) {
    %c0_i32 = arith.constant 0 : i32
    return %arg0, %arg1 : i32, i32
  }
}

module attributes {stable_mosaic.version = 11 : i64} {
  func.func @_mm_res_ln_fast_kernel(%arg0: i32, %arg1: i32, %arg2: memref<8x512xf32, #tpu.memory_space<vmem>>, %arg3: memref<512x256xbf16, #tpu.memory_space<vmem>>, %arg4: memref<1x256xf32, #tpu.memory_space<vmem>>, %arg5: memref<8x256xf32, #tpu.memory_space<vmem>>, %arg6: memref<1x256xf32, #tpu.memory_space<vmem>>, %arg7: memref<1x256xf32, #tpu.memory_space<vmem>>, %arg8: memref<8x256xf32, #tpu.memory_space<vmem>>) attributes {dimension_semantics = [#tpu.dimension_semantics<parallel>, #tpu.dimension_semantics<parallel>], iteration_bounds = array<i64: 2, 1>, scalar_prefetch = 0 : i64, scratch_operands = 0 : i64, tpu.core_type = #tpu.core_type<tc>, window_params = [{transform_indices = @transform_0, window_bounds = array<i64: 8, 512>}, {transform_indices = @transform_1, window_bounds = array<i64: 512, 256>}, {transform_indices = @transform_2, window_bounds = array<i64: 1, 256>}, {transform_indices = @transform_3, window_bounds = array<i64: 8, 256>}, {transform_indices = @transform_4, window_bounds = array<i64: 1, 256>}, {transform_indices = @transform_5, window_bounds = array<i64: 1, 256>}, {transform_indices = @transform_6, window_bounds = array<i64: 8, 256>}]} {
    %c0 = arith.constant 0 : index
    %c0_0 = arith.constant 0 : index
    %0 = vector.load %arg2[%c0, %c0_0] : memref<8x512xf32, #tpu.memory_space<vmem>>, vector<8x512xf32>
    %1 = arith.truncf %0 : vector<8x512xf32> to vector<8x512xbf16>
    %c0_1 = arith.constant 0 : index
    %c0_2 = arith.constant 0 : index
    %2 = vector.load %arg3[%c0_1, %c0_2] : memref<512x256xbf16, #tpu.memory_space<vmem>>, vector<512x256xbf16>
    %cst = arith.constant dense<0.000000e+00> : vector<8x256xf32>
    %3 = tpu.matmul %1, %2, %cst {dimension_numbers = #tpu.dot_dimension_numbers<[1], [0], [0], [1], [0, 0, 1, 1], [], []>} : vector<8x512xbf16>, vector<512x256xbf16>, vector<8x256xf32> -> vector<8x256xf32>
    %c0_3 = arith.constant 0 : index
    %c0_4 = arith.constant 0 : index
    %4 = vector.load %arg4[%c0_3, %c0_4] : memref<1x256xf32, #tpu.memory_space<vmem>>, vector<1x256xf32>
    %5 = vector.broadcast %4 : vector<1x256xf32> to vector<8x256xf32>
    %6 = arith.addf %3, %5 : vector<8x256xf32>
    %c0_5 = arith.constant 0 : index
    %c0_6 = arith.constant 0 : index
    %7 = vector.load %arg5[%c0_5, %c0_6] : memref<8x256xf32, #tpu.memory_space<vmem>>, vector<8x256xf32>
    %8 = arith.addf %6, %7 : vector<8x256xf32>
    %c0_7 = arith.constant 0 : index
    %c0_8 = arith.constant 0 : index
    %9 = vector.load %arg6[%c0_7, %c0_8] : memref<1x256xf32, #tpu.memory_space<vmem>>, vector<1x256xf32>
    %c0_9 = arith.constant 0 : index
    %c0_10 = arith.constant 0 : index
    %10 = vector.load %arg7[%c0_9, %c0_10] : memref<1x256xf32, #tpu.memory_space<vmem>>, vector<1x256xf32>
    %cst_11 = arith.constant dense<0.000000e+00> : vector<8xf32>
    %11 = vector.multi_reduction <add>, %8, %cst_11 [1] : vector<8x256xf32> to vector<8xf32>
    %12 = vector.shape_cast %11 : vector<8xf32> to vector<8x1xf32>
    %cst_12 = arith.constant 2.560000e+02 : f32
    %13 = vector.broadcast %cst_12 : f32 to vector<8x1xf32>
    %14 = arith.divf %12, %13 : vector<8x1xf32>
    %15 = vector.broadcast %14 : vector<8x1xf32> to vector<8x256xf32>
    %16 = arith.subf %8, %15 : vector<8x256xf32>
    %17 = arith.mulf %16, %16 : vector<8x256xf32>
    %cst_13 = arith.constant dense<0.000000e+00> : vector<8xf32>
    %18 = vector.multi_reduction <add>, %17, %cst_13 [1] : vector<8x256xf32> to vector<8xf32>
    %19 = vector.shape_cast %18 : vector<8xf32> to vector<8x1xf32>
    %cst_14 = arith.constant 2.560000e+02 : f32
    %20 = vector.broadcast %cst_14 : f32 to vector<8x1xf32>
    %21 = arith.divf %19, %20 : vector<8x1xf32>
    %cst_15 = arith.constant 9.99999996E-13 : f32
    %22 = vector.broadcast %cst_15 : f32 to vector<8x1xf32>
    %23 = arith.addf %21, %22 : vector<8x1xf32>
    %24 = math.rsqrt %23 : vector<8x1xf32>
    %25 = vector.broadcast %24 : vector<8x1xf32> to vector<8x256xf32>
    %26 = arith.mulf %16, %25 : vector<8x256xf32>
    %27 = vector.broadcast %9 : vector<1x256xf32> to vector<8x256xf32>
    %28 = arith.mulf %26, %27 : vector<8x256xf32>
    %29 = vector.broadcast %10 : vector<1x256xf32> to vector<8x256xf32>
    %30 = arith.addf %28, %29 : vector<8x256xf32>
    %c0_16 = arith.constant 0 : index
    %c0_17 = arith.constant 0 : index
    %31 = vector.load %arg8[%c0_16, %c0_17] : memref<8x256xf32, #tpu.memory_space<vmem>>, vector<8x256xf32>
    tpu.vector_store %arg8[%c0_16, %c0_17], %30 {strides = array<i32>} : memref<8x256xf32, #tpu.memory_space<vmem>>, vector<8x256xf32>,
    return
  }
  func.func @transform_0(%arg0: i32, %arg1: i32) -> (i32, i32) {
    %c0_i32 = arith.constant 0 : i32
    %c0_i32_0 = arith.constant 0 : i32
    return %arg0, %c0_i32 : i32, i32
  }
  func.func @transform_1(%arg0: i32, %arg1: i32) -> (i32, i32) {
    %c0_i32 = arith.constant 0 : i32
    %c0_i32_0 = arith.constant 0 : i32
    return %c0_i32, %arg1 : i32, i32
  }
  func.func @transform_2(%arg0: i32, %arg1: i32) -> (i32, i32) {
    %c0_i32 = arith.constant 0 : i32
    %c0_i32_0 = arith.constant 0 : i32
    return %c0_i32, %arg1 : i32, i32
  }
  func.func @transform_3(%arg0: i32, %arg1: i32) -> (i32, i32) {
    %c0_i32 = arith.constant 0 : i32
    return %arg0, %arg1 : i32, i32
  }
  func.func @transform_4(%arg0: i32, %arg1: i32) -> (i32, i32) {
    %c0_i32 = arith.constant 0 : i32
    %c0_i32_0 = arith.constant 0 : i32
    return %c0_i32, %arg1 : i32, i32
  }
  func.func @transform_5(%arg0: i32, %arg1: i32) -> (i32, i32) {
    %c0_i32 = arith.constant 0 : i32
    %c0_i32_0 = arith.constant 0 : i32
    return %c0_i32, %arg1 : i32, i32
  }
  func.func @transform_6(%arg0: i32, %arg1: i32) -> (i32, i32) {
    %c0_i32 = arith.constant 0 : i32
    return %arg0, %arg1 : i32, i32
  }
}

module attributes {stable_mosaic.version = 11 : i64} {
  func.func @_attn_ao_ln_kernel(%arg0: i32, %arg1: memref<1x8x768xbf16, #tpu.memory_space<vmem>>, %arg2: memref<1x1x8xf32, #tpu.memory_space<vmem>>, %arg3: memref<2x128x256xbf16, #tpu.memory_space<vmem>>, %arg4: memref<1x256xf32, #tpu.memory_space<vmem>>, %arg5: memref<1x8x256xf32, #tpu.memory_space<vmem>>, %arg6: memref<1x256xf32, #tpu.memory_space<vmem>>, %arg7: memref<1x256xf32, #tpu.memory_space<vmem>>, %arg8: memref<1x8x256xf32, #tpu.memory_space<vmem>>) attributes {dimension_semantics = [#tpu.dimension_semantics<parallel>], iteration_bounds = array<i64: 2>, scalar_prefetch = 0 : i64, scratch_operands = 0 : i64, tpu.core_type = #tpu.core_type<tc>, window_params = [{transform_indices = @transform_0, window_bounds = array<i64: 1, 8, 768>}, {transform_indices = @transform_1, window_bounds = array<i64: 1, 1, 8>}, {pipeline_mode = #tpu.pipeline_mode<synchronous>, transform_indices = @transform_2, window_bounds = array<i64: 2, 128, 256>}, {pipeline_mode = #tpu.pipeline_mode<synchronous>, transform_indices = @transform_3, window_bounds = array<i64: 1, 256>}, {transform_indices = @transform_4, window_bounds = array<i64: 1, 8, 256>}, {pipeline_mode = #tpu.pipeline_mode<synchronous>, transform_indices = @transform_5, window_bounds = array<i64: 1, 256>}, {pipeline_mode = #tpu.pipeline_mode<synchronous>, transform_indices = @transform_6, window_bounds = array<i64: 1, 256>}, {transform_indices = @transform_7, window_bounds = array<i64: 1, 8, 256>}]} {
    %c0 = arith.constant 0 : index
    %c0_0 = arith.constant 0 : index
    %c0_1 = arith.constant 0 : index
    %0 = vector.load %arg1[%c0, %c0_0, %c0_1] : memref<1x8x768xbf16, #tpu.memory_space<vmem>>, vector<1x8x768xbf16>
    %1 = vector.shape_cast %0 : vector<1x8x768xbf16> to vector<8x768xbf16>
    %c0_2 = arith.constant 0 : index
    %c0_3 = arith.constant 0 : index
    %c0_4 = arith.constant 0 : index
    %2 = vector.load %arg2[%c0_2, %c0_3, %c0_4] : memref<1x1x8xf32, #tpu.memory_space<vmem>>, vector<1x1x8xf32>
    %3 = vector.shape_cast %2 : vector<1x1x8xf32> to vector<1x8xf32>
    %4 = vector.extract_strided_slice %1 {offsets = [0, 0], sizes = [8, 128], strides = [1, 1]} : vector<8x768xbf16> to vector<8x128xbf16>
    %5 = arith.extf %4 : vector<8x128xbf16> to vector<8x128xf32>
    %cst = arith.constant 0.0883883461 : f32
    %6 = vector.broadcast %cst : f32 to vector<8x128xf32>
    %7 = arith.mulf %5, %6 : vector<8x128xf32>
    %8 = vector.extract_strided_slice %1 {offsets = [0, 256], sizes = [8, 128], strides = [1, 1]} : vector<8x768xbf16> to vector<8x128xbf16>
    %9 = arith.extf %8 : vector<8x128xbf16> to vector<8x128xf32>
    %10 = vector.extract_strided_slice %1 {offsets = [0, 512], sizes = [8, 128], strides = [1, 1]} : vector<8x768xbf16> to vector<8x128xbf16>
    %cst_5 = arith.constant dense<0.000000e+00> : vector<8x8xf32>
    %11 = tpu.matmul %7, %9, %cst_5 {dimension_numbers = #tpu.dot_dimension_numbers<[1], [1], [0], [0], [0, 0, 1, 0], [], []>} : vector<8x128xf32>, vector<8x128xf32>, vector<8x8xf32> -> vector<8x8xf32>
    %12 = vector.broadcast %3 : vector<1x8xf32> to vector<8x8xf32>
    %13 = arith.addf %11, %12 : vector<8x8xf32>
    %cst_6 = arith.constant dense<0xFF800000> : vector<8xf32>
    %14 = vector.multi_reduction <maximumf>, %13, %cst_6 [1] : vector<8x8xf32> to vector<8xf32>
    %15 = vector.shape_cast %14 : vector<8xf32> to vector<8x1xf32>
    %16 = vector.broadcast %15 : vector<8x1xf32> to vector<8x8xf32>
    %17 = arith.subf %13, %16 : vector<8x8xf32>
    %18 = math.exp %17 : vector<8x8xf32>
    %cst_7 = arith.constant dense<0.000000e+00> : vector<8xf32>
    %19 = vector.multi_reduction <add>, %18, %cst_7 [1] : vector<8x8xf32> to vector<8xf32>
    %20 = vector.shape_cast %19 : vector<8xf32> to vector<8x1xf32>
    %21 = tpu.reciprocal %20 {approx = true} : vector<8x1xf32> -> vector<8x1xf32>
    %22 = vector.broadcast %21 : vector<8x1xf32> to vector<8x8xf32>
    %23 = arith.mulf %18, %22 : vector<8x8xf32>
    %24 = arith.truncf %23 : vector<8x8xf32> to vector<8x8xbf16>
    %cst_8 = arith.constant dense<0.000000e+00> : vector<8x128xf32>
    %25 = tpu.matmul %24, %10, %cst_8 {dimension_numbers = #tpu.dot_dimension_numbers<[1], [0], [0], [1], [0, 0, 1, 1], [], []>} : vector<8x8xbf16>, vector<8x128xbf16>, vector<8x128xf32> -> vector<8x128xf32>
    %26 = arith.truncf %25 : vector<8x128xf32> to vector<8x128xbf16>
    %c0_9 = arith.constant 0 : index
    %c0_10 = arith.constant 0 : index
    %c0_11 = arith.constant 0 : index
    %27 = vector.load %arg3[%c0_9, %c0_10, %c0_11] : memref<2x128x256xbf16, #tpu.memory_space<vmem>>, vector<1x128x256xbf16>
    %28 = vector.shape_cast %27 : vector<1x128x256xbf16> to vector<128x256xbf16>
    %cst_12 = arith.constant dense<0.000000e+00> : vector<8x256xf32>
    %29 = tpu.matmul %26, %28, %cst_12 {dimension_numbers = #tpu.dot_dimension_numbers<[1], [0], [0], [1], [0, 0, 1, 1], [], []>} : vector<8x128xbf16>, vector<128x256xbf16>, vector<8x256xf32> -> vector<8x256xf32>
    %30 = vector.extract_strided_slice %1 {offsets = [0, 128], sizes = [8, 128], strides = [1, 1]} : vector<8x768xbf16> to vector<8x128xbf16>
    %31 = arith.extf %30 : vector<8x128xbf16> to vector<8x128xf32>
    %cst_13 = arith.constant 0.0883883461 : f32
    %32 = vector.broadcast %cst_13 : f32 to vector<8x128xf32>
    %33 = arith.mulf %31, %32 : vector<8x128xf32>
    %34 = vector.extract_strided_slice %1 {offsets = [0, 384], sizes = [8, 128], strides = [1, 1]} : vector<8x768xbf16> to vector<8x128xbf16>
    %35 = arith.extf %34 : vector<8x128xbf16> to vector<8x128xf32>
    %36 = vector.extract_strided_slice %1 {offsets = [0, 640], sizes = [8, 128], strides = [1, 1]} : vector<8x768xbf16> to vector<8x128xbf16>
    %cst_14 = arith.constant dense<0.000000e+00> : vector<8x8xf32>
    %37 = tpu.matmul %33, %35, %cst_14 {dimension_numbers = #tpu.dot_dimension_numbers<[1], [1], [0], [0], [0, 0, 1, 0], [], []>} : vector<8x128xf32>, vector<8x128xf32>, vector<8x8xf32> -> vector<8x8xf32>
    %38 = vector.broadcast %3 : vector<1x8xf32> to vector<8x8xf32>
    %39 = arith.addf %37, %38 : vector<8x8xf32>
    %cst_15 = arith.constant dense<0xFF800000> : vector<8xf32>
    %40 = vector.multi_reduction <maximumf>, %39, %cst_15 [1] : vector<8x8xf32> to vector<8xf32>
    %41 = vector.shape_cast %40 : vector<8xf32> to vector<8x1xf32>
    %42 = vector.broadcast %41 : vector<8x1xf32> to vector<8x8xf32>
    %43 = arith.subf %39, %42 : vector<8x8xf32>
    %44 = math.exp %43 : vector<8x8xf32>
    %cst_16 = arith.constant dense<0.000000e+00> : vector<8xf32>
    %45 = vector.multi_reduction <add>, %44, %cst_16 [1] : vector<8x8xf32> to vector<8xf32>
    %46 = vector.shape_cast %45 : vector<8xf32> to vector<8x1xf32>
    %47 = tpu.reciprocal %46 {approx = true} : vector<8x1xf32> -> vector<8x1xf32>
    %48 = vector.broadcast %47 : vector<8x1xf32> to vector<8x8xf32>
    %49 = arith.mulf %44, %48 : vector<8x8xf32>
    %50 = arith.truncf %49 : vector<8x8xf32> to vector<8x8xbf16>
    %cst_17 = arith.constant dense<0.000000e+00> : vector<8x128xf32>
    %51 = tpu.matmul %50, %36, %cst_17 {dimension_numbers = #tpu.dot_dimension_numbers<[1], [0], [0], [1], [0, 0, 1, 1], [], []>} : vector<8x8xbf16>, vector<8x128xbf16>, vector<8x128xf32> -> vector<8x128xf32>
    %52 = arith.truncf %51 : vector<8x128xf32> to vector<8x128xbf16>
    %c1 = arith.constant 1 : index
    %c0_18 = arith.constant 0 : index
    %c0_19 = arith.constant 0 : index
    %53 = vector.load %arg3[%c1, %c0_18, %c0_19] : memref<2x128x256xbf16, #tpu.memory_space<vmem>>, vector<1x128x256xbf16>
    %54 = vector.shape_cast %53 : vector<1x128x256xbf16> to vector<128x256xbf16>
    %cst_20 = arith.constant dense<0.000000e+00> : vector<8x256xf32>
    %55 = tpu.matmul %52, %54, %cst_20 {dimension_numbers = #tpu.dot_dimension_numbers<[1], [0], [0], [1], [0, 0, 1, 1], [], []>} : vector<8x128xbf16>, vector<128x256xbf16>, vector<8x256xf32> -> vector<8x256xf32>
    %56 = arith.addf %29, %55 : vector<8x256xf32>
    %c0_21 = arith.constant 0 : index
    %c0_22 = arith.constant 0 : index
    %57 = vector.load %arg4[%c0_21, %c0_22] : memref<1x256xf32, #tpu.memory_space<vmem>>, vector<1x256xf32>
    %58 = vector.broadcast %57 : vector<1x256xf32> to vector<8x256xf32>
    %59 = arith.addf %56, %58 : vector<8x256xf32>
    %c0_23 = arith.constant 0 : index
    %c0_24 = arith.constant 0 : index
    %c0_25 = arith.constant 0 : index
    %60 = vector.load %arg5[%c0_23, %c0_24, %c0_25] : memref<1x8x256xf32, #tpu.memory_space<vmem>>, vector<1x8x256xf32>
    %61 = vector.shape_cast %60 : vector<1x8x256xf32> to vector<8x256xf32>
    %62 = arith.addf %59, %61 : vector<8x256xf32>
    %c0_26 = arith.constant 0 : index
    %c0_27 = arith.constant 0 : index
    %63 = vector.load %arg6[%c0_26, %c0_27] : memref<1x256xf32, #tpu.memory_space<vmem>>, vector<1x256xf32>
    %c0_28 = arith.constant 0 : index
    %c0_29 = arith.constant 0 : index
    %64 = vector.load %arg7[%c0_28, %c0_29] : memref<1x256xf32, #tpu.memory_space<vmem>>, vector<1x256xf32>
    %cst_30 = arith.constant dense<0.000000e+00> : vector<8xf32>
    %65 = vector.multi_reduction <add>, %62, %cst_30 [1] : vector<8x256xf32> to vector<8xf32>
    %66 = vector.shape_cast %65 : vector<8xf32> to vector<8x1xf32>
    %cst_31 = arith.constant 2.560000e+02 : f32
    %67 = vector.broadcast %cst_31 : f32 to vector<8x1xf32>
    %68 = arith.divf %66, %67 : vector<8x1xf32>
    %69 = vector.broadcast %68 : vector<8x1xf32> to vector<8x256xf32>
    %70 = arith.subf %62, %69 : vector<8x256xf32>
    %71 = arith.mulf %70, %70 : vector<8x256xf32>
    %cst_32 = arith.constant dense<0.000000e+00> : vector<8xf32>
    %72 = vector.multi_reduction <add>, %71, %cst_32 [1] : vector<8x256xf32> to vector<8xf32>
    %73 = vector.shape_cast %72 : vector<8xf32> to vector<8x1xf32>
    %cst_33 = arith.constant 2.560000e+02 : f32
    %74 = vector.broadcast %cst_33 : f32 to vector<8x1xf32>
    %75 = arith.divf %73, %74 : vector<8x1xf32>
    %cst_34 = arith.constant 9.99999996E-13 : f32
    %76 = vector.broadcast %cst_34 : f32 to vector<8x1xf32>
    %77 = arith.addf %75, %76 : vector<8x1xf32>
    %78 = math.rsqrt %77 : vector<8x1xf32>
    %79 = vector.broadcast %78 : vector<8x1xf32> to vector<8x256xf32>
    %80 = arith.mulf %70, %79 : vector<8x256xf32>
    %81 = vector.broadcast %63 : vector<1x256xf32> to vector<8x256xf32>
    %82 = arith.mulf %80, %81 : vector<8x256xf32>
    %83 = vector.broadcast %64 : vector<1x256xf32> to vector<8x256xf32>
    %84 = arith.addf %82, %83 : vector<8x256xf32>
    %c0_35 = arith.constant 0 : index
    %c0_36 = arith.constant 0 : index
    %c0_37 = arith.constant 0 : index
    %85 = vector.load %arg8[%c0_35, %c0_36, %c0_37] : memref<1x8x256xf32, #tpu.memory_space<vmem>>, vector<1x8x256xf32>
    %86 = vector.shape_cast %85 : vector<1x8x256xf32> to vector<8x256xf32>
    %87 = vector.shape_cast %84 : vector<8x256xf32> to vector<1x8x256xf32>
    tpu.vector_store %arg8[%c0_35, %c0_36, %c0_37], %87 {strides = array<i32>} : memref<1x8x256xf32, #tpu.memory_space<vmem>>, vector<1x8x256xf32>,
    return
  }
  func.func @transform_0(%arg0: i32) -> (i32, i32, i32) {
    %c0_i32 = arith.constant 0 : i32
    %c0_i32_0 = arith.constant 0 : i32
    %c0_i32_1 = arith.constant 0 : i32
    return %arg0, %c0_i32, %c0_i32_0 : i32, i32, i32
  }
  func.func @transform_1(%arg0: i32) -> (i32, i32, i32) {
    %c0_i32 = arith.constant 0 : i32
    %c0_i32_0 = arith.constant 0 : i32
    %c0_i32_1 = arith.constant 0 : i32
    return %arg0, %c0_i32, %c0_i32_0 : i32, i32, i32
  }
  func.func @transform_2(%arg0: i32) -> (i32, i32, i32) {
    %c0_i32 = arith.constant 0 : i32
    %c0_i32_0 = arith.constant 0 : i32
    %c0_i32_1 = arith.constant 0 : i32
    %c0_i32_2 = arith.constant 0 : i32
    return %c0_i32, %c0_i32_0, %c0_i32_1 : i32, i32, i32
  }
  func.func @transform_3(%arg0: i32) -> (i32, i32) {
    %c0_i32 = arith.constant 0 : i32
    %c0_i32_0 = arith.constant 0 : i32
    %c0_i32_1 = arith.constant 0 : i32
    return %c0_i32, %c0_i32_0 : i32, i32
  }
  func.func @transform_4(%arg0: i32) -> (i32, i32, i32) {
    %c0_i32 = arith.constant 0 : i32
    %c0_i32_0 = arith.constant 0 : i32
    %c0_i32_1 = arith.constant 0 : i32
    return %arg0, %c0_i32, %c0_i32_0 : i32, i32, i32
  }
  func.func @transform_5(%arg0: i32) -> (i32, i32) {
    %c0_i32 = arith.constant 0 : i32
    %c0_i32_0 = arith.constant 0 : i32
    %c0_i32_1 = arith.constant 0 : i32
    return %c0_i32, %c0_i32_0 : i32, i32
  }
  func.func @transform_6(%arg0: i32) -> (i32, i32) {
    %c0_i32 = arith.constant 0 : i32
    %c0_i32_0 = arith.constant 0 : i32
    %c0_i32_1 = arith.constant 0 : i32
    return %c0_i32, %c0_i32_0 : i32, i32
  }
  func.func @transform_7(%arg0: i32) -> (i32, i32, i32) {
    %c0_i32 = arith.constant 0 : i32
    %c0_i32_0 = arith.constant 0 : i32
    %c0_i32_1 = arith.constant 0 : i32
    return %arg0, %c0_i32, %c0_i32_0 : i32, i32, i32
  }
}

</mosaic_0001>

<llo_original>
// kernel: midibert_back_forward.9
$region0: #{midibert_back_forward.9}
  #allocation0 [shape = 'u32[]', space=smem, size = 0x4, offset = 0x4, fixed_abs, tag = 'smem constant byte address 0x4 - core index']
  #allocation1 [shape = 'u32[72,128]{1,0:T(1,128)}', space=vmem, size = 0x9000, scoped, tag = 'internal scratch']
  %s0 = inlined_call_operand.vmem [shape: bf16[2,8,768], index: 0, kind: input, shape index: {}]
  %s1 = inlined_call_operand.vmem [shape: f32[2,1,8], index: 1, kind: input, shape index: {}]
  %s2 = inlined_call_operand.hbm [shape: bf16[2,128,256], index: 2, kind: input, shape index: {}]
  %s3 = inlined_call_operand.vmem [shape: f32[1,256], index: 3, kind: input, shape index: {}]
  %s4 = inlined_call_operand.hbm [shape: f32[2,8,256], index: 4, kind: input, shape index: {}]
  %s5 = inlined_call_operand.vmem [shape: f32[1,256], index: 5, kind: input, shape index: {}]
  %s6 = inlined_call_operand.vmem [shape: f32[1,256], index: 6, kind: input, shape index: {}]
  %s7 = inlined_call_operand.vmem [shape: f32[2,8,256], index: 7, kind: output, shape index: {}]
  %s8 = sld [smem:[#allocation0]]
  $region69: #{midibert_back_forward.9} parent=0
    _
  %s10 = ssub.s32 1, %s8
  %s11 = scalar_select 0, %s10, %s8
  $region1: #{midibert_back_forward.9} parent=0
    #allocation2 [shape = 'u8[131072]{0}', space=vmem, size = 0x20000, scoped, tag = 'input window, operand 2, single buffered']
    #allocation3 [shape = 's32[2]{0}', space=sflag, size = 0x8, scoped, tag = 'scoped memory for midibert_back_forward.9']
    #allocation4 [shape = 'u8[16384]{0}', space=vmem, size = 0x4000, scoped, tag = 'input window, operand 4']
    #allocation5 [shape = 's32[2]{0}', space=sflag, size = 0x8, scoped, tag = 'scoped memory for midibert_back_forward.9']
    %12 = vsyncpa [#allocation3], 0
    %13 = vsyncpa [#allocation5], 0
    %s14 = scalar_lea.sflag [#allocation5], 1
    %15 = vsyncpa %s14, 0
    loop: start=0, step=1, limit=4
    $region2: #{midibert_back_forward.9} parent=1 // loop_pre_header
      _
    $region3: #{midibert_back_forward.9} parent=1 // loop_header
      %s17 = sphi 0, %s21
      %p18 = scmp.ge.s32.totalorder %s17, 4
      %s27 = sphi 0, %s29
      %s30 = sphi 0, %s27
      %s31 = sphi 0, %s30
      %s47 = sphi 0, %s31
      %s53 = sphi 0, %s55
      %s56 = sphi 0, %s53
      %s57 = sphi 0, %s56
      %s73 = sphi 0, %s57
      %s77 = sphi 0, %s77
      %s79 = sphi 0, %s77
      %s80 = sphi 0, %s79
      %s94 = sphi 0, %s80
      %s98 = sphi 0, %s98
      %s100 = sphi 0, %s98
      %s101 = sphi 0, %s100
      %s115 = sphi 0, %s101
      %s121 = sphi 0, %s123
      %s124 = sphi 0, %s121
      %s125 = sphi 0, %s124
      %s141 = sphi 0, %s125
      %s145 = sphi 0, %s145
      %s147 = sphi 0, %s145
      %s148 = sphi 0, %s147
      %s162 = sphi 0, %s148
      %s166 = sphi 0, %s166
      %s168 = sphi 0, %s166
      %s169 = sphi 0, %s168
      %s183 = sphi 0, %s169
      %s189 = sphi 0, %s191
      %s192 = sphi 0, %s189
      %s193 = sphi 0, %s192
      %s209 = sphi 0, %s193
    $region4: #{midibert_back_forward.9} parent=1 // loop_header_branch
      %20 = sbr.rel (%p18) target = $region8
    $region5: #{midibert_back_forward.9} parent=1 // loop_body
      %s22 = ssub.s32 %s17, 1
      %s23 = ssub.s32 %s17, 2
      %s24 = sadd.s32 %s17, 1
      %s25 = ssub.s32 %s17, %s24
      %p26 = scmp.eq.s32.totalorder %s25, 0
      %s28 = sadd.s32 %s27, 1
      %s29 = scalar_select %p26, %s27, %s28
      %p32 = pneg %p26
      %p33 = scmp.eq.s32.totalorder %s17, 1
      %p34 = por %p32, %p33
      %p35 = scmp.ne.s32.totalorder %s27, %s30
      %p36 = scmp.eq.s32.totalorder %s17, 0
      %p37 = por %p35, %p36
      %p38 = scmp.ne.s32.totalorder %s27, %s30
      %p39 = scmp.eq.s32.totalorder %s22, 1
      %p40 = por %p38, %p39
      %p41 = scmp.ne.s32.totalorder %s30, %s31
      %p42 = scmp.eq.s32.totalorder %s22, 0
      %p43 = por %p41, %p42
      %p44 = scmp.ne.s32.totalorder %s30, %s31
      %p45 = scmp.eq.s32.totalorder %s23, 1
      %p46 = por %p44, %p45
      %p48 = scmp.ne.s32.totalorder %s31, %s47
      %p49 = scmp.eq.s32.totalorder %s23, 0
      %p50 = por %p48, %p49
      %s51 = ssub.s32 %s17, %s24
      %p52 = scmp.eq.s32.totalorder %s51, 0
      %s54 = sadd.s32 %s53, 1
      %s55 = scalar_select %p52, %s53, %s54
      %p58 = pneg %p52
      %p59 = scmp.eq.s32.totalorder %s17, 1
      %p60 = por %p58, %p59
      %p61 = scmp.ne.s32.totalorder %s53, %s56
      %p62 = scmp.eq.s32.totalorder %s17, 0
      %p63 = por %p61, %p62
      %p64 = scmp.ne.s32.totalorder %s53, %s56
      %p65 = scmp.eq.s32.totalorder %s22, 1
      %p66 = por %p64, %p65
      %p67 = scmp.ne.s32.totalorder %s56, %s57
      %p68 = scmp.eq.s32.totalorder %s22, 0
      %p69 = por %p67, %p68
      %p70 = scmp.ne.s32.totalorder %s56, %s57
      %p71 = scmp.eq.s32.totalorder %s23, 1
      %p72 = por %p70, %p71
      %p74 = scmp.ne.s32.totalorder %s57, %s73
      %p75 = scmp.eq.s32.totalorder %s23, 0
      %p76 = por %p74, %p75
      %s78 = sadd.s32 %s77, 1
      %p81 = scmp.eq.s32.totalorder %s17, 1
      %p82 = scmp.ne.s32.totalorder %s77, %s79
      %p83 = scmp.eq.s32.totalorder %s17, 0
      %p84 = por %p82, %p83
      %p85 = scmp.ne.s32.totalorder %s77, %s79
      %p86 = scmp.eq.s32.totalorder %s22, 1
      %p87 = por %p85, %p86
      %p88 = scmp.ne.s32.totalorder %s79, %s80
      %p89 = scmp.eq.s32.totalorder %s22, 0
      %p90 = por %p88, %p89
      %p91 = scmp.ne.s32.totalorder %s79, %s80
      %p92 = scmp.eq.s32.totalorder %s23, 1
      %p93 = por %p91, %p92
      %p95 = scmp.ne.s32.totalorder %s80, %s94
      %p96 = scmp.eq.s32.totalorder %s23, 0
      %p97 = por %p95, %p96
      %s99 = sadd.s32 %s98, 1
      %p102 = scmp.eq.s32.totalorder %s17, 1
      %p103 = scmp.ne.s32.totalorder %s98, %s100
      %p104 = scmp.eq.s32.totalorder %s17, 0
      %p105 = por %p103, %p104
      %p106 = scmp.ne.s32.totalorder %s98, %s100
      %p107 = scmp.eq.s32.totalorder %s22, 1
      %p108 = por %p106, %p107
      %p109 = scmp.ne.s32.totalorder %s100, %s101
      %p110 = scmp.eq.s32.totalorder %s22, 0
      %p111 = por %p109, %p110
      %p112 = scmp.ne.s32.totalorder %s100, %s101
      %p113 = scmp.eq.s32.totalorder %s23, 1
      %p114 = por %p112, %p113
      %p116 = scmp.ne.s32.totalorder %s101, %s115
      %p117 = scmp.eq.s32.totalorder %s23, 0
      %p118 = por %p116, %p117
      %s119 = ssub.s32 %s17, %s24
      %p120 = scmp.eq.s32.totalorder %s119, 0
      %s122 = sadd.s32 %s121, 1
      %s123 = scalar_select %p120, %s121, %s122
      %p126 = pneg %p120
      %p127 = scmp.eq.s32.totalorder %s17, 1
      %p128 = por %p126, %p127
      %p129 = scmp.ne.s32.totalorder %s121, %s124
      %p130 = scmp.eq.s32.totalorder %s17, 0
      %p131 = por %p129, %p130
      %p132 = scmp.ne.s32.totalorder %s121, %s124
      %p133 = scmp.eq.s32.totalorder %s22, 1
      %p134 = por %p132, %p133
      %p135 = scmp.ne.s32.totalorder %s124, %s125
      %p136 = scmp.eq.s32.totalorder %s22, 0
      %p137 = por %p135, %p136
      %p138 = scmp.ne.s32.totalorder %s124, %s125
      %p139 = scmp.eq.s32.totalorder %s23, 1
      %p140 = por %p138, %p139
      %p142 = scmp.ne.s32.totalorder %s125, %s141
      %p143 = scmp.eq.s32.totalorder %s23, 0
      %p144 = por %p142, %p143
      %s146 = sadd.s32 %s145, 1
      %p149 = scmp.eq.s32.totalorder %s17, 1
      %p150 = scmp.ne.s32.totalorder %s145, %s147
      %p151 = scmp.eq.s32.totalorder %s17, 0
      %p152 = por %p150, %p151
      %p153 = scmp.ne.s32.totalorder %s145, %s147
      %p154 = scmp.eq.s32.totalorder %s22, 1
      %p155 = por %p153, %p154
      %p156 = scmp.ne.s32.totalorder %s147, %s148
      %p157 = scmp.eq.s32.totalorder %s22, 0
      %p158 = por %p156, %p157
      %p159 = scmp.ne.s32.totalorder %s147, %s148
      %p160 = scmp.eq.s32.totalorder %s23, 1
      %p161 = por %p159, %p160
      %p163 = scmp.ne.s32.totalorder %s148, %s162
      %p164 = scmp.eq.s32.totalorder %s23, 0
      %p165 = por %p163, %p164
      %s167 = sadd.s32 %s166, 1
      %p170 = scmp.eq.s32.totalorder %s17, 1
      %p171 = scmp.ne.s32.totalorder %s166, %s168
      %p172 = scmp.eq.s32.totalorder %s17, 0
      %p173 = por %p171, %p172
      %p174 = scmp.ne.s32.totalorder %s166, %s168
      %p175 = scmp.eq.s32.totalorder %s22, 1
      %p176 = por %p174, %p175
      %p177 = scmp.ne.s32.totalorder %s168, %s169
      %p178 = scmp.eq.s32.totalorder %s22, 0
      %p179 = por %p177, %p178
      %p180 = scmp.ne.s32.totalorder %s168, %s169
      %p181 = scmp.eq.s32.totalorder %s23, 1
      %p182 = por %p180, %p181
      %p184 = scmp.ne.s32.totalorder %s169, %s183
      %p185 = scmp.eq.s32.totalorder %s23, 0
      %p186 = por %p184, %p185
      %s187 = ssub.s32 %s17, %s24
      %p188 = scmp.eq.s32.totalorder %s187, 0
      %s190 = sadd.s32 %s189, 1
      %s191 = scalar_select %p188, %s189, %s190
      %p194 = pneg %p188
      %p195 = scmp.eq.s32.totalorder %s17, 1
      %p196 = por %p194, %p195
      %p197 = scmp.ne.s32.totalorder %s189, %s192
      %p198 = scmp.eq.s32.totalorder %s17, 0
      %p199 = por %p197, %p198
      %p200 = scmp.ne.s32.totalorder %s189, %s192
      %p201 = scmp.eq.s32.totalorder %s22, 1
      %p202 = por %p200, %p201
      %p203 = scmp.ne.s32.totalorder %s192, %s193
      %p204 = scmp.eq.s32.totalorder %s22, 0
      %p205 = por %p203, %p204
      %p206 = scmp.ne.s32.totalorder %s192, %s193
      %p207 = scmp.eq.s32.totalorder %s23, 1
      %p208 = por %p206, %p207
      %p210 = scmp.ne.s32.totalorder %s193, %s209
      %p211 = scmp.eq.s32.totalorder %s23, 0
      %p212 = por %p210, %p211
      %p213 = scmp.le.s32.totalorder 1, %s17
      %p214 = scmp.lt.s32.totalorder %s17, 3
      %p215 = pnand %p213, %p214
      %p216 = pneg %p215
      // Predicated region
      $region9: #{midibert_back_forward.9} parent=5 // pred_check
        _
      $region10: #{midibert_back_forward.9} parent=5 // pred_check_branch
        %218 = sbr.rel (%p215) target = $region12
      $region11: #{midibert_back_forward.9} parent=5 // pred_region
        %s219 = ssub.s32 %s17, 1
        // Predicated region
        $region13: #{midibert_back_forward.9} parent=11 // pred_check
          %p220 = pneg %p90
        $region14: #{midibert_back_forward.9} parent=11 // pred_check_branch
          %222 = sbr.rel (%p220) target = $region16
        $region15: #{midibert_back_forward.9} parent=11 // pred_region
          %224 = vsyncadd [#allocation3], 0
          %s225 = sshll.u32 %s2, 4
          %s226 = int_to_ptr.hbm [resolvable:$true] %s225
          %s227 = sshll.u32 [#allocation2], 4
          %s228 = int_to_ptr.vmem [resolvable:$true] %s227
          %233 = dma.hbm_to_vmem [thread:$0]  %s226, 4096, %s228, [#allocation3], 128, 128, 8
        $region16: #{midibert_back_forward.9} parent=11 // pred_fallthru
          _
        // Predicated region
        $region17: #{midibert_back_forward.9} parent=11 // pred_check
          %p234 = pneg %p111
        $region18: #{midibert_back_forward.9} parent=11 // pred_check_branch
          %236 = sbr.rel (%p234) target = $region20
        $region19: #{midibert_back_forward.9} parent=11 // pred_region
          _
        $region20: #{midibert_back_forward.9} parent=11 // pred_fallthru
          _
        // Predicated region
        $region21: #{midibert_back_forward.9} parent=11 // pred_check
          %p237 = pneg %p158
        $region22: #{midibert_back_forward.9} parent=11 // pred_check_branch
          %239 = sbr.rel (%p237) target = $region24
        $region23: #{midibert_back_forward.9} parent=11 // pred_region
          _
        $region24: #{midibert_back_forward.9} parent=11 // pred_fallthru
          _
        // Predicated region
        $region25: #{midibert_back_forward.9} parent=11 // pred_check
          %p240 = pneg %p179
        $region26: #{midibert_back_forward.9} parent=11 // pred_check_branch
          %242 = sbr.rel (%p240) target = $region28
        $region27: #{midibert_back_forward.9} parent=11 // pred_region
          _
        $region28: #{midibert_back_forward.9} parent=11 // pred_fallthru
          _
      $region12: #{midibert_back_forward.9} parent=5 // pred_fallthru
        _
      %p243 = scmp.lt.s32.totalorder %s17, 2
      // Predicated region
      $region29: #{midibert_back_forward.9} parent=5 // pred_check
        %p244 = pneg %p243
      $region30: #{midibert_back_forward.9} parent=5 // pred_check_branch
        %246 = sbr.rel (%p244) target = $region32
      $region31: #{midibert_back_forward.9} parent=5 // pred_region
        // Predicated region
        $region33: #{midibert_back_forward.9} parent=31 // pred_check
          %p247 = pneg %p37
        $region34: #{midibert_back_forward.9} parent=31 // pred_check_branch
          %249 = sbr.rel (%p247) target = $region36
        $region35: #{midibert_back_forward.9} parent=31 // pred_region
          %p250 = scmp.lt.s32.totalorder %s17, 1
          %s251 = scalar_select %p250, %s17, 1
          %s252 = smul.addr %s251, 6
          %s253 = smul.addr %s252, 4
          %s254 = scalar_lea.vmem %s0, %s253
        $region36: #{midibert_back_forward.9} parent=31 // pred_fallthru
          _
        // Predicated region
        $region37: #{midibert_back_forward.9} parent=31 // pred_check
          %p255 = pneg %p63
        $region38: #{midibert_back_forward.9} parent=31 // pred_check_branch
          %257 = sbr.rel (%p255) target = $region40
        $region39: #{midibert_back_forward.9} parent=31 // pred_region
          %p258 = scmp.lt.s32.totalorder %s17, 1
          %s259 = scalar_select %p258, %s17, 1
          %s260 = scalar_lea.vmem %s1, %s259
        $region40: #{midibert_back_forward.9} parent=31 // pred_fallthru
          _
        // Predicated region
        $region41: #{midibert_back_forward.9} parent=31 // pred_check
          %p261 = pneg %p131
        $region42: #{midibert_back_forward.9} parent=31 // pred_check_branch
          %263 = sbr.rel (%p261) target = $region44
        $region43: #{midibert_back_forward.9} parent=31 // pred_region
          %s264 = sand.u32 %s121, 1
          %s265 = scalar_lea.sflag [#allocation5], %s264
          %s266 = sand.u32 %s121, 1
          %s267 = smul.addr %s266, 16
          %s268 = scalar_lea.vmem [#allocation4], %s267
          %270 = vsyncadd %s265, 0
          %s271 = smul.addr %s17, 2
          %s272 = smul.addr %s271, 8
          %s273 = scalar_lea.hbm %s4, %s272
          %s275 = sshll.u32 %s273, 4
          %s276 = int_to_ptr.hbm [resolvable:$true] %s275
          %s277 = sshll.u32 %s268, 4
          %s278 = int_to_ptr.vmem [resolvable:$true] %s277
          %280 = dma.hbm_to_vmem [thread:$0]  %s276, 256, %s278, %s265
        $region44: #{midibert_back_forward.9} parent=31 // pred_fallthru
          _
      $region32: #{midibert_back_forward.9} parent=5 // pred_fallthru
        _
      %p281 = scmp.le.s32.totalorder 1, %s17
      %p282 = scmp.lt.s32.totalorder %s17, 3
      %p283 = pnand %p281, %p282
      %p284 = pneg %p283
      // Predicated region
      $region45: #{midibert_back_forward.9} parent=5 // pred_check
        _
      $region46: #{midibert_back_forward.9} parent=5 // pred_check_branch
        %286 = sbr.rel (%p283) target = $region48
      $region47: #{midibert_back_forward.9} parent=5 // pred_region
        %s287 = ssub.s32 %s17, 1
        // Predicated region
        $region49: #{midibert_back_forward.9} parent=47 // pred_check
          %p288 = pneg %p90
        $region50: #{midibert_back_forward.9} parent=47 // pred_check_branch
          %290 = sbr.rel (%p288) target = $region52
        $region51: #{midibert_back_forward.9} parent=47 // pred_region
          %292 = dma.done [#allocation3], 4096
        $region52: #{midibert_back_forward.9} parent=47 // pred_fallthru
          _
        %s293 = sand.u32 %s124, 1
        %s294 = scalar_lea.sflag [#allocation5], %s293
        %s295 = sand.u32 %s124, 1
        %s296 = smul.addr %s295, 16
        %s297 = scalar_lea.vmem [#allocation4], %s296
        // Predicated region
        $region53: #{midibert_back_forward.9} parent=47 // pred_check
          %p298 = pneg %p137
        $region54: #{midibert_back_forward.9} parent=47 // pred_check_branch
          %300 = sbr.rel (%p298) target = $region56
        $region55: #{midibert_back_forward.9} parent=47 // pred_region
          %302 = dma.done %s294, 256
        $region56: #{midibert_back_forward.9} parent=47 // pred_fallthru
          _
        %p303 = scmp.lt.s32.totalorder %s22, 1
        %s304 = scalar_select %p303, %s22, 1
        %s305 = smul.addr %s304, 6
        %s306 = smul.addr %s305, 4
        %s307 = scalar_lea.vmem %s0, %s306
        %p308 = pneg %p43
        %p309 = pneg %p40
        %p310 = scmp.lt.s32.totalorder %s22, 1
        %s311 = scalar_select %p310, %s22, 1
        %s312 = scalar_lea.vmem %s1, %s311
        %p313 = pneg %p69
        %p314 = pneg %p66
        %p315 = pneg %p90
        %p316 = pneg %p87
        %p317 = pneg %p111
        %p318 = pneg %p108
        %s319 = sand.u32 %s124, 1
        %s320 = scalar_lea.sflag [#allocation5], %s319
        %s321 = sand.u32 %s124, 1
        %s322 = smul.addr %s321, 16
        %s323 = scalar_lea.vmem [#allocation4], %s322
        %p324 = pneg %p137
        %p325 = pneg %p134
        %p326 = pneg %p158
        %p327 = pneg %p155
        %p328 = pneg %p179
        %p329 = pneg %p176
        %p330 = pneg %p205
        %p331 = pneg %p202
        %p332 = scmp.lt.s32.totalorder %s22, 1
        %s333 = scalar_select %p332, %s22, 1
        %s334 = smul.addr %s333, 2
        %s335 = smul.addr %s334, 8
        %s336 = scalar_lea.vmem %s7, %s335
        %p337 = scmp.lt.s32.totalorder %s22, 1
        %s338 = scalar_select %p337, %s22, 1
        %s339 = smul.addr %s338, 6
        %s340 = smul.addr %s339, 4
        %s341 = scalar_lea.vmem %s0, %s340
        %p342 = scmp.lt.s32.totalorder %s22, 1
        %s343 = scalar_select %p342, %s22, 1
        %s344 = scalar_lea.vmem %s1, %s343
        %p345 = scmp.lt.s32.totalorder %s22, 1
        %s346 = scalar_select %p345, %s22, 1
        %s347 = smul.addr %s346, 2
        %s348 = smul.addr %s347, 8
        %s349 = scalar_lea.vmem %s7, %s348
        %v351 = vld [vmem:[%s341] sm:$0xff]
        %v352 = vld [vmem:[%s341 + $0x8] sm:$0xff]
        %v353 = vld [vmem:[%s341 + $0x10] sm:$0xff]
        %v354 = vld [vmem:[%s344] sm:$0x1]
        %v355 = vunpack.c.l.bf16 %v351
        %v356 = vmul.f32 %v355, 0.088388346
        %v357 = vunpack.c.l.bf16 %v352
        %v359 = vperm.slane %v354, 0
        %361 = vmatpush.xpose.msra.mxu0 0.0
        %362 = vmatpush.xpose.msra.mxu0 0.0
        %363 = vmatpush.xpose.msra.mxu0 0.0
        %364 = vmatpush.xpose.msra.mxu0 0.0
        %365 = vmatpush.xpose.msra.mxu0 0.0
        %366 = vmatpush.xpose.msra.mxu0 0.0
        %367 = vmatpush.xpose.msra.mxu0 0.0
        %368 = vmatpush.xpose.msra.mxu0 0.0
        %369 = vmatpush.xpose.msra.mxu0 0.0
        %370 = vmatpush.xpose.msra.mxu0 0.0
        %371 = vmatpush.xpose.msra.mxu0 0.0
        %372 = vmatpush.xpose.msra.mxu0 0.0
        %373 = vmatpush.xpose.msra.mxu0 0.0
        %374 = vmatpush.xpose.msra.mxu0 0.0
        %375 = vmatpush.xpose.msra.mxu0 0.0
        %376 = vmatpush.xpose.msra.mxu0 %v357
        %377 = vmatmul.f32.gmra.mxu0 %v356
        %v378 = vpop.f32.mrf.mxu0
        %v379 = vadd.f32 %v359, %v378
        %380 = vdwg.mxu0
        %vm381 = vcmask 64512
        %v382 = vsel %vm381, %v379, -inf
        %383 = vmax.xlane.f32.xlu0 %v382
        %v384 = vpop.xlane.xlu0 %383
        %v385 = vsub.f32 %v379, %v384
        %v386 = vmul.f32 %v385, 1.442695
        %v387 = vpow.pop %v386
        %v388 = vsel %vm381, %v387, 0.0
        %389 = vadd.xlane.f32.xlu0 %v388
        %v390 = vpop.xlane.xlu0 %389
        %v391 = vrcp.pop %v390
        %v392 = vmul.f32 %v387, %v391
        %v393 = vpack.c.bf16 %v392, %v392
        %v395 = vsel %vm381, %v393, 0
        %vm397 = vcmask 1043456
        %v399 = vsel %vm397, %v353, 0
        %401 = vmatpush.bf16.msra.mxu0 0
        %402 = vmatpush.bf16.msra.mxu0 0
        %403 = vmatpush.bf16.msra.mxu0 0
        %404 = vmatpush.bf16.msra.mxu0 0
        %405 = vmatpush.bf16.msra.mxu0 0
        %406 = vmatpush.bf16.msra.mxu0 0
        %407 = vmatpush.bf16.msra.mxu0 0
        %408 = vmatpush.bf16.msra.mxu0 %v399
        %409 = vmatmul.bf16.gmra.mxu0 %v395
        %v410 = vpop.f32.mrf.mxu0
        %v411 = vadd.f32 0.0, %v410
        %v412 = vpop.f32.mrf.mxu0
        %413 = vdwg.mxu0
        %v414 = vpack.c.bf16 %v411, %v411
        %v415 = vld [vmem:[#allocation2] sm:$0xff]
        %v416 = vld [vmem:[#allocation2 + $0x8] sm:$0xff]
        %v417 = vld [vmem:[#allocation2 + $0x10] sm:$0xff]
        %v418 = vld [vmem:[#allocation2 + $0x18] sm:$0xff]
        %v419 = vld [vmem:[#allocation2 + $0x20] sm:$0xff]
        %v420 = vld [vmem:[#allocation2 + $0x28] sm:$0xff]
        %v421 = vld [vmem:[#allocation2 + $0x30] sm:$0xff]
        %v422 = vld [vmem:[#allocation2 + $0x38] sm:$0xff]
        %v423 = vld [vmem:[#allocation2 + $0x40] sm:$0xff]
        %v424 = vld [vmem:[#allocation2 + $0x48] sm:$0xff]
        %v425 = vld [vmem:[#allocation2 + $0x50] sm:$0xff]
        %v426 = vld [vmem:[#allocation2 + $0x58] sm:$0xff]
        %v427 = vld [vmem:[#allocation2 + $0x60] sm:$0xff]
        %v428 = vld [vmem:[#allocation2 + $0x68] sm:$0xff]
        %v429 = vld [vmem:[#allocation2 + $0x70] sm:$0xff]
        %v430 = vld [vmem:[#allocation2 + $0x78] sm:$0xff]
        %v432 = vrot.slane %v351, 4
        %v434 = vunpack.c.l.bf16 %v432
        %v435 = vmul.f32 %v434, 0.088388346
        %v437 = vrot.slane %v352, 4
        %v439 = vunpack.c.l.bf16 %v437
        %440 = vmatpush.xpose.msra.mxu0 0.0
        %441 = vmatpush.xpose.msra.mxu0 0.0
        %442 = vmatpush.xpose.msra.mxu0 0.0
        %443 = vmatpush.xpose.msra.mxu0 0.0
        %444 = vmatpush.xpose.msra.mxu0 0.0
        %445 = vmatpush.xpose.msra.mxu0 0.0
        %446 = vmatpush.xpose.msra.mxu0 0.0
        %447 = vmatpush.xpose.msra.mxu0 0.0
        %448 = vmatpush.xpose.msra.mxu0 0.0
        %449 = vmatpush.xpose.msra.mxu0 0.0
        %450 = vmatpush.xpose.msra.mxu0 0.0
        %451 = vmatpush.xpose.msra.mxu0 0.0
        %452 = vmatpush.xpose.msra.mxu0 0.0
        %453 = vmatpush.xpose.msra.mxu0 0.0
        %454 = vmatpush.xpose.msra.mxu0 0.0
        %455 = vmatpush.xpose.msra.mxu0 %v439
        %456 = vmatmul.f32.gmra.mxu0 %v435
        %v457 = vpop.f32.mrf.mxu0
        %v458 = vadd.f32 %v359, %v457
        %459 = vdwg.mxu0
        %v460 = vsel %vm381, %v458, -inf
        %461 = vmax.xlane.f32.xlu0 %v460
        %v462 = vpop.xlane.xlu0 %461
        %v463 = vsub.f32 %v458, %v462
        %v464 = vmul.f32 %v463, 1.442695
        %v465 = vpow.pop %v464
        %v466 = vsel %vm381, %v465, 0.0
        %467 = vadd.xlane.f32.xlu0 %v466
        %v468 = vpop.xlane.xlu0 %467
        %v469 = vrcp.pop %v468
        %v470 = vmul.f32 %v465, %v469
        %v471 = vpack.c.bf16 %v470, %v470
        %v473 = vunpack.c.h.b16 %v353
        %v474 = vpack.c.b16 %v473, %v473
        %v476 = vsel %vm381, %v471, 0
        %v479 = vsel %vm397, %v474, 0
        %481 = vmatpush.bf16.msra.mxu0 0
        %482 = vmatpush.bf16.msra.mxu0 0
        %483 = vmatpush.bf16.msra.mxu0 0
        %484 = vmatpush.bf16.msra.mxu0 0
        %485 = vmatpush.bf16.msra.mxu0 0
        %486 = vmatpush.bf16.msra.mxu0 0
        %487 = vmatpush.bf16.msra.mxu0 0
        %488 = vmatpush.bf16.msra.mxu0 %v479
        %489 = vmatmul.bf16.gmra.mxu0 %v476
        %v490 = vpop.f32.mrf.mxu0
        %v491 = vadd.f32 0.0, %v490
        %v492 = vpop.f32.mrf.mxu0
        %493 = vdwg.mxu0
        %v494 = vpack.c.bf16 %v491, %v491
        %s495 = scalar_lea.vmem [#allocation2], 128
        %v496 = vld [vmem:[%s495] sm:$0xff]
        %v497 = vld [vmem:[%s495 + $0x8] sm:$0xff]
        %v498 = vld [vmem:[%s495 + $0x10] sm:$0xff]
        %v499 = vld [vmem:[%s495 + $0x18] sm:$0xff]
        %v500 = vld [vmem:[%s495 + $0x20] sm:$0xff]
        %v501 = vld [vmem:[%s495 + $0x28] sm:$0xff]
        %v502 = vld [vmem:[%s495 + $0x30] sm:$0xff]
        %v503 = vld [vmem:[%s495 + $0x38] sm:$0xff]
        %v504 = vld [vmem:[%s495 + $0x40] sm:$0xff]
        %v505 = vld [vmem:[%s495 + $0x48] sm:$0xff]
        %v506 = vld [vmem:[%s495 + $0x50] sm:$0xff]
        %v507 = vld [vmem:[%s495 + $0x58] sm:$0xff]
        %v508 = vld [vmem:[%s495 + $0x60] sm:$0xff]
        %v509 = vld [vmem:[%s495 + $0x68] sm:$0xff]
        %v510 = vld [vmem:[%s495 + $0x70] sm:$0xff]
        %v511 = vld [vmem:[%s495 + $0x78] sm:$0xff]
        %v528 = vunpack.c.l.b16 %v496
        %v529 = vunpack.c.h.b16 %v496
        %v530 = vunpack.c.l.b16 %v497
        %v531 = vunpack.c.h.b16 %v497
        %v532 = vunpack.c.l.b16 %v498
        %v533 = vunpack.c.h.b16 %v498
        %v534 = vunpack.c.l.b16 %v499
        %v535 = vunpack.c.h.b16 %v499
        %v536 = vunpack.c.l.b16 %v500
        %v537 = vunpack.c.h.b16 %v500
        %v538 = vunpack.c.l.b16 %v501
        %v539 = vunpack.c.h.b16 %v501
        %v540 = vunpack.c.l.b16 %v502
        %v541 = vunpack.c.h.b16 %v502
        %v542 = vunpack.c.l.b16 %v503
        %v543 = vunpack.c.h.b16 %v503
        %v544 = vunpack.c.l.b16 %v504
        %v545 = vunpack.c.h.b16 %v504
        %v546 = vunpack.c.l.b16 %v505
        %v547 = vunpack.c.h.b16 %v505
        %v548 = vunpack.c.l.b16 %v506
        %v549 = vunpack.c.h.b16 %v506
        %v550 = vunpack.c.l.b16 %v507
        %v551 = vunpack.c.h.b16 %v507
        %v552 = vunpack.c.l.b16 %v508
        %v553 = vunpack.c.h.b16 %v508
        %v554 = vunpack.c.l.b16 %v509
        %v555 = vunpack.c.h.b16 %v509
        %v556 = vunpack.c.l.b16 %v510
        %v557 = vunpack.c.h.b16 %v510
        %v558 = vunpack.c.l.b16 %v511
        %v559 = vunpack.c.h.b16 %v511
        %v560 = vpack.c.b16 %v530, %v528
        %v561 = vpack.c.b16 %v531, %v529
        %v562 = vpack.c.b16 %v534, %v532
        %v563 = vpack.c.b16 %v535, %v533
        %v564 = vpack.c.b16 %v538, %v536
        %v565 = vpack.c.b16 %v539, %v537
        %v566 = vpack.c.b16 %v542, %v540
        %v567 = vpack.c.b16 %v543, %v541
        %v568 = vpack.c.b16 %v546, %v544
        %v569 = vpack.c.b16 %v547, %v545
        %v570 = vpack.c.b16 %v550, %v548
        %v571 = vpack.c.b16 %v551, %v549
        %v572 = vpack.c.b16 %v554, %v552
        %v573 = vpack.c.b16 %v555, %v553
        %v574 = vpack.c.b16 %v558, %v556
        %v575 = vpack.c.b16 %v559, %v557
        %592 = vmatpush.bf16.msra.mxu0 %v574
        %593 = vmatpush.bf16.msra.mxu0 %v572
        %594 = vmatpush.bf16.msra.mxu0 %v570
        %595 = vmatpush.bf16.msra.mxu0 %v568
        %596 = vmatpush.bf16.msra.mxu0 %v566
        %597 = vmatpush.bf16.msra.mxu0 %v564
        %598 = vmatpush.bf16.msra.mxu0 %v562
        %599 = vmatpush.bf16.msra.mxu0 %v560
        %600 = vmatmul.bf16.gmra.mxu0 %v494
        %v601 = vpop.f32.mrf.mxu0
        %v602 = vadd.f32 0.0, %v601
        %v603 = vpop.f32.mrf.mxu0
        %604 = vdwg.mxu0
        %605 = vmatpush.bf16.msra.mxu0 %v575
        %606 = vmatpush.bf16.msra.mxu0 %v573
        %607 = vmatpush.bf16.msra.mxu0 %v571
        %608 = vmatpush.bf16.msra.mxu0 %v569
        %609 = vmatpush.bf16.msra.mxu0 %v567
        %610 = vmatpush.bf16.msra.mxu0 %v565
        %611 = vmatpush.bf16.msra.mxu0 %v563
        %612 = vmatpush.bf16.msra.mxu0 %v561
        %613 = vmatmul.bf16.gmra.mxu0 %v494
        %v614 = vpop.f32.mrf.mxu0
        %v615 = vadd.f32 0.0, %v614
        %v616 = vpop.f32.mrf.mxu0
        %617 = vdwg.mxu0
        %v634 = vunpack.c.l.b16 %v415
        %v635 = vunpack.c.h.b16 %v415
        %v636 = vunpack.c.l.b16 %v416
        %v637 = vunpack.c.h.b16 %v416
        %v638 = vunpack.c.l.b16 %v417
        %v639 = vunpack.c.h.b16 %v417
        %v640 = vunpack.c.l.b16 %v418
        %v641 = vunpack.c.h.b16 %v418
        %v642 = vunpack.c.l.b16 %v419
        %v643 = vunpack.c.h.b16 %v419
        %v644 = vunpack.c.l.b16 %v420
        %v645 = vunpack.c.h.b16 %v420
        %v646 = vunpack.c.l.b16 %v421
        %v647 = vunpack.c.h.b16 %v421
        %v648 = vunpack.c.l.b16 %v422
        %v649 = vunpack.c.h.b16 %v422
        %v650 = vunpack.c.l.b16 %v423
        %v651 = vunpack.c.h.b16 %v423
        %v652 = vunpack.c.l.b16 %v424
        %v653 = vunpack.c.h.b16 %v424
        %v654 = vunpack.c.l.b16 %v425
        %v655 = vunpack.c.h.b16 %v425
        %v656 = vunpack.c.l.b16 %v426
        %v657 = vunpack.c.h.b16 %v426
        %v658 = vunpack.c.l.b16 %v427
        %v659 = vunpack.c.h.b16 %v427
        %v660 = vunpack.c.l.b16 %v428
        %v661 = vunpack.c.h.b16 %v428
        %v662 = vunpack.c.l.b16 %v429
        %v663 = vunpack.c.h.b16 %v429
        %v664 = vunpack.c.l.b16 %v430
        %v665 = vunpack.c.h.b16 %v430
        %v666 = vpack.c.b16 %v636, %v634
        %v667 = vpack.c.b16 %v637, %v635
        %v668 = vpack.c.b16 %v640, %v638
        %v669 = vpack.c.b16 %v641, %v639
        %v670 = vpack.c.b16 %v644, %v642
        %v671 = vpack.c.b16 %v645, %v643
        %v672 = vpack.c.b16 %v648, %v646
        %v673 = vpack.c.b16 %v649, %v647
        %v674 = vpack.c.b16 %v652, %v650
        %v675 = vpack.c.b16 %v653, %v651
        %v676 = vpack.c.b16 %v656, %v654
        %v677 = vpack.c.b16 %v657, %v655
        %v678 = vpack.c.b16 %v660, %v658
        %v679 = vpack.c.b16 %v661, %v659
        %v680 = vpack.c.b16 %v664, %v662
        %v681 = vpack.c.b16 %v665, %v663
        %698 = vmatpush.bf16.msra.mxu0 %v680
        %699 = vmatpush.bf16.msra.mxu0 %v678
        %700 = vmatpush.bf16.msra.mxu0 %v676
        %701 = vmatpush.bf16.msra.mxu0 %v674
        %702 = vmatpush.bf16.msra.mxu0 %v672
        %703 = vmatpush.bf16.msra.mxu0 %v670
        %704 = vmatpush.bf16.msra.mxu0 %v668
        %705 = vmatpush.bf16.msra.mxu0 %v666
        %706 = vmatmul.bf16.gmra.mxu0 %v414
        %v707 = vpop.f32.mrf.mxu0
        %v708 = vadd.f32 %v602, %v707
        %v709 = vpop.f32.mrf.mxu0
        %710 = vdwg.mxu0
        %711 = vmatpush.bf16.msra.mxu0 %v681
        %712 = vmatpush.bf16.msra.mxu0 %v679
        %713 = vmatpush.bf16.msra.mxu0 %v677
        %714 = vmatpush.bf16.msra.mxu0 %v675
        %715 = vmatpush.bf16.msra.mxu0 %v673
        %716 = vmatpush.bf16.msra.mxu0 %v671
        %717 = vmatpush.bf16.msra.mxu0 %v669
        %718 = vmatpush.bf16.msra.mxu0 %v667
        %719 = vmatmul.bf16.gmra.mxu0 %v414
        %v720 = vpop.f32.mrf.mxu0
        %v721 = vadd.f32 %v615, %v720
        %v722 = vpop.f32.mrf.mxu0
        %723 = vdwg.mxu0
        %v724 = vld [vmem:[%s3] sm:$0x3]
        %v726 = vperm.slane %v724, 0
        %v727 = vperm.slane %v724, 1
        %v730 = vadd.f32 %v708, %v726
        %v731 = vadd.f32 %v721, %v727
        %v732 = vld [vmem:[%s297] sm:$0xff]
        %v733 = vld [vmem:[%s297 + $0x8] sm:$0xff]
        %v734 = vadd.f32 %v730, %v732
        %v735 = vadd.f32 %v731, %v733
        %v736 = vld [vmem:[%s5] sm:$0x3]
        %v737 = vld [vmem:[%s6] sm:$0x3]
        %v738 = vadd.f32 %v734, %v735
        %739 = vadd.xlane.f32.xlu0 %v738
        %v740 = vpop.xlane.xlu0 %739
        %v741 = vrcp.pop 256.0
        %v742 = vmul.f32 256.0, %v741
        %v743 = vsub.f32 1.0, %v742
        %v744 = vmul.f32 %v741, %v743
        %v745 = vadd.f32 %v741, %v744
        %vm746 = vweird.f32 %v741
        %v747 = vsel %vm746, %v741, %v745
        %v748 = vmul.f32 %v740, %v747
        %v749 = vsub.f32 %v734, %v748
        %v750 = vsub.f32 %v735, %v748
        %v751 = vmul.f32 %v749, %v749
        %v752 = vmul.f32 %v750, %v750
        %v753 = vadd.f32 %v751, %v752
        %754 = vadd.xlane.f32.xlu0 %v753
        %v755 = vpop.xlane.xlu0 %754
        %v756 = vmul.f32 %v755, %v747
        %v757 = vadd.f32 %v756, 1e-12
        %v758 = vrsqrt.pop %v757
        %v759 = vmul.f32 %v758, %v757
        %v760 = vmul.f32 %v759, %v758
        %v761 = vmul.f32 0.5, %v760
        %v762 = vsub.f32 1.5, %v761
        %v763 = vmul.f32 %v758, %v762
        %vm764 = vweird.f32 %v757
        %vm765 = vweird.f32 %v758
        %vm766 = vmor %vm764, %vm765
        %v767 = vsel %vm766, %v758, %v763
        %v768 = vmul.f32 %v749, %v767
        %v769 = vmul.f32 %v750, %v767
        %v771 = vperm.slane %v736, 0
        %v772 = vperm.slane %v736, 1
        %v775 = vmul.f32 %v768, %v771
        %v776 = vmul.f32 %v769, %v772
        %v778 = vperm.slane %v737, 0
        %v779 = vperm.slane %v737, 1
        %v782 = vadd.f32 %v775, %v778
        %v783 = vadd.f32 %v776, %v779
        %784 = vst [vmem:[%s349] sm:$0xff] %v782
        %785 = vst [vmem:[%s349 + $0x8] sm:$0xff] %v783
        %p786 = scmp.lt.s32.totalorder %s22, 1
        %s787 = scalar_select %p786, %s22, 1
        %s788 = smul.addr %s787, 2
        %s789 = smul.addr %s788, 8
        %s790 = scalar_lea.vmem %s7, %s789
        // Predicated region
        $region57: #{midibert_back_forward.9} parent=47 // pred_check
          %p791 = pneg %p202
        $region58: #{midibert_back_forward.9} parent=47 // pred_check_branch
          %793 = sbr.rel (%p791) target = $region60
        $region59: #{midibert_back_forward.9} parent=47 // pred_region
          _
        $region60: #{midibert_back_forward.9} parent=47 // pred_fallthru
          _
      $region48: #{midibert_back_forward.9} parent=5 // pred_fallthru
        _
      %p794 = scmp.le.s32.totalorder 2, %s17
      // Predicated region
      $region61: #{midibert_back_forward.9} parent=5 // pred_check
        %p795 = pneg %p794
      $region62: #{midibert_back_forward.9} parent=5 // pred_check_branch
        %797 = sbr.rel (%p795) target = $region64
      $region63: #{midibert_back_forward.9} parent=5 // pred_region
        %s798 = ssub.s32 %s17, 2
        // Predicated region
        $region65: #{midibert_back_forward.9} parent=63 // pred_check
          %p799 = pneg %p208
        $region66: #{midibert_back_forward.9} parent=63 // pred_check_branch
          %801 = sbr.rel (%p799) target = $region68
        $region67: #{midibert_back_forward.9} parent=63 // pred_region
          %p802 = scmp.lt.s32.totalorder %s23, 1
          %s803 = scalar_select %p802, %s23, 1
          %s804 = smul.addr %s803, 2
          %s805 = smul.addr %s804, 8
          %s806 = scalar_lea.vmem %s7, %s805
        $region68: #{midibert_back_forward.9} parent=63 // pred_fallthru
          _
      $region64: #{midibert_back_forward.9} parent=5 // pred_fallthru
        _
    $region6: #{midibert_back_forward.9} parent=1 // loop_footer
      %s21 = sadd.s32 1, %s17
    $region7: #{midibert_back_forward.9} parent=1 // loop_footer_branch
      %16 = sbr.rel target = $region3
    $region8: #{midibert_back_forward.9} parent=1 // loop_exit
      _
    %807 = vsyncpa [#allocation3], 1
    %s808 = scalar_lea.sflag [#allocation3], 1
    %809 = vsyncpa %s808, 1
    %810 = vsyncpa [#allocation5], 1
    %s811 = scalar_lea.sflag [#allocation5], 1
    %812 = vsyncpa %s811, 1

// kernel: midibert_back_forward.8
$region0: #{midibert_back_forward.8}
  #allocation0 [shape = 'u32[]', space=smem, size = 0x4, offset = 0x4, fixed_abs, tag = 'smem constant byte address 0x4 - core index']
  #allocation1 [shape = 'u32[72,128]{1,0:T(1,128)}', space=vmem, size = 0x9000, scoped, tag = 'internal scratch']
  %s0 = inlined_call_operand.hbm [shape: f32[16,256], index: 0, kind: input, shape index: {}]
  %s1 = inlined_call_operand.hbm [shape: bf16[256,768], index: 1, kind: input, shape index: {}]
  %s2 = inlined_call_operand.vmem [shape: f32[1,768], index: 2, kind: input, shape index: {}]
  %s3 = inlined_call_operand.vmem [shape: bf16[16,768], index: 3, kind: output, shape index: {}]
  %s4 = sld [smem:[#allocation0]]
  $region75: #{midibert_back_forward.8} parent=0
    _
  %s6 = ssub.s32 1, %s4
  %s7 = scalar_select 0, %s6, %s4
  $region1: #{midibert_back_forward.8} parent=0
    #allocation2 [shape = 'u8[16384]{0}', space=vmem, size = 0x4000, scoped, tag = 'input window, operand 0, single buffered']
    #allocation3 [shape = 's32[2]{0}', space=sflag, size = 0x8, scoped, tag = 'scoped memory for midibert_back_forward.8']
    #allocation4 [shape = 'u8[393216]{0}', space=vmem, size = 0x60000, scoped, tag = 'input window, operand 1']
    #allocation5 [shape = 's32[2]{0}', space=sflag, size = 0x8, scoped, tag = 'scoped memory for midibert_back_forward.8']
    #allocation6 [shape = 'u8[24576]{0}', space=vmem, size = 0x6000, scoped, tag = 'output window, operand 0']
    %8 = vsyncpa [#allocation3], 0
    %9 = vsyncpa [#allocation5], 0
    %s10 = scalar_lea.sflag [#allocation5], 1
    %11 = vsyncpa %s10, 0
    loop: start=0, step=1, limit=4
    $region2: #{midibert_back_forward.8} parent=1 // loop_pre_header
      _
    $region3: #{midibert_back_forward.8} parent=1 // loop_header
      %s13 = sphi 0, %s17
      %p14 = scmp.ge.s32.totalorder %s13, 4
      %s20 = sphi 0, %s32
      %s21 = sphi 0, %s28
      %s22 = sphi 0, %s20
      %s23 = sphi 0, %s21
      %s24 = sphi 0, %s22
      %s25 = sphi 0, %s23
      %s35 = sphi 0, %s37
      %s38 = sphi 0, %s35
      %s39 = sphi 0, %s38
      %s55 = sphi 0, %s39
      %s61 = sphi 0, %s63
      %s64 = sphi 0, %s61
      %s65 = sphi 0, %s64
      %s81 = sphi 0, %s65
      %s87 = sphi 0, %s89
      %s90 = sphi 0, %s87
      %s91 = sphi 0, %s90
      %s107 = sphi 0, %s91
      %s115 = sphi 0, %s117
      %s118 = sphi 0, %s115
      %s119 = sphi 0, %s118
      %s135 = sphi 0, %s119
    $region4: #{midibert_back_forward.8} parent=1 // loop_header_branch
      %16 = sbr.rel (%p14) target = $region8
    $region5: #{midibert_back_forward.8} parent=1 // loop_body
      %s18 = ssub.s32 %s13, 1
      %s19 = ssub.s32 %s13, 2
      %s26 = sadd.s32 1, %s21
      %p27 = scmp.ge.s32.totalorder %s26, 2
      %s28 = scalar_select %p27, 0, %s26
      %s29 = sadd.s32 1, %s20
      %s30 = scalar_select %p27, %s29, %s20
      %p31 = scmp.ge.s32.totalorder %s30, 1
      %s32 = scalar_select %p31, 0, %s30
      %s33 = ssub.s32 %s20, %s32
      %p34 = scmp.eq.s32.totalorder %s33, 0
      %s36 = sadd.s32 %s35, 1
      %s37 = scalar_select %p34, %s35, %s36
      %p40 = pneg %p34
      %p41 = scmp.eq.s32.totalorder %s13, 1
      %p42 = por %p40, %p41
      %p43 = scmp.ne.s32.totalorder %s35, %s38
      %p44 = scmp.eq.s32.totalorder %s13, 0
      %p45 = por %p43, %p44
      %p46 = scmp.ne.s32.totalorder %s35, %s38
      %p47 = scmp.eq.s32.totalorder %s18, 1
      %p48 = por %p46, %p47
      %p49 = scmp.ne.s32.totalorder %s38, %s39
      %p50 = scmp.eq.s32.totalorder %s18, 0
      %p51 = por %p49, %p50
      %p52 = scmp.ne.s32.totalorder %s38, %s39
      %p53 = scmp.eq.s32.totalorder %s19, 1
      %p54 = por %p52, %p53
      %p56 = scmp.ne.s32.totalorder %s39, %s55
      %p57 = scmp.eq.s32.totalorder %s19, 0
      %p58 = por %p56, %p57
      %s59 = ssub.s32 %s21, %s28
      %p60 = scmp.eq.s32.totalorder %s59, 0
      %s62 = sadd.s32 %s61, 1
      %s63 = scalar_select %p60, %s61, %s62
      %p66 = pneg %p60
      %p67 = scmp.eq.s32.totalorder %s13, 1
      %p68 = por %p66, %p67
      %p69 = scmp.ne.s32.totalorder %s61, %s64
      %p70 = scmp.eq.s32.totalorder %s13, 0
      %p71 = por %p69, %p70
      %p72 = scmp.ne.s32.totalorder %s61, %s64
      %p73 = scmp.eq.s32.totalorder %s18, 1
      %p74 = por %p72, %p73
      %p75 = scmp.ne.s32.totalorder %s64, %s65
      %p76 = scmp.eq.s32.totalorder %s18, 0
      %p77 = por %p75, %p76
      %p78 = scmp.ne.s32.totalorder %s64, %s65
      %p79 = scmp.eq.s32.totalorder %s19, 1
      %p80 = por %p78, %p79
      %p82 = scmp.ne.s32.totalorder %s65, %s81
      %p83 = scmp.eq.s32.totalorder %s19, 0
      %p84 = por %p82, %p83
      %s85 = ssub.s32 %s21, %s28
      %p86 = scmp.eq.s32.totalorder %s85, 0
      %s88 = sadd.s32 %s87, 1
      %s89 = scalar_select %p86, %s87, %s88
      %p92 = pneg %p86
      %p93 = scmp.eq.s32.totalorder %s13, 1
      %p94 = por %p92, %p93
      %p95 = scmp.ne.s32.totalorder %s87, %s90
      %p96 = scmp.eq.s32.totalorder %s13, 0
      %p97 = por %p95, %p96
      %p98 = scmp.ne.s32.totalorder %s87, %s90
      %p99 = scmp.eq.s32.totalorder %s18, 1
      %p100 = por %p98, %p99
      %p101 = scmp.ne.s32.totalorder %s90, %s91
      %p102 = scmp.eq.s32.totalorder %s18, 0
      %p103 = por %p101, %p102
      %p104 = scmp.ne.s32.totalorder %s90, %s91
      %p105 = scmp.eq.s32.totalorder %s19, 1
      %p106 = por %p104, %p105
      %p108 = scmp.ne.s32.totalorder %s91, %s107
      %p109 = scmp.eq.s32.totalorder %s19, 0
      %p110 = por %p108, %p109
      %s111 = ssub.s32 %s20, %s32
      %s112 = ssub.s32 %s21, %s28
      %s113 = sor.u32 %s111, %s112
      %p114 = scmp.eq.s32.totalorder %s113, 0
      %s116 = sadd.s32 %s115, 1
      %s117 = scalar_select %p114, %s115, %s116
      %p120 = pneg %p114
      %p121 = scmp.eq.s32.totalorder %s13, 1
      %p122 = por %p120, %p121
      %p123 = scmp.ne.s32.totalorder %s115, %s118
      %p124 = scmp.eq.s32.totalorder %s13, 0
      %p125 = por %p123, %p124
      %p126 = scmp.ne.s32.totalorder %s115, %s118
      %p127 = scmp.eq.s32.totalorder %s18, 1
      %p128 = por %p126, %p127
      %p129 = scmp.ne.s32.totalorder %s118, %s119
      %p130 = scmp.eq.s32.totalorder %s18, 0
      %p131 = por %p129, %p130
      %p132 = scmp.ne.s32.totalorder %s118, %s119
      %p133 = scmp.eq.s32.totalorder %s19, 1
      %p134 = por %p132, %p133
      %p136 = scmp.ne.s32.totalorder %s119, %s135
      %p137 = scmp.eq.s32.totalorder %s19, 0
      %p138 = por %p136, %p137
      %p139 = scmp.le.s32.totalorder 1, %s13
      %p140 = scmp.lt.s32.totalorder %s13, 3
      %p141 = pnand %p139, %p140
      %p142 = pneg %p141
      // Predicated region
      $region9: #{midibert_back_forward.8} parent=5 // pred_check
        _
      $region10: #{midibert_back_forward.8} parent=5 // pred_check_branch
        %144 = sbr.rel (%p141) target = $region12
      $region11: #{midibert_back_forward.8} parent=5 // pred_region
        %s145 = ssub.s32 %s13, 1
        // Predicated region
        $region13: #{midibert_back_forward.8} parent=11 // pred_check
          %p146 = pneg %p51
        $region14: #{midibert_back_forward.8} parent=11 // pred_check_branch
          %148 = sbr.rel (%p146) target = $region16
        $region15: #{midibert_back_forward.8} parent=11 // pred_region
          %s149 = smul.u32 2, %s22
          %151 = vsyncadd [#allocation3], 0
          %s152 = smul.addr %s149, 2
          %s153 = smul.addr %s152, 8
          %s154 = scalar_lea.hbm %s0, %s153
          %s155 = sshll.u32 %s154, 4
          %s156 = int_to_ptr.hbm [resolvable:$true] %s155
          %s157 = sshll.u32 [#allocation2], 4
          %s158 = int_to_ptr.vmem [resolvable:$true] %s157
          %163 = dma.hbm_to_vmem [thread:$0]  %s156, 512, %s158, [#allocation3], 256, 256, 16
        $region16: #{midibert_back_forward.8} parent=11 // pred_fallthru
          _
      $region12: #{midibert_back_forward.8} parent=5 // pred_fallthru
        _
      %p164 = scmp.lt.s32.totalorder %s13, 2
      // Predicated region
      $region17: #{midibert_back_forward.8} parent=5 // pred_check
        %p165 = pneg %p164
      $region18: #{midibert_back_forward.8} parent=5 // pred_check_branch
        %167 = sbr.rel (%p165) target = $region20
      $region19: #{midibert_back_forward.8} parent=5 // pred_region
        // Predicated region
        $region21: #{midibert_back_forward.8} parent=19 // pred_check
          %p168 = pneg %p71
        $region22: #{midibert_back_forward.8} parent=19 // pred_check_branch
          %170 = sbr.rel (%p168) target = $region24
        $region23: #{midibert_back_forward.8} parent=19 // pred_region
          %s171 = sand.u32 %s61, 1
          %s172 = scalar_lea.sflag [#allocation5], %s171
          %s173 = sand.u32 %s61, 1
          %s174 = smul.addr %s173, 384
          %s175 = scalar_lea.vmem [#allocation4], %s174
          %s176 = smul.u32 3, %s21
          %178 = vsyncadd %s172, 0
          %s179 = smul.addr %s176, 4
          %s180 = scalar_lea.hbm %s1, %s179
          %s181 = sshll.u32 %s180, 4
          %s182 = int_to_ptr.hbm [resolvable:$true] %s181
          %s183 = sshll.u32 %s175, 4
          %s184 = int_to_ptr.vmem [resolvable:$true] %s183
          %189 = dma.hbm_to_vmem [thread:$0]  %s182, 6144, %s184, %s172, 384, 192, 12
        $region24: #{midibert_back_forward.8} parent=19 // pred_fallthru
          _
        // Predicated region
        $region25: #{midibert_back_forward.8} parent=19 // pred_check
          %p190 = pneg %p97
        $region26: #{midibert_back_forward.8} parent=19 // pred_check_branch
          %192 = sbr.rel (%p190) target = $region28
        $region27: #{midibert_back_forward.8} parent=19 // pred_region
          %s193 = smul.u32 3, %s21
          %p194 = scmp.lt.s32.totalorder %s193, 5
          %s195 = scalar_select %p194, %s193, 5
          %s196 = scalar_lea.vmem %s2, %s195
          %s197 = smul.u32 3, %s21
        $region28: #{midibert_back_forward.8} parent=19 // pred_fallthru
          _
      $region20: #{midibert_back_forward.8} parent=5 // pred_fallthru
        _
      %p198 = scmp.le.s32.totalorder 1, %s13
      %p199 = scmp.lt.s32.totalorder %s13, 3
      %p200 = pnand %p198, %p199
      %p201 = pneg %p200
      // Predicated region
      $region29: #{midibert_back_forward.8} parent=5 // pred_check
        _
      $region30: #{midibert_back_forward.8} parent=5 // pred_check_branch
        %203 = sbr.rel (%p200) target = $region32
      $region31: #{midibert_back_forward.8} parent=5 // pred_region
        %s204 = ssub.s32 %s13, 1
        // Predicated region
        $region33: #{midibert_back_forward.8} parent=31 // pred_check
          %p205 = pneg %p51
        $region34: #{midibert_back_forward.8} parent=31 // pred_check_branch
          %207 = sbr.rel (%p205) target = $region36
        $region35: #{midibert_back_forward.8} parent=31 // pred_region
          %209 = dma.done [#allocation3], 512
        $region36: #{midibert_back_forward.8} parent=31 // pred_fallthru
          _
        %s210 = sand.u32 %s64, 1
        %s211 = scalar_lea.sflag [#allocation5], %s210
        %s212 = sand.u32 %s64, 1
        %s213 = smul.addr %s212, 384
        %s214 = scalar_lea.vmem [#allocation4], %s213
        // Predicated region
        $region37: #{midibert_back_forward.8} parent=31 // pred_check
          %p215 = pneg %p77
        $region38: #{midibert_back_forward.8} parent=31 // pred_check_branch
          %217 = sbr.rel (%p215) target = $region40
        $region39: #{midibert_back_forward.8} parent=31 // pred_region
          %219 = dma.done %s211, 6144
        $region40: #{midibert_back_forward.8} parent=31 // pred_fallthru
          _
        %p220 = pneg %p51
        %p221 = pneg %p48
        %s222 = sand.u32 %s64, 1
        %s223 = scalar_lea.sflag [#allocation5], %s222
        %s224 = sand.u32 %s64, 1
        %s225 = smul.addr %s224, 384
        %s226 = scalar_lea.vmem [#allocation4], %s225
        %p227 = pneg %p77
        %p228 = pneg %p74
        %s229 = smul.u32 3, %s23
        %p230 = scmp.lt.s32.totalorder %s229, 5
        %s231 = scalar_select %p230, %s229, 5
        %s232 = scalar_lea.vmem %s2, %s231
        %p233 = pneg %p103
        %p234 = pneg %p100
        %p235 = pneg %p131
        %p236 = pneg %p128
        %s237 = sand.u32 %s118, 1
        %s238 = sand.u32 %s118, 1
        %s239 = smul.addr %s238, 24
        %s240 = scalar_lea.vmem [#allocation6], %s239
        %s241 = smul.u32 2, %s22
        %s242 = smul.u32 3, %s23
        %s243 = smul.u32 3, %s23
        %p244 = scmp.lt.s32.totalorder %s243, 5
        %s245 = scalar_select %p244, %s243, 5
        %s246 = scalar_lea.vmem %s2, %s245
        %s247 = smul.u32 3, %s23
        %s248 = smul.u32 2, %s22
        %s249 = smul.u32 3, %s23
        %v250 = vld [vmem:[#allocation2] sm:$0xff]
        %v251 = vld [vmem:[#allocation2 + $0x8] sm:$0xff]
        %v252 = vld [vmem:[#allocation2 + $0x10] sm:$0xff]
        %v253 = vld [vmem:[#allocation2 + $0x18] sm:$0xff]
        %v254 = vpack.c.bf16 %v252, %v250
        %v255 = vpack.c.bf16 %v253, %v251
        %v256 = vld [vmem:[%s214] sm:$0xff]
        %v257 = vld [vmem:[%s214 + $0x8] sm:$0xf]
        %v258 = vld [vmem:[%s214 + $0xc] sm:$0xff]
        %v259 = vld [vmem:[%s214 + $0x14] sm:$0xf]
        %v260 = vld [vmem:[%s214 + $0x18] sm:$0xff]
        %v261 = vld [vmem:[%s214 + $0x20] sm:$0xf]
        %v262 = vld [vmem:[%s214 + $0x24] sm:$0xff]
        %v263 = vld [vmem:[%s214 + $0x2c] sm:$0xf]
        %v264 = vld [vmem:[%s214 + $0x30] sm:$0xff]
        %v265 = vld [vmem:[%s214 + $0x38] sm:$0xf]
        %v266 = vld [vmem:[%s214 + $0x3c] sm:$0xff]
        %v267 = vld [vmem:[%s214 + $0x44] sm:$0xf]
        %v268 = vld [vmem:[%s214 + $0x48] sm:$0xff]
        %v269 = vld [vmem:[%s214 + $0x50] sm:$0xf]
        %v270 = vld [vmem:[%s214 + $0x54] sm:$0xff]
        %v271 = vld [vmem:[%s214 + $0x5c] sm:$0xf]
        %v272 = vld [vmem:[%s214 + $0x60] sm:$0xff]
        %v273 = vld [vmem:[%s214 + $0x68] sm:$0xf]
        %v274 = vld [vmem:[%s214 + $0x6c] sm:$0xff]
        %v275 = vld [vmem:[%s214 + $0x74] sm:$0xf]
        %v276 = vld [vmem:[%s214 + $0x78] sm:$0xff]
        %v277 = vld [vmem:[%s214 + $0x80] sm:$0xf]
        %v278 = vld [vmem:[%s214 + $0x84] sm:$0xff]
        %v279 = vld [vmem:[%s214 + $0x8c] sm:$0xf]
        %v280 = vld [vmem:[%s214 + $0x90] sm:$0xff]
        %v281 = vld [vmem:[%s214 + $0x98] sm:$0xf]
        %v282 = vld [vmem:[%s214 + $0x9c] sm:$0xff]
        %v283 = vld [vmem:[%s214 + $0xa4] sm:$0xf]
        %v284 = vld [vmem:[%s214 + $0xa8] sm:$0xff]
        %v285 = vld [vmem:[%s214 + $0xb0] sm:$0xf]
        %v286 = vld [vmem:[%s214 + $0xb4] sm:$0xff]
        %v287 = vld [vmem:[%s214 + $0xbc] sm:$0xf]
        %v288 = vld [vmem:[%s214 + $0xc0] sm:$0xff]
        %v289 = vld [vmem:[%s214 + $0xc8] sm:$0xf]
        %v290 = vld [vmem:[%s214 + $0xcc] sm:$0xff]
        %v291 = vld [vmem:[%s214 + $0xd4] sm:$0xf]
        %v292 = vld [vmem:[%s214 + $0xd8] sm:$0xff]
        %v293 = vld [vmem:[%s214 + $0xe0] sm:$0xf]
        %v294 = vld [vmem:[%s214 + $0xe4] sm:$0xff]
        %v295 = vld [vmem:[%s214 + $0xec] sm:$0xf]
        %v296 = vld [vmem:[%s214 + $0xf0] sm:$0xff]
        %v297 = vld [vmem:[%s214 + $0xf8] sm:$0xf]
        %v298 = vld [vmem:[%s214 + $0xfc] sm:$0xff]
        %v299 = vld [vmem:[%s214 + $0x104] sm:$0xf]
        %v300 = vld [vmem:[%s214 + $0x108] sm:$0xff]
        %v301 = vld [vmem:[%s214 + $0x110] sm:$0xf]
        %v302 = vld [vmem:[%s214 + $0x114] sm:$0xff]
        %v303 = vld [vmem:[%s214 + $0x11c] sm:$0xf]
        %v304 = vld [vmem:[%s214 + $0x120] sm:$0xff]
        %v305 = vld [vmem:[%s214 + $0x128] sm:$0xf]
        %v306 = vld [vmem:[%s214 + $0x12c] sm:$0xff]
        %v307 = vld [vmem:[%s214 + $0x134] sm:$0xf]
        %v308 = vld [vmem:[%s214 + $0x138] sm:$0xff]
        %v309 = vld [vmem:[%s214 + $0x140] sm:$0xf]
        %v310 = vld [vmem:[%s214 + $0x144] sm:$0xff]
        %v311 = vld [vmem:[%s214 + $0x14c] sm:$0xf]
        %v312 = vld [vmem:[%s214 + $0x150] sm:$0xff]
        %v313 = vld [vmem:[%s214 + $0x158] sm:$0xf]
        %v314 = vld [vmem:[%s214 + $0x15c] sm:$0xff]
        %v315 = vld [vmem:[%s214 + $0x164] sm:$0xf]
        %v316 = vld [vmem:[%s214 + $0x168] sm:$0xff]
        %v317 = vld [vmem:[%s214 + $0x170] sm:$0xf]
        %v318 = vld [vmem:[%s214 + $0x174] sm:$0xff]
        %v319 = vld [vmem:[%s214 + $0x17c] sm:$0xf]
        %v320 = vld [vmem:[%s246] sm:$0x7]
        %v322 = vperm.slane %v320, 0
        %v323 = vperm.slane %v320, 1
        %v324 = vperm.slane %v320, 2
        %v392 = vunpack.c.l.b16 %v256
        %v393 = vunpack.c.h.b16 %v256
        %v394 = vunpack.c.l.b16 %v257
        %v395 = vunpack.c.l.b16 %v258
        %v396 = vunpack.c.h.b16 %v258
        %v397 = vunpack.c.l.b16 %v259
        %v398 = vunpack.c.l.b16 %v260
        %v399 = vunpack.c.h.b16 %v260
        %v400 = vunpack.c.l.b16 %v261
        %v401 = vunpack.c.l.b16 %v262
        %v402 = vunpack.c.h.b16 %v262
        %v403 = vunpack.c.l.b16 %v263
        %v404 = vunpack.c.l.b16 %v264
        %v405 = vunpack.c.h.b16 %v264
        %v406 = vunpack.c.l.b16 %v265
        %v407 = vunpack.c.l.b16 %v266
        %v408 = vunpack.c.h.b16 %v266
        %v409 = vunpack.c.l.b16 %v267
        %v410 = vunpack.c.l.b16 %v268
        %v411 = vunpack.c.h.b16 %v268
        %v412 = vunpack.c.l.b16 %v269
        %v413 = vunpack.c.l.b16 %v270
        %v414 = vunpack.c.h.b16 %v270
        %v415 = vunpack.c.l.b16 %v271
        %v416 = vunpack.c.l.b16 %v272
        %v417 = vunpack.c.h.b16 %v272
        %v418 = vunpack.c.l.b16 %v273
        %v419 = vunpack.c.l.b16 %v274
        %v420 = vunpack.c.h.b16 %v274
        %v421 = vunpack.c.l.b16 %v275
        %v422 = vunpack.c.l.b16 %v276
        %v423 = vunpack.c.h.b16 %v276
        %v424 = vunpack.c.l.b16 %v277
        %v425 = vunpack.c.l.b16 %v278
        %v426 = vunpack.c.h.b16 %v278
        %v427 = vunpack.c.l.b16 %v279
        %v428 = vunpack.c.l.b16 %v280
        %v429 = vunpack.c.h.b16 %v280
        %v430 = vunpack.c.l.b16 %v281
        %v431 = vunpack.c.l.b16 %v282
        %v432 = vunpack.c.h.b16 %v282
        %v433 = vunpack.c.l.b16 %v283
        %v434 = vunpack.c.l.b16 %v284
        %v435 = vunpack.c.h.b16 %v284
        %v436 = vunpack.c.l.b16 %v285
        %v437 = vunpack.c.l.b16 %v286
        %v438 = vunpack.c.h.b16 %v286
        %v439 = vunpack.c.l.b16 %v287
        %v440 = vunpack.c.l.b16 %v288
        %v441 = vunpack.c.h.b16 %v288
        %v442 = vunpack.c.l.b16 %v289
        %v443 = vunpack.c.l.b16 %v290
        %v444 = vunpack.c.h.b16 %v290
        %v445 = vunpack.c.l.b16 %v291
        %v446 = vunpack.c.l.b16 %v292
        %v447 = vunpack.c.h.b16 %v292
        %v448 = vunpack.c.l.b16 %v293
        %v449 = vunpack.c.l.b16 %v294
        %v450 = vunpack.c.h.b16 %v294
        %v451 = vunpack.c.l.b16 %v295
        %v452 = vunpack.c.l.b16 %v296
        %v453 = vunpack.c.h.b16 %v296
        %v454 = vunpack.c.l.b16 %v297
        %v455 = vunpack.c.l.b16 %v298
        %v456 = vunpack.c.h.b16 %v298
        %v457 = vunpack.c.l.b16 %v299
        %v458 = vunpack.c.l.b16 %v300
        %v459 = vunpack.c.h.b16 %v300
        %v460 = vunpack.c.l.b16 %v301
        %v461 = vunpack.c.l.b16 %v302
        %v462 = vunpack.c.h.b16 %v302
        %v463 = vunpack.c.l.b16 %v303
        %v464 = vunpack.c.l.b16 %v304
        %v465 = vunpack.c.h.b16 %v304
        %v466 = vunpack.c.l.b16 %v305
        %v467 = vunpack.c.l.b16 %v306
        %v468 = vunpack.c.h.b16 %v306
        %v469 = vunpack.c.l.b16 %v307
        %v470 = vunpack.c.l.b16 %v308
        %v471 = vunpack.c.h.b16 %v308
        %v472 = vunpack.c.l.b16 %v309
        %v473 = vunpack.c.l.b16 %v310
        %v474 = vunpack.c.h.b16 %v310
        %v475 = vunpack.c.l.b16 %v311
        %v476 = vunpack.c.l.b16 %v312
        %v477 = vunpack.c.h.b16 %v312
        %v478 = vunpack.c.l.b16 %v313
        %v479 = vunpack.c.l.b16 %v314
        %v480 = vunpack.c.h.b16 %v314
        %v481 = vunpack.c.l.b16 %v315
        %v482 = vunpack.c.l.b16 %v316
        %v483 = vunpack.c.h.b16 %v316
        %v484 = vunpack.c.l.b16 %v317
        %v485 = vunpack.c.l.b16 %v318
        %v486 = vunpack.c.h.b16 %v318
        %v487 = vunpack.c.l.b16 %v319
        %v488 = vpack.c.b16 %v395, %v392
        %v489 = vpack.c.b16 %v396, %v393
        %v490 = vpack.c.b16 %v397, %v394
        %v491 = vpack.c.b16 %v401, %v398
        %v492 = vpack.c.b16 %v402, %v399
        %v493 = vpack.c.b16 %v403, %v400
        %v494 = vpack.c.b16 %v407, %v404
        %v495 = vpack.c.b16 %v408, %v405
        %v496 = vpack.c.b16 %v409, %v406
        %v497 = vpack.c.b16 %v413, %v410
        %v498 = vpack.c.b16 %v414, %v411
        %v499 = vpack.c.b16 %v415, %v412
        %v500 = vpack.c.b16 %v419, %v416
        %v501 = vpack.c.b16 %v420, %v417
        %v502 = vpack.c.b16 %v421, %v418
        %v503 = vpack.c.b16 %v425, %v422
        %v504 = vpack.c.b16 %v426, %v423
        %v505 = vpack.c.b16 %v427, %v424
        %v506 = vpack.c.b16 %v431, %v428
        %v507 = vpack.c.b16 %v432, %v429
        %v508 = vpack.c.b16 %v433, %v430
        %v509 = vpack.c.b16 %v437, %v434
        %v510 = vpack.c.b16 %v438, %v435
        %v511 = vpack.c.b16 %v439, %v436
        %v512 = vpack.c.b16 %v443, %v440
        %v513 = vpack.c.b16 %v444, %v441
        %v514 = vpack.c.b16 %v445, %v442
        %v515 = vpack.c.b16 %v449, %v446
        %v516 = vpack.c.b16 %v450, %v447
        %v517 = vpack.c.b16 %v451, %v448
        %v518 = vpack.c.b16 %v455, %v452
        %v519 = vpack.c.b16 %v456, %v453
        %v520 = vpack.c.b16 %v457, %v454
        %v521 = vpack.c.b16 %v461, %v458
        %v522 = vpack.c.b16 %v462, %v459
        %v523 = vpack.c.b16 %v463, %v460
        %v524 = vpack.c.b16 %v467, %v464
        %v525 = vpack.c.b16 %v468, %v465
        %v526 = vpack.c.b16 %v469, %v466
        %v527 = vpack.c.b16 %v473, %v470
        %v528 = vpack.c.b16 %v474, %v471
        %v529 = vpack.c.b16 %v475, %v472
        %v530 = vpack.c.b16 %v479, %v476
        %v531 = vpack.c.b16 %v480, %v477
        %v532 = vpack.c.b16 %v481, %v478
        %v533 = vpack.c.b16 %v485, %v482
        %v534 = vpack.c.b16 %v486, %v483
        %v535 = vpack.c.b16 %v487, %v484
        %584 = vmatpush.bf16.msra.mxu0 %v509
        %585 = vmatpush.bf16.msra.mxu0 %v506
        %586 = vmatpush.bf16.msra.mxu0 %v503
        %587 = vmatpush.bf16.msra.mxu0 %v500
        %588 = vmatpush.bf16.msra.mxu0 %v497
        %589 = vmatpush.bf16.msra.mxu0 %v494
        %590 = vmatpush.bf16.msra.mxu0 %v491
        %591 = vmatpush.bf16.msra.mxu0 %v488
        %592 = vmatmul.bf16.gmra.mxu0 %v254
        %v593 = vpop.f32.mrf.mxu0
        %v594 = vadd.f32 %v322, %v593
        %v595 = vpop.f32.mrf.mxu0
        %v596 = vadd.f32 %v322, %v595
        %597 = vdwg.mxu0
        %598 = vmatpush.bf16.msra.mxu0 %v533
        %599 = vmatpush.bf16.msra.mxu0 %v530
        %600 = vmatpush.bf16.msra.mxu0 %v527
        %601 = vmatpush.bf16.msra.mxu0 %v524
        %602 = vmatpush.bf16.msra.mxu0 %v521
        %603 = vmatpush.bf16.msra.mxu0 %v518
        %604 = vmatpush.bf16.msra.mxu0 %v515
        %605 = vmatpush.bf16.msra.mxu0 %v512
        %606 = vmatmul.bf16.gmra.mxu0 %v255
        %v607 = vpop.f32.mrf.mxu0
        %v608 = vadd.f32 %v594, %v607
        %v609 = vpop.f32.mrf.mxu0
        %v610 = vadd.f32 %v596, %v609
        %611 = vdwg.mxu0
        %612 = vmatpush.bf16.msra.mxu0 %v510
        %613 = vmatpush.bf16.msra.mxu0 %v507
        %614 = vmatpush.bf16.msra.mxu0 %v504
        %615 = vmatpush.bf16.msra.mxu0 %v501
        %616 = vmatpush.bf16.msra.mxu0 %v498
        %617 = vmatpush.bf16.msra.mxu0 %v495
        %618 = vmatpush.bf16.msra.mxu0 %v492
        %619 = vmatpush.bf16.msra.mxu0 %v489
        %620 = vmatmul.bf16.gmra.mxu0 %v254
        %v621 = vpop.f32.mrf.mxu0
        %v622 = vadd.f32 %v323, %v621
        %v623 = vpop.f32.mrf.mxu0
        %v624 = vadd.f32 %v323, %v623
        %625 = vdwg.mxu0
        %626 = vmatpush.bf16.msra.mxu0 %v534
        %627 = vmatpush.bf16.msra.mxu0 %v531
        %628 = vmatpush.bf16.msra.mxu0 %v528
        %629 = vmatpush.bf16.msra.mxu0 %v525
        %630 = vmatpush.bf16.msra.mxu0 %v522
        %631 = vmatpush.bf16.msra.mxu0 %v519
        %632 = vmatpush.bf16.msra.mxu0 %v516
        %633 = vmatpush.bf16.msra.mxu0 %v513
        %634 = vmatmul.bf16.gmra.mxu0 %v255
        %v635 = vpop.f32.mrf.mxu0
        %v636 = vadd.f32 %v622, %v635
        %v637 = vpop.f32.mrf.mxu0
        %v638 = vadd.f32 %v624, %v637
        %639 = vdwg.mxu0
        %640 = vmatpush.bf16.msra.mxu0 %v511
        %641 = vmatpush.bf16.msra.mxu0 %v508
        %642 = vmatpush.bf16.msra.mxu0 %v505
        %643 = vmatpush.bf16.msra.mxu0 %v502
        %644 = vmatpush.bf16.msra.mxu0 %v499
        %645 = vmatpush.bf16.msra.mxu0 %v496
        %646 = vmatpush.bf16.msra.mxu0 %v493
        %647 = vmatpush.bf16.msra.mxu0 %v490
        %648 = vmatmul.bf16.gmra.mxu0 %v254
        %v649 = vpop.f32.mrf.mxu0
        %v650 = vadd.f32 %v324, %v649
        %v651 = vpop.f32.mrf.mxu0
        %v652 = vadd.f32 %v324, %v651
        %653 = vdwg.mxu0
        %654 = vmatpush.bf16.msra.mxu0 %v535
        %655 = vmatpush.bf16.msra.mxu0 %v532
        %656 = vmatpush.bf16.msra.mxu0 %v529
        %657 = vmatpush.bf16.msra.mxu0 %v526
        %658 = vmatpush.bf16.msra.mxu0 %v523
        %659 = vmatpush.bf16.msra.mxu0 %v520
        %660 = vmatpush.bf16.msra.mxu0 %v517
        %661 = vmatpush.bf16.msra.mxu0 %v514
        %662 = vmatmul.bf16.gmra.mxu0 %v255
        %v663 = vpop.f32.mrf.mxu0
        %v664 = vadd.f32 %v650, %v663
        %v665 = vpop.f32.mrf.mxu0
        %v666 = vadd.f32 %v652, %v665
        %667 = vdwg.mxu0
        %v668 = vpack.c.bf16 %v636, %v608
        %v669 = vpack.c.bf16 %v664, %v664
        %v670 = vpack.c.bf16 %v638, %v610
        %v671 = vpack.c.bf16 %v666, %v666
        %672 = vst [vmem:[%s240] sm:$0xff] %v668
        %673 = vst [vmem:[%s240 + $0x8] sm:$0xf] %v669
        %674 = vst [vmem:[%s240 + $0xc] sm:$0xff] %v670
        %675 = vst [vmem:[%s240 + $0x14] sm:$0xf] %v671
        %s676 = sand.u32 %s118, 1
        %s677 = sand.u32 %s118, 1
        %s678 = smul.addr %s677, 24
        %s679 = scalar_lea.vmem [#allocation6], %s678
        // Predicated region
        $region41: #{midibert_back_forward.8} parent=31 // pred_check
          %p680 = pneg %p128
        $region42: #{midibert_back_forward.8} parent=31 // pred_check_branch
          %682 = sbr.rel (%p680) target = $region44
        $region43: #{midibert_back_forward.8} parent=31 // pred_region
          %s683 = smul.u32 2, %s22
          %s684 = smul.u32 3, %s23
          %s685 = smul.addr %s683, 6
          %s686 = sadd.s32 %s684, %s685
          %s687 = smul.addr %s686, 4
          %s688 = scalar_lea.vmem %s3, %s687
          // Predicated region
          $region45: #{midibert_back_forward.8} parent=43 // pred_check
            _
          $region46: #{midibert_back_forward.8} parent=43 // pred_check_branch
            %690 = sbr.rel (0) target = $region48
          $region47: #{midibert_back_forward.8} parent=43 // pred_region
            // Predicated region
            $region49: #{midibert_back_forward.8} parent=47 // pred_check
              _
            $region50: #{midibert_back_forward.8} parent=47 // pred_check_branch
              %692 = sbr.rel (0) target = $region52
            $region51: #{midibert_back_forward.8} parent=47 // pred_region
              %s693 = scalar_lea.vmem %s679, 8 [#allocation6]
              %s694 = scalar_lea.vmem %s688, 8
              loop: start=0, step=1, limit=1
              $region53: #{midibert_back_forward.8} parent=51 // loop_pre_header
                _
              $region54: #{midibert_back_forward.8} parent=51 // loop_header
                %s696 = sphi 0, %s700
                %p697 = scmp.ge.s32.totalorder %s696, 1
                %s701 = sphi %s679, %s679
                %s702 = sphi %s688, %s688
              $region55: #{midibert_back_forward.8} parent=51 // loop_header_branch
                %699 = sbr.rel (%p697) target = $region59
              $region56: #{midibert_back_forward.8} parent=51 // loop_body
                %v703 = vld [vmem:[%s701] sm:$0xff]
                %704 = vst [vmem:[%s702] sm:$0xff] %v703
                %v705 = vld [vmem:[%s701 + $0xc] sm:$0xff]
                %706 = vst [vmem:[%s702 + $0x18] sm:$0xff] %v705
              $region57: #{midibert_back_forward.8} parent=51 // loop_footer
                %s700 = sadd.s32 1, %s696
              $region58: #{midibert_back_forward.8} parent=51 // loop_footer_branch
                %695 = sbr.rel target = $region54
              $region59: #{midibert_back_forward.8} parent=51 // loop_exit
                _
              %s708 = ssub.s32 16, 1
              loop: start=0, step=1, limit=1
              $region60: #{midibert_back_forward.8} parent=51 // loop_pre_header
                _
              $region61: #{midibert_back_forward.8} parent=51 // loop_header
                %s710 = sphi 0, %s714
                %p711 = scmp.ge.s32.totalorder %s710, 1
                %s715 = sphi %s693, %s693
                %s716 = sphi %s694, %s694
              $region62: #{midibert_back_forward.8} parent=51 // loop_header_branch
                %713 = sbr.rel (%p711) target = $region66
              $region63: #{midibert_back_forward.8} parent=51 // loop_body
                %v717 = vld [vmem:[%s715] sm:%s708]
                %718 = vst [vmem:[%s716] sm:%s708] %v717
                %v719 = vld [vmem:[%s715 + $0xc] sm:%s708]
                %720 = vst [vmem:[%s716 + $0x18] sm:%s708] %v719
              $region64: #{midibert_back_forward.8} parent=51 // loop_footer
                %s714 = sadd.s32 1, %s710
              $region65: #{midibert_back_forward.8} parent=51 // loop_footer_branch
                %709 = sbr.rel target = $region61
              $region66: #{midibert_back_forward.8} parent=51 // loop_exit
                _
            $region52: #{midibert_back_forward.8} parent=47 // pred_fallthru
              _
          $region48: #{midibert_back_forward.8} parent=43 // pred_fallthru
            _
          %721 = vnop
        $region44: #{midibert_back_forward.8} parent=31 // pred_fallthru
          _
      $region32: #{midibert_back_forward.8} parent=5 // pred_fallthru
        _
      %p722 = scmp.le.s32.totalorder 2, %s13
      // Predicated region
      $region67: #{midibert_back_forward.8} parent=5 // pred_check
        %p723 = pneg %p722
      $region68: #{midibert_back_forward.8} parent=5 // pred_check_branch
        %725 = sbr.rel (%p723) target = $region70
      $region69: #{midibert_back_forward.8} parent=5 // pred_region
        %s726 = ssub.s32 %s13, 2
        // Predicated region
        $region71: #{midibert_back_forward.8} parent=69 // pred_check
          %p727 = pneg %p134
        $region72: #{midibert_back_forward.8} parent=69 // pred_check_branch
          %729 = sbr.rel (%p727) target = $region74
        $region73: #{midibert_back_forward.8} parent=69 // pred_region
          %s730 = sand.u32 %s119, 1
          %s731 = sand.u32 %s119, 1
          %s732 = smul.addr %s731, 24
          %s733 = scalar_lea.vmem [#allocation6], %s732
        $region74: #{midibert_back_forward.8} parent=69 // pred_fallthru
          _
      $region70: #{midibert_back_forward.8} parent=5 // pred_fallthru
        _
    $region6: #{midibert_back_forward.8} parent=1 // loop_footer
      %s17 = sadd.s32 1, %s13
    $region7: #{midibert_back_forward.8} parent=1 // loop_footer_branch
      %12 = sbr.rel target = $region3
    $region8: #{midibert_back_forward.8} parent=1 // loop_exit
      _
    %734 = vsyncpa [#allocation3], 1
    %s735 = scalar_lea.sflag [#allocation3], 1
    %736 = vsyncpa %s735, 1
    %737 = vsyncpa [#allocation5], 1
    %s738 = scalar_lea.sflag [#allocation5], 1
    %739 = vsyncpa %s738, 1

// kernel: midibert_back_forward.10
$region0: #{midibert_back_forward.10}
  #allocation0 [shape = 'u32[]', space=smem, size = 0x4, offset = 0x4, fixed_abs, tag = 'smem constant byte address 0x4 - core index']
  #allocation1 [shape = 'u32[72,128]{1,0:T(1,128)}', space=vmem, size = 0x9000, scoped, tag = 'internal scratch']
  %s0 = inlined_call_operand.vmem [shape: f32[16,256], index: 0, kind: input, shape index: {}]
  %s1 = inlined_call_operand.hbm [shape: bf16[256,512], index: 1, kind: input, shape index: {}]
  %s2 = inlined_call_operand.vmem [shape: f32[1,512], index: 2, kind: input, shape index: {}]
  %s3 = inlined_call_operand.vmem [shape: f32[16,512], index: 3, kind: output, shape index: {}]
  %s4 = sld [smem:[#allocation0]]
  $region68: #{midibert_back_forward.10} parent=0
    _
  %s6 = ssub.s32 1, %s4
  %s7 = scalar_select 0, %s6, %s4
  $region1: #{midibert_back_forward.10} parent=0
    #allocation2 [shape = 'u8[262144]{0}', space=vmem, size = 0x40000, scoped, tag = 'input window, operand 1']
    #allocation3 [shape = 's32[2]{0}', space=sflag, size = 0x8, scoped, tag = 'scoped memory for midibert_back_forward.10']
    #allocation4 [shape = 'u8[32768]{0}', space=vmem, size = 0x8000, scoped, tag = 'output window, operand 0']
    %8 = vsyncpa [#allocation3], 0
    %s9 = scalar_lea.sflag [#allocation3], 1
    %10 = vsyncpa %s9, 0
    loop: start=0, step=1, limit=4
    $region2: #{midibert_back_forward.10} parent=1 // loop_pre_header
      _
    $region3: #{midibert_back_forward.10} parent=1 // loop_header
      %s12 = sphi 0, %s16
      %p13 = scmp.ge.s32.totalorder %s12, 4
      %s19 = sphi 0, %s31
      %s20 = sphi 0, %s27
      %s21 = sphi 0, %s19
      %s22 = sphi 0, %s20
      %s23 = sphi 0, %s21
      %s24 = sphi 0, %s22
      %s34 = sphi 0, %s36
      %s37 = sphi 0, %s34
      %s38 = sphi 0, %s37
      %s54 = sphi 0, %s38
      %s60 = sphi 0, %s62
      %s63 = sphi 0, %s60
      %s64 = sphi 0, %s63
      %s80 = sphi 0, %s64
      %s86 = sphi 0, %s88
      %s89 = sphi 0, %s86
      %s90 = sphi 0, %s89
      %s106 = sphi 0, %s90
      %s114 = sphi 0, %s116
      %s117 = sphi 0, %s114
      %s118 = sphi 0, %s117
      %s134 = sphi 0, %s118
    $region4: #{midibert_back_forward.10} parent=1 // loop_header_branch
      %15 = sbr.rel (%p13) target = $region8
    $region5: #{midibert_back_forward.10} parent=1 // loop_body
      %s17 = ssub.s32 %s12, 1
      %s18 = ssub.s32 %s12, 2
      %s25 = sadd.s32 1, %s20
      %p26 = scmp.ge.s32.totalorder %s25, 2
      %s27 = scalar_select %p26, 0, %s25
      %s28 = sadd.s32 1, %s19
      %s29 = scalar_select %p26, %s28, %s19
      %p30 = scmp.ge.s32.totalorder %s29, 1
      %s31 = scalar_select %p30, 0, %s29
      %s32 = ssub.s32 %s19, %s31
      %p33 = scmp.eq.s32.totalorder %s32, 0
      %s35 = sadd.s32 %s34, 1
      %s36 = scalar_select %p33, %s34, %s35
      %p39 = pneg %p33
      %p40 = scmp.eq.s32.totalorder %s12, 1
      %p41 = por %p39, %p40
      %p42 = scmp.ne.s32.totalorder %s34, %s37
      %p43 = scmp.eq.s32.totalorder %s12, 0
      %p44 = por %p42, %p43
      %p45 = scmp.ne.s32.totalorder %s34, %s37
      %p46 = scmp.eq.s32.totalorder %s17, 1
      %p47 = por %p45, %p46
      %p48 = scmp.ne.s32.totalorder %s37, %s38
      %p49 = scmp.eq.s32.totalorder %s17, 0
      %p50 = por %p48, %p49
      %p51 = scmp.ne.s32.totalorder %s37, %s38
      %p52 = scmp.eq.s32.totalorder %s18, 1
      %p53 = por %p51, %p52
      %p55 = scmp.ne.s32.totalorder %s38, %s54
      %p56 = scmp.eq.s32.totalorder %s18, 0
      %p57 = por %p55, %p56
      %s58 = ssub.s32 %s20, %s27
      %p59 = scmp.eq.s32.totalorder %s58, 0
      %s61 = sadd.s32 %s60, 1
      %s62 = scalar_select %p59, %s60, %s61
      %p65 = pneg %p59
      %p66 = scmp.eq.s32.totalorder %s12, 1
      %p67 = por %p65, %p66
      %p68 = scmp.ne.s32.totalorder %s60, %s63
      %p69 = scmp.eq.s32.totalorder %s12, 0
      %p70 = por %p68, %p69
      %p71 = scmp.ne.s32.totalorder %s60, %s63
      %p72 = scmp.eq.s32.totalorder %s17, 1
      %p73 = por %p71, %p72
      %p74 = scmp.ne.s32.totalorder %s63, %s64
      %p75 = scmp.eq.s32.totalorder %s17, 0
      %p76 = por %p74, %p75
      %p77 = scmp.ne.s32.totalorder %s63, %s64
      %p78 = scmp.eq.s32.totalorder %s18, 1
      %p79 = por %p77, %p78
      %p81 = scmp.ne.s32.totalorder %s64, %s80
      %p82 = scmp.eq.s32.totalorder %s18, 0
      %p83 = por %p81, %p82
      %s84 = ssub.s32 %s20, %s27
      %p85 = scmp.eq.s32.totalorder %s84, 0
      %s87 = sadd.s32 %s86, 1
      %s88 = scalar_select %p85, %s86, %s87
      %p91 = pneg %p85
      %p92 = scmp.eq.s32.totalorder %s12, 1
      %p93 = por %p91, %p92
      %p94 = scmp.ne.s32.totalorder %s86, %s89
      %p95 = scmp.eq.s32.totalorder %s12, 0
      %p96 = por %p94, %p95
      %p97 = scmp.ne.s32.totalorder %s86, %s89
      %p98 = scmp.eq.s32.totalorder %s17, 1
      %p99 = por %p97, %p98
      %p100 = scmp.ne.s32.totalorder %s89, %s90
      %p101 = scmp.eq.s32.totalorder %s17, 0
      %p102 = por %p100, %p101
      %p103 = scmp.ne.s32.totalorder %s89, %s90
      %p104 = scmp.eq.s32.totalorder %s18, 1
      %p105 = por %p103, %p104
      %p107 = scmp.ne.s32.totalorder %s90, %s106
      %p108 = scmp.eq.s32.totalorder %s18, 0
      %p109 = por %p107, %p108
      %s110 = ssub.s32 %s19, %s31
      %s111 = ssub.s32 %s20, %s27
      %s112 = sor.u32 %s110, %s111
      %p113 = scmp.eq.s32.totalorder %s112, 0
      %s115 = sadd.s32 %s114, 1
      %s116 = scalar_select %p113, %s114, %s115
      %p119 = pneg %p113
      %p120 = scmp.eq.s32.totalorder %s12, 1
      %p121 = por %p119, %p120
      %p122 = scmp.ne.s32.totalorder %s114, %s117
      %p123 = scmp.eq.s32.totalorder %s12, 0
      %p124 = por %p122, %p123
      %p125 = scmp.ne.s32.totalorder %s114, %s117
      %p126 = scmp.eq.s32.totalorder %s17, 1
      %p127 = por %p125, %p126
      %p128 = scmp.ne.s32.totalorder %s117, %s118
      %p129 = scmp.eq.s32.totalorder %s17, 0
      %p130 = por %p128, %p129
      %p131 = scmp.ne.s32.totalorder %s117, %s118
      %p132 = scmp.eq.s32.totalorder %s18, 1
      %p133 = por %p131, %p132
      %p135 = scmp.ne.s32.totalorder %s118, %s134
      %p136 = scmp.eq.s32.totalorder %s18, 0
      %p137 = por %p135, %p136
      %p138 = scmp.le.s32.totalorder 1, %s12
      %p139 = scmp.lt.s32.totalorder %s12, 3
      %p140 = pnand %p138, %p139
      %p141 = pneg %p140
      // Predicated region
      $region9: #{midibert_back_forward.10} parent=5 // pred_check
        _
      $region10: #{midibert_back_forward.10} parent=5 // pred_check_branch
        %143 = sbr.rel (%p140) target = $region12
      $region11: #{midibert_back_forward.10} parent=5 // pred_region
        %s144 = ssub.s32 %s12, 1
        // Predicated region
        $region13: #{midibert_back_forward.10} parent=11 // pred_check
          %p145 = pneg %p50
        $region14: #{midibert_back_forward.10} parent=11 // pred_check_branch
          %147 = sbr.rel (%p145) target = $region16
        $region15: #{midibert_back_forward.10} parent=11 // pred_region
          %s148 = smul.u32 2, %s21
          %p149 = scmp.lt.s32.totalorder %s148, 1
          %s150 = scalar_select %p149, %s148, 1
          %s151 = smul.addr %s150, 2
          %s152 = smul.addr %s151, 8
          %s153 = scalar_lea.vmem %s0, %s152
          %s154 = smul.u32 2, %s21
        $region16: #{midibert_back_forward.10} parent=11 // pred_fallthru
          _
      $region12: #{midibert_back_forward.10} parent=5 // pred_fallthru
        _
      %p155 = scmp.lt.s32.totalorder %s12, 2
      // Predicated region
      $region17: #{midibert_back_forward.10} parent=5 // pred_check
        %p156 = pneg %p155
      $region18: #{midibert_back_forward.10} parent=5 // pred_check_branch
        %158 = sbr.rel (%p156) target = $region20
      $region19: #{midibert_back_forward.10} parent=5 // pred_region
        // Predicated region
        $region21: #{midibert_back_forward.10} parent=19 // pred_check
          %p159 = pneg %p70
        $region22: #{midibert_back_forward.10} parent=19 // pred_check_branch
          %161 = sbr.rel (%p159) target = $region24
        $region23: #{midibert_back_forward.10} parent=19 // pred_region
          %s162 = sand.u32 %s60, 1
          %s163 = scalar_lea.sflag [#allocation3], %s162
          %s164 = sand.u32 %s60, 1
          %s165 = smul.addr %s164, 256
          %s166 = scalar_lea.vmem [#allocation2], %s165
          %s167 = smul.u32 2, %s20
          %169 = vsyncadd %s163, 0
          %s170 = smul.addr %s167, 4
          %s171 = scalar_lea.hbm %s1, %s170
          %s172 = sshll.u32 %s171, 4
          %s173 = int_to_ptr.hbm [resolvable:$true] %s172
          %s174 = sshll.u32 %s166, 4
          %s175 = int_to_ptr.vmem [resolvable:$true] %s174
          %180 = dma.hbm_to_vmem [thread:$0]  %s173, 4096, %s175, %s163, 256, 128, 8
        $region24: #{midibert_back_forward.10} parent=19 // pred_fallthru
          _
        // Predicated region
        $region25: #{midibert_back_forward.10} parent=19 // pred_check
          %p181 = pneg %p96
        $region26: #{midibert_back_forward.10} parent=19 // pred_check_branch
          %183 = sbr.rel (%p181) target = $region28
        $region27: #{midibert_back_forward.10} parent=19 // pred_region
          %s184 = smul.u32 2, %s20
          %p185 = scmp.lt.s32.totalorder %s184, 3
          %s186 = scalar_select %p185, %s184, 3
          %s187 = scalar_lea.vmem %s2, %s186
          %s188 = smul.u32 2, %s20
        $region28: #{midibert_back_forward.10} parent=19 // pred_fallthru
          _
      $region20: #{midibert_back_forward.10} parent=5 // pred_fallthru
        _
      %p189 = scmp.le.s32.totalorder 1, %s12
      %p190 = scmp.lt.s32.totalorder %s12, 3
      %p191 = pnand %p189, %p190
      %p192 = pneg %p191
      // Predicated region
      $region29: #{midibert_back_forward.10} parent=5 // pred_check
        _
      $region30: #{midibert_back_forward.10} parent=5 // pred_check_branch
        %194 = sbr.rel (%p191) target = $region32
      $region31: #{midibert_back_forward.10} parent=5 // pred_region
        %s195 = ssub.s32 %s12, 1
        %s196 = sand.u32 %s63, 1
        %s197 = scalar_lea.sflag [#allocation3], %s196
        %s198 = sand.u32 %s63, 1
        %s199 = smul.addr %s198, 256
        %s200 = scalar_lea.vmem [#allocation2], %s199
        // Predicated region
        $region33: #{midibert_back_forward.10} parent=31 // pred_check
          %p201 = pneg %p76
        $region34: #{midibert_back_forward.10} parent=31 // pred_check_branch
          %203 = sbr.rel (%p201) target = $region36
        $region35: #{midibert_back_forward.10} parent=31 // pred_region
          %205 = dma.done %s197, 4096
        $region36: #{midibert_back_forward.10} parent=31 // pred_fallthru
          _
        %s206 = smul.u32 2, %s21
        %p207 = scmp.lt.s32.totalorder %s206, 1
        %s208 = scalar_select %p207, %s206, 1
        %s209 = smul.addr %s208, 2
        %s210 = smul.addr %s209, 8
        %s211 = scalar_lea.vmem %s0, %s210
        %p212 = pneg %p50
        %p213 = pneg %p47
        %s214 = sand.u32 %s63, 1
        %s215 = scalar_lea.sflag [#allocation3], %s214
        %s216 = sand.u32 %s63, 1
        %s217 = smul.addr %s216, 256
        %s218 = scalar_lea.vmem [#allocation2], %s217
        %p219 = pneg %p76
        %p220 = pneg %p73
        %s221 = smul.u32 2, %s22
        %p222 = scmp.lt.s32.totalorder %s221, 3
        %s223 = scalar_select %p222, %s221, 3
        %s224 = scalar_lea.vmem %s2, %s223
        %p225 = pneg %p102
        %p226 = pneg %p99
        %p227 = pneg %p130
        %p228 = pneg %p127
        %s229 = sand.u32 %s117, 1
        %s230 = sand.u32 %s117, 1
        %s231 = smul.addr %s230, 32
        %s232 = scalar_lea.vmem [#allocation4], %s231
        %s233 = smul.u32 2, %s21
        %p234 = scmp.lt.s32.totalorder %s233, 1
        %s235 = scalar_select %p234, %s233, 1
        %s236 = smul.addr %s235, 2
        %s237 = smul.addr %s236, 8
        %s238 = scalar_lea.vmem %s0, %s237
        %s239 = smul.u32 2, %s21
        %s240 = smul.u32 2, %s22
        %s241 = smul.u32 2, %s22
        %p242 = scmp.lt.s32.totalorder %s241, 3
        %s243 = scalar_select %p242, %s241, 3
        %s244 = scalar_lea.vmem %s2, %s243
        %s245 = smul.u32 2, %s22
        %s246 = smul.u32 2, %s21
        %s247 = smul.u32 2, %s22
        %v248 = vld [vmem:[%s238] sm:$0xff]
        %v249 = vld [vmem:[%s238 + $0x8] sm:$0xff]
        %v250 = vld [vmem:[%s238 + $0x10] sm:$0xff]
        %v251 = vld [vmem:[%s238 + $0x18] sm:$0xff]
        %v252 = vpack.c.bf16 %v250, %v248
        %v253 = vpack.c.bf16 %v251, %v249
        %v254 = vld [vmem:[%s200] sm:$0xff]
        %v255 = vld [vmem:[%s200 + $0x8] sm:$0xff]
        %v256 = vld [vmem:[%s200 + $0x10] sm:$0xff]
        %v257 = vld [vmem:[%s200 + $0x18] sm:$0xff]
        %v258 = vld [vmem:[%s200 + $0x20] sm:$0xff]
        %v259 = vld [vmem:[%s200 + $0x28] sm:$0xff]
        %v260 = vld [vmem:[%s200 + $0x30] sm:$0xff]
        %v261 = vld [vmem:[%s200 + $0x38] sm:$0xff]
        %v262 = vld [vmem:[%s200 + $0x40] sm:$0xff]
        %v263 = vld [vmem:[%s200 + $0x48] sm:$0xff]
        %v264 = vld [vmem:[%s200 + $0x50] sm:$0xff]
        %v265 = vld [vmem:[%s200 + $0x58] sm:$0xff]
        %v266 = vld [vmem:[%s200 + $0x60] sm:$0xff]
        %v267 = vld [vmem:[%s200 + $0x68] sm:$0xff]
        %v268 = vld [vmem:[%s200 + $0x70] sm:$0xff]
        %v269 = vld [vmem:[%s200 + $0x78] sm:$0xff]
        %v270 = vld [vmem:[%s200 + $0x80] sm:$0xff]
        %v271 = vld [vmem:[%s200 + $0x88] sm:$0xff]
        %v272 = vld [vmem:[%s200 + $0x90] sm:$0xff]
        %v273 = vld [vmem:[%s200 + $0x98] sm:$0xff]
        %v274 = vld [vmem:[%s200 + $0xa0] sm:$0xff]
        %v275 = vld [vmem:[%s200 + $0xa8] sm:$0xff]
        %v276 = vld [vmem:[%s200 + $0xb0] sm:$0xff]
        %v277 = vld [vmem:[%s200 + $0xb8] sm:$0xff]
        %v278 = vld [vmem:[%s200 + $0xc0] sm:$0xff]
        %v279 = vld [vmem:[%s200 + $0xc8] sm:$0xff]
        %v280 = vld [vmem:[%s200 + $0xd0] sm:$0xff]
        %v281 = vld [vmem:[%s200 + $0xd8] sm:$0xff]
        %v282 = vld [vmem:[%s200 + $0xe0] sm:$0xff]
        %v283 = vld [vmem:[%s200 + $0xe8] sm:$0xff]
        %v284 = vld [vmem:[%s200 + $0xf0] sm:$0xff]
        %v285 = vld [vmem:[%s200 + $0xf8] sm:$0xff]
        %v286 = vld [vmem:[%s244] sm:$0x3]
        %v288 = vperm.slane %v286, 0
        %v289 = vperm.slane %v286, 1
        %v324 = vunpack.c.l.b16 %v254
        %v325 = vunpack.c.h.b16 %v254
        %v326 = vunpack.c.l.b16 %v255
        %v327 = vunpack.c.h.b16 %v255
        %v328 = vunpack.c.l.b16 %v256
        %v329 = vunpack.c.h.b16 %v256
        %v330 = vunpack.c.l.b16 %v257
        %v331 = vunpack.c.h.b16 %v257
        %v332 = vunpack.c.l.b16 %v258
        %v333 = vunpack.c.h.b16 %v258
        %v334 = vunpack.c.l.b16 %v259
        %v335 = vunpack.c.h.b16 %v259
        %v336 = vunpack.c.l.b16 %v260
        %v337 = vunpack.c.h.b16 %v260
        %v338 = vunpack.c.l.b16 %v261
        %v339 = vunpack.c.h.b16 %v261
        %v340 = vunpack.c.l.b16 %v262
        %v341 = vunpack.c.h.b16 %v262
        %v342 = vunpack.c.l.b16 %v263
        %v343 = vunpack.c.h.b16 %v263
        %v344 = vunpack.c.l.b16 %v264
        %v345 = vunpack.c.h.b16 %v264
        %v346 = vunpack.c.l.b16 %v265
        %v347 = vunpack.c.h.b16 %v265
        %v348 = vunpack.c.l.b16 %v266
        %v349 = vunpack.c.h.b16 %v266
        %v350 = vunpack.c.l.b16 %v267
        %v351 = vunpack.c.h.b16 %v267
        %v352 = vunpack.c.l.b16 %v268
        %v353 = vunpack.c.h.b16 %v268
        %v354 = vunpack.c.l.b16 %v269
        %v355 = vunpack.c.h.b16 %v269
        %v356 = vunpack.c.l.b16 %v270
        %v357 = vunpack.c.h.b16 %v270
        %v358 = vunpack.c.l.b16 %v271
        %v359 = vunpack.c.h.b16 %v271
        %v360 = vunpack.c.l.b16 %v272
        %v361 = vunpack.c.h.b16 %v272
        %v362 = vunpack.c.l.b16 %v273
        %v363 = vunpack.c.h.b16 %v273
        %v364 = vunpack.c.l.b16 %v274
        %v365 = vunpack.c.h.b16 %v274
        %v366 = vunpack.c.l.b16 %v275
        %v367 = vunpack.c.h.b16 %v275
        %v368 = vunpack.c.l.b16 %v276
        %v369 = vunpack.c.h.b16 %v276
        %v370 = vunpack.c.l.b16 %v277
        %v371 = vunpack.c.h.b16 %v277
        %v372 = vunpack.c.l.b16 %v278
        %v373 = vunpack.c.h.b16 %v278
        %v374 = vunpack.c.l.b16 %v279
        %v375 = vunpack.c.h.b16 %v279
        %v376 = vunpack.c.l.b16 %v280
        %v377 = vunpack.c.h.b16 %v280
        %v378 = vunpack.c.l.b16 %v281
        %v379 = vunpack.c.h.b16 %v281
        %v380 = vunpack.c.l.b16 %v282
        %v381 = vunpack.c.h.b16 %v282
        %v382 = vunpack.c.l.b16 %v283
        %v383 = vunpack.c.h.b16 %v283
        %v384 = vunpack.c.l.b16 %v284
        %v385 = vunpack.c.h.b16 %v284
        %v386 = vunpack.c.l.b16 %v285
        %v387 = vunpack.c.h.b16 %v285
        %v388 = vpack.c.b16 %v326, %v324
        %v389 = vpack.c.b16 %v327, %v325
        %v390 = vpack.c.b16 %v330, %v328
        %v391 = vpack.c.b16 %v331, %v329
        %v392 = vpack.c.b16 %v334, %v332
        %v393 = vpack.c.b16 %v335, %v333
        %v394 = vpack.c.b16 %v338, %v336
        %v395 = vpack.c.b16 %v339, %v337
        %v396 = vpack.c.b16 %v342, %v340
        %v397 = vpack.c.b16 %v343, %v341
        %v398 = vpack.c.b16 %v346, %v344
        %v399 = vpack.c.b16 %v347, %v345
        %v400 = vpack.c.b16 %v350, %v348
        %v401 = vpack.c.b16 %v351, %v349
        %v402 = vpack.c.b16 %v354, %v352
        %v403 = vpack.c.b16 %v355, %v353
        %v404 = vpack.c.b16 %v358, %v356
        %v405 = vpack.c.b16 %v359, %v357
        %v406 = vpack.c.b16 %v362, %v360
        %v407 = vpack.c.b16 %v363, %v361
        %v408 = vpack.c.b16 %v366, %v364
        %v409 = vpack.c.b16 %v367, %v365
        %v410 = vpack.c.b16 %v370, %v368
        %v411 = vpack.c.b16 %v371, %v369
        %v412 = vpack.c.b16 %v374, %v372
        %v413 = vpack.c.b16 %v375, %v373
        %v414 = vpack.c.b16 %v378, %v376
        %v415 = vpack.c.b16 %v379, %v377
        %v416 = vpack.c.b16 %v382, %v380
        %v417 = vpack.c.b16 %v383, %v381
        %v418 = vpack.c.b16 %v386, %v384
        %v419 = vpack.c.b16 %v387, %v385
        %452 = vmatpush.bf16.msra.mxu0 %v402
        %453 = vmatpush.bf16.msra.mxu0 %v400
        %454 = vmatpush.bf16.msra.mxu0 %v398
        %455 = vmatpush.bf16.msra.mxu0 %v396
        %456 = vmatpush.bf16.msra.mxu0 %v394
        %457 = vmatpush.bf16.msra.mxu0 %v392
        %458 = vmatpush.bf16.msra.mxu0 %v390
        %459 = vmatpush.bf16.msra.mxu0 %v388
        %460 = vmatmul.bf16.gmra.mxu0 %v252
        %v461 = vpop.f32.mrf.mxu0
        %v462 = vadd.f32 %v288, %v461
        %v463 = vpop.f32.mrf.mxu0
        %v464 = vadd.f32 %v288, %v463
        %465 = vdwg.mxu0
        %466 = vmatpush.bf16.msra.mxu0 %v418
        %467 = vmatpush.bf16.msra.mxu0 %v416
        %468 = vmatpush.bf16.msra.mxu0 %v414
        %469 = vmatpush.bf16.msra.mxu0 %v412
        %470 = vmatpush.bf16.msra.mxu0 %v410
        %471 = vmatpush.bf16.msra.mxu0 %v408
        %472 = vmatpush.bf16.msra.mxu0 %v406
        %473 = vmatpush.bf16.msra.mxu0 %v404
        %474 = vmatmul.bf16.gmra.mxu0 %v253
        %v475 = vpop.f32.mrf.mxu0
        %v476 = vadd.f32 %v462, %v475
        %v477 = vpop.f32.mrf.mxu0
        %v478 = vadd.f32 %v464, %v477
        %479 = vdwg.mxu0
        %480 = vmatpush.bf16.msra.mxu0 %v403
        %481 = vmatpush.bf16.msra.mxu0 %v401
        %482 = vmatpush.bf16.msra.mxu0 %v399
        %483 = vmatpush.bf16.msra.mxu0 %v397
        %484 = vmatpush.bf16.msra.mxu0 %v395
        %485 = vmatpush.bf16.msra.mxu0 %v393
        %486 = vmatpush.bf16.msra.mxu0 %v391
        %487 = vmatpush.bf16.msra.mxu0 %v389
        %488 = vmatmul.bf16.gmra.mxu0 %v252
        %v489 = vpop.f32.mrf.mxu0
        %v490 = vadd.f32 %v289, %v489
        %v491 = vpop.f32.mrf.mxu0
        %v492 = vadd.f32 %v289, %v491
        %493 = vdwg.mxu0
        %494 = vmatpush.bf16.msra.mxu0 %v419
        %495 = vmatpush.bf16.msra.mxu0 %v417
        %496 = vmatpush.bf16.msra.mxu0 %v415
        %497 = vmatpush.bf16.msra.mxu0 %v413
        %498 = vmatpush.bf16.msra.mxu0 %v411
        %499 = vmatpush.bf16.msra.mxu0 %v409
        %500 = vmatpush.bf16.msra.mxu0 %v407
        %501 = vmatpush.bf16.msra.mxu0 %v405
        %502 = vmatmul.bf16.gmra.mxu0 %v253
        %v503 = vpop.f32.mrf.mxu0
        %v504 = vadd.f32 %v490, %v503
        %v505 = vpop.f32.mrf.mxu0
        %v506 = vadd.f32 %v492, %v505
        %507 = vdwg.mxu0
        %v508 = vmul.f32 %v476, 0.5
        %v509 = vmul.f32 %v504, 0.5
        %v510 = vmul.f32 %v478, 0.5
        %v511 = vmul.f32 %v506, 0.5
        %v512 = vmul.f32 %v476, 0.70710677
        %v513 = vmul.f32 %v504, 0.70710677
        %v514 = vmul.f32 %v478, 0.70710677
        %v515 = vmul.f32 %v506, 0.70710677
        %vm516 = vcmp.ge.f32.partialorder %v512, 0.0
        %vm517 = vcmp.ge.f32.partialorder %v513, 0.0
        %vm518 = vcmp.ge.f32.partialorder %v514, 0.0
        %vm519 = vcmp.ge.f32.partialorder %v515, 0.0
        %v520 = vsel %vm516, 1.0, -1.0
        %v521 = vsel %vm517, 1.0, -1.0
        %v522 = vsel %vm518, 1.0, -1.0
        %v523 = vsel %vm519, 1.0, -1.0
        %v524 = vand.u32 2147483647, %v512
        %v525 = vand.u32 2147483647, %v513
        %v526 = vand.u32 2147483647, %v514
        %v527 = vand.u32 2147483647, %v515
        %v528 = vmul.f32 %v524, 0.3275911
        %v529 = vmul.f32 %v525, 0.3275911
        %v530 = vmul.f32 %v526, 0.3275911
        %v531 = vmul.f32 %v527, 0.3275911
        %v532 = vadd.f32 %v528, 1.0
        %v533 = vadd.f32 %v529, 1.0
        %v534 = vadd.f32 %v530, 1.0
        %v535 = vadd.f32 %v531, 1.0
        %v536 = vrcp.pop %v532
        %v537 = vrcp.pop %v533
        %v538 = vrcp.pop %v534
        %v539 = vrcp.pop %v535
        %v540 = vmul.f32 %v536, 1.0614054
        %v541 = vmul.f32 %v537, 1.0614054
        %v542 = vmul.f32 %v538, 1.0614054
        %v543 = vmul.f32 %v539, 1.0614054
        %v544 = vadd.f32 %v540, -1.4531521
        %v545 = vadd.f32 %v541, -1.4531521
        %v546 = vadd.f32 %v542, -1.4531521
        %v547 = vadd.f32 %v543, -1.4531521
        %v548 = vmul.f32 %v536, %v544
        %v549 = vmul.f32 %v537, %v545
        %v550 = vmul.f32 %v538, %v546
        %v551 = vmul.f32 %v539, %v547
        %v552 = vadd.f32 %v548, 1.4214138
        %v553 = vadd.f32 %v549, 1.4214138
        %v554 = vadd.f32 %v550, 1.4214138
        %v555 = vadd.f32 %v551, 1.4214138
        %v556 = vmul.f32 %v536, %v552
        %v557 = vmul.f32 %v537, %v553
        %v558 = vmul.f32 %v538, %v554
        %v559 = vmul.f32 %v539, %v555
        %v560 = vadd.f32 %v556, -0.28449672
        %v561 = vadd.f32 %v557, -0.28449672
        %v562 = vadd.f32 %v558, -0.28449672
        %v563 = vadd.f32 %v559, -0.28449672
        %v564 = vmul.f32 %v536, %v560
        %v565 = vmul.f32 %v537, %v561
        %v566 = vmul.f32 %v538, %v562
        %v567 = vmul.f32 %v539, %v563
        %v568 = vadd.f32 %v564, 0.2548296
        %v569 = vadd.f32 %v565, 0.2548296
        %v570 = vadd.f32 %v566, 0.2548296
        %v571 = vadd.f32 %v567, 0.2548296
        %v572 = vmul.f32 %v536, %v568
        %v573 = vmul.f32 %v537, %v569
        %v574 = vmul.f32 %v538, %v570
        %v575 = vmul.f32 %v539, %v571
        %v576 = vsub.f32 0.0, %v524
        %v577 = vsub.f32 0.0, %v525
        %v578 = vsub.f32 0.0, %v526
        %v579 = vsub.f32 0.0, %v527
        %v580 = vmul.f32 %v576, %v524
        %v581 = vmul.f32 %v577, %v525
        %v582 = vmul.f32 %v578, %v526
        %v583 = vmul.f32 %v579, %v527
        %v584 = vmul.f32 %v580, 1.442695
        %v585 = vpow.pop %v584
        %v586 = vmul.f32 %v581, 1.442695
        %v587 = vpow.pop %v586
        %v588 = vmul.f32 %v582, 1.442695
        %v589 = vpow.pop %v588
        %v590 = vmul.f32 %v583, 1.442695
        %v591 = vpow.pop %v590
        %v592 = vmul.f32 %v572, %v585
        %v593 = vmul.f32 %v573, %v587
        %v594 = vmul.f32 %v574, %v589
        %v595 = vmul.f32 %v575, %v591
        %v596 = vsub.f32 1.0, %v592
        %v597 = vsub.f32 1.0, %v593
        %v598 = vsub.f32 1.0, %v594
        %v599 = vsub.f32 1.0, %v595
        %v600 = vmul.f32 %v520, %v596
        %v601 = vmul.f32 %v521, %v597
        %v602 = vmul.f32 %v522, %v598
        %v603 = vmul.f32 %v523, %v599
        %v604 = vadd.f32 %v600, 1.0
        %v605 = vadd.f32 %v601, 1.0
        %v606 = vadd.f32 %v602, 1.0
        %v607 = vadd.f32 %v603, 1.0
        %v608 = vmul.f32 %v508, %v604
        %v609 = vmul.f32 %v509, %v605
        %v610 = vmul.f32 %v510, %v606
        %v611 = vmul.f32 %v511, %v607
        %612 = vst [vmem:[%s232] sm:$0xff] %v608
        %613 = vst [vmem:[%s232 + $0x8] sm:$0xff] %v609
        %614 = vst [vmem:[%s232 + $0x10] sm:$0xff] %v610
        %615 = vst [vmem:[%s232 + $0x18] sm:$0xff] %v611
        %s616 = sand.u32 %s117, 1
        %s617 = sand.u32 %s117, 1
        %s618 = smul.addr %s617, 32
        %s619 = scalar_lea.vmem [#allocation4], %s618
        // Predicated region
        $region37: #{midibert_back_forward.10} parent=31 // pred_check
          %p620 = pneg %p127
        $region38: #{midibert_back_forward.10} parent=31 // pred_check_branch
          %622 = sbr.rel (%p620) target = $region40
        $region39: #{midibert_back_forward.10} parent=31 // pred_region
          %s623 = smul.u32 2, %s21
          %s624 = smul.u32 2, %s22
          %s625 = smul.addr %s623, 4
          %s626 = sadd.s32 %s624, %s625
          %s627 = smul.addr %s626, 8
          %s628 = scalar_lea.vmem %s3, %s627
          // Predicated region
          $region41: #{midibert_back_forward.10} parent=39 // pred_check
            _
          $region42: #{midibert_back_forward.10} parent=39 // pred_check_branch
            %630 = sbr.rel (0) target = $region44
          $region43: #{midibert_back_forward.10} parent=39 // pred_region
            // Predicated region
            $region45: #{midibert_back_forward.10} parent=43 // pred_check
              _
            $region46: #{midibert_back_forward.10} parent=43 // pred_check_branch
              %632 = sbr.rel (0) target = $region48
            $region47: #{midibert_back_forward.10} parent=43 // pred_region
              loop: start=0, step=1, limit=1
              $region49: #{midibert_back_forward.10} parent=47 // loop_pre_header
                _
              $region50: #{midibert_back_forward.10} parent=47 // loop_header
                %s634 = sphi 0, %s638
                %p635 = scmp.ge.s32.totalorder %s634, 1
                %s639 = sphi %s619, %s619
                %s640 = sphi %s628, %s628
              $region51: #{midibert_back_forward.10} parent=47 // loop_header_branch
                %637 = sbr.rel (%p635) target = $region55
              $region52: #{midibert_back_forward.10} parent=47 // loop_body
                %v641 = vld [vmem:[%s639] sm:$0xff]
                %642 = vst [vmem:[%s640] sm:$0xff] %v641
                %v643 = vld [vmem:[%s639 + $0x8] sm:$0xff]
                %644 = vst [vmem:[%s640 + $0x8] sm:$0xff] %v643
                %v645 = vld [vmem:[%s639 + $0x10] sm:$0xff]
                %646 = vst [vmem:[%s640 + $0x20] sm:$0xff] %v645
                %v647 = vld [vmem:[%s639 + $0x18] sm:$0xff]
                %648 = vst [vmem:[%s640 + $0x28] sm:$0xff] %v647
              $region53: #{midibert_back_forward.10} parent=47 // loop_footer
                %s638 = sadd.s32 1, %s634
              $region54: #{midibert_back_forward.10} parent=47 // loop_footer_branch
                %633 = sbr.rel target = $region50
              $region55: #{midibert_back_forward.10} parent=47 // loop_exit
                _
            $region48: #{midibert_back_forward.10} parent=43 // pred_fallthru
              _
            // Predicated region
            $region56: #{midibert_back_forward.10} parent=43 // pred_check
              _
            $region57: #{midibert_back_forward.10} parent=43 // pred_check_branch
              %650 = sbr.rel target = $region59
            $region58: #{midibert_back_forward.10} parent=43 // pred_region
              _
            $region59: #{midibert_back_forward.10} parent=43 // pred_fallthru
              _
          $region44: #{midibert_back_forward.10} parent=39 // pred_fallthru
            _
          %651 = vnop
        $region40: #{midibert_back_forward.10} parent=31 // pred_fallthru
          _
      $region32: #{midibert_back_forward.10} parent=5 // pred_fallthru
        _
      %p652 = scmp.le.s32.totalorder 2, %s12
      // Predicated region
      $region60: #{midibert_back_forward.10} parent=5 // pred_check
        %p653 = pneg %p652
      $region61: #{midibert_back_forward.10} parent=5 // pred_check_branch
        %655 = sbr.rel (%p653) target = $region63
      $region62: #{midibert_back_forward.10} parent=5 // pred_region
        %s656 = ssub.s32 %s12, 2
        // Predicated region
        $region64: #{midibert_back_forward.10} parent=62 // pred_check
          %p657 = pneg %p133
        $region65: #{midibert_back_forward.10} parent=62 // pred_check_branch
          %659 = sbr.rel (%p657) target = $region67
        $region66: #{midibert_back_forward.10} parent=62 // pred_region
          %s660 = sand.u32 %s118, 1
          %s661 = sand.u32 %s118, 1
          %s662 = smul.addr %s661, 32
          %s663 = scalar_lea.vmem [#allocation4], %s662
        $region67: #{midibert_back_forward.10} parent=62 // pred_fallthru
          _
      $region63: #{midibert_back_forward.10} parent=5 // pred_fallthru
        _
    $region6: #{midibert_back_forward.10} parent=1 // loop_footer
      %s16 = sadd.s32 1, %s12
    $region7: #{midibert_back_forward.10} parent=1 // loop_footer_branch
      %11 = sbr.rel target = $region3
    $region8: #{midibert_back_forward.10} parent=1 // loop_exit
      _
    %664 = vsyncpa [#allocation3], 1
    %s665 = scalar_lea.sflag [#allocation3], 1
    %666 = vsyncpa %s665, 1

// kernel: midibert_back_forward.11
$region0: #{midibert_back_forward.11}
  #allocation0 [shape = 'u32[]', space=smem, size = 0x4, offset = 0x4, fixed_abs, tag = 'smem constant byte address 0x4 - core index']
  #allocation1 [shape = 'u32[72,128]{1,0:T(1,128)}', space=vmem, size = 0x9000, scoped, tag = 'internal scratch']
  %s0 = inlined_call_operand.vmem [shape: f32[16,512], index: 0, kind: input, shape index: {}]
  %s1 = inlined_call_operand.hbm [shape: bf16[512,256], index: 1, kind: input, shape index: {}]
  %s2 = inlined_call_operand.vmem [shape: f32[1,256], index: 2, kind: input, shape index: {}]
  %s3 = inlined_call_operand.vmem [shape: f32[16,256], index: 3, kind: input, shape index: {}]
  %s4 = inlined_call_operand.vmem [shape: f32[1,256], index: 4, kind: input, shape index: {}]
  %s5 = inlined_call_operand.vmem [shape: f32[1,256], index: 5, kind: input, shape index: {}]
  %s6 = inlined_call_operand.vmem [shape: f32[16,256], index: 6, kind: output, shape index: {}]
  %s7 = sld [smem:[#allocation0]]
  $region61: #{midibert_back_forward.11} parent=0
    _
  %s9 = ssub.s32 1, %s7
  %s10 = scalar_select 0, %s9, %s7
  $region1: #{midibert_back_forward.11} parent=0
    #allocation2 [shape = 'u8[262144]{0}', space=vmem, size = 0x40000, scoped, tag = 'input window, operand 1, single buffered']
    #allocation3 [shape = 's32[2]{0}', space=sflag, size = 0x8, scoped, tag = 'scoped memory for midibert_back_forward.11']
    %11 = vsyncpa [#allocation3], 0
    loop: start=0, step=1, limit=4
    $region2: #{midibert_back_forward.11} parent=1 // loop_pre_header
      _
    $region3: #{midibert_back_forward.11} parent=1 // loop_header
      %s13 = sphi 0, %s17
      %p14 = scmp.ge.s32.totalorder %s13, 4
      %s20 = sphi 0, %s32
      %s21 = sphi 0, %s28
      %s22 = sphi 0, %s20
      %s23 = sphi 0, %s21
      %s24 = sphi 0, %s22
      %s25 = sphi 0, %s23
      %s35 = sphi 0, %s37
      %s38 = sphi 0, %s35
      %s39 = sphi 0, %s38
      %s55 = sphi 0, %s39
      %s61 = sphi 0, %s63
      %s64 = sphi 0, %s61
      %s65 = sphi 0, %s64
      %s81 = sphi 0, %s65
      %s87 = sphi 0, %s89
      %s90 = sphi 0, %s87
      %s91 = sphi 0, %s90
      %s107 = sphi 0, %s91
      %s115 = sphi 0, %s117
      %s118 = sphi 0, %s115
      %s119 = sphi 0, %s118
      %s135 = sphi 0, %s119
      %s141 = sphi 0, %s143
      %s144 = sphi 0, %s141
      %s145 = sphi 0, %s144
      %s161 = sphi 0, %s145
      %s167 = sphi 0, %s169
      %s170 = sphi 0, %s167
      %s171 = sphi 0, %s170
      %s187 = sphi 0, %s171
      %s195 = sphi 0, %s197
      %s198 = sphi 0, %s195
      %s199 = sphi 0, %s198
      %s215 = sphi 0, %s199
    $region4: #{midibert_back_forward.11} parent=1 // loop_header_branch
      %16 = sbr.rel (%p14) target = $region8
    $region5: #{midibert_back_forward.11} parent=1 // loop_body
      %s18 = ssub.s32 %s13, 1
      %s19 = ssub.s32 %s13, 2
      %s26 = sadd.s32 1, %s21
      %p27 = scmp.ge.s32.totalorder %s26, 1
      %s28 = scalar_select %p27, 0, %s26
      %s29 = sadd.s32 1, %s20
      %s30 = scalar_select %p27, %s29, %s20
      %p31 = scmp.ge.s32.totalorder %s30, 2
      %s32 = scalar_select %p31, 0, %s30
      %s33 = ssub.s32 %s20, %s32
      %p34 = scmp.eq.s32.totalorder %s33, 0
      %s36 = sadd.s32 %s35, 1
      %s37 = scalar_select %p34, %s35, %s36
      %p40 = pneg %p34
      %p41 = scmp.eq.s32.totalorder %s13, 1
      %p42 = por %p40, %p41
      %p43 = scmp.ne.s32.totalorder %s35, %s38
      %p44 = scmp.eq.s32.totalorder %s13, 0
      %p45 = por %p43, %p44
      %p46 = scmp.ne.s32.totalorder %s35, %s38
      %p47 = scmp.eq.s32.totalorder %s18, 1
      %p48 = por %p46, %p47
      %p49 = scmp.ne.s32.totalorder %s38, %s39
      %p50 = scmp.eq.s32.totalorder %s18, 0
      %p51 = por %p49, %p50
      %p52 = scmp.ne.s32.totalorder %s38, %s39
      %p53 = scmp.eq.s32.totalorder %s19, 1
      %p54 = por %p52, %p53
      %p56 = scmp.ne.s32.totalorder %s39, %s55
      %p57 = scmp.eq.s32.totalorder %s19, 0
      %p58 = por %p56, %p57
      %s59 = ssub.s32 %s21, %s28
      %p60 = scmp.eq.s32.totalorder %s59, 0
      %s62 = sadd.s32 %s61, 1
      %s63 = scalar_select %p60, %s61, %s62
      %p66 = pneg %p60
      %p67 = scmp.eq.s32.totalorder %s13, 1
      %p68 = por %p66, %p67
      %p69 = scmp.ne.s32.totalorder %s61, %s64
      %p70 = scmp.eq.s32.totalorder %s13, 0
      %p71 = por %p69, %p70
      %p72 = scmp.ne.s32.totalorder %s61, %s64
      %p73 = scmp.eq.s32.totalorder %s18, 1
      %p74 = por %p72, %p73
      %p75 = scmp.ne.s32.totalorder %s64, %s65
      %p76 = scmp.eq.s32.totalorder %s18, 0
      %p77 = por %p75, %p76
      %p78 = scmp.ne.s32.totalorder %s64, %s65
      %p79 = scmp.eq.s32.totalorder %s19, 1
      %p80 = por %p78, %p79
      %p82 = scmp.ne.s32.totalorder %s65, %s81
      %p83 = scmp.eq.s32.totalorder %s19, 0
      %p84 = por %p82, %p83
      %s85 = ssub.s32 %s21, %s28
      %p86 = scmp.eq.s32.totalorder %s85, 0
      %s88 = sadd.s32 %s87, 1
      %s89 = scalar_select %p86, %s87, %s88
      %p92 = pneg %p86
      %p93 = scmp.eq.s32.totalorder %s13, 1
      %p94 = por %p92, %p93
      %p95 = scmp.ne.s32.totalorder %s87, %s90
      %p96 = scmp.eq.s32.totalorder %s13, 0
      %p97 = por %p95, %p96
      %p98 = scmp.ne.s32.totalorder %s87, %s90
      %p99 = scmp.eq.s32.totalorder %s18, 1
      %p100 = por %p98, %p99
      %p101 = scmp.ne.s32.totalorder %s90, %s91
      %p102 = scmp.eq.s32.totalorder %s18, 0
      %p103 = por %p101, %p102
      %p104 = scmp.ne.s32.totalorder %s90, %s91
      %p105 = scmp.eq.s32.totalorder %s19, 1
      %p106 = por %p104, %p105
      %p108 = scmp.ne.s32.totalorder %s91, %s107
      %p109 = scmp.eq.s32.totalorder %s19, 0
      %p110 = por %p108, %p109
      %s111 = ssub.s32 %s20, %s32
      %s112 = ssub.s32 %s21, %s28
      %s113 = sor.u32 %s111, %s112
      %p114 = scmp.eq.s32.totalorder %s113, 0
      %s116 = sadd.s32 %s115, 1
      %s117 = scalar_select %p114, %s115, %s116
      %p120 = pneg %p114
      %p121 = scmp.eq.s32.totalorder %s13, 1
      %p122 = por %p120, %p121
      %p123 = scmp.ne.s32.totalorder %s115, %s118
      %p124 = scmp.eq.s32.totalorder %s13, 0
      %p125 = por %p123, %p124
      %p126 = scmp.ne.s32.totalorder %s115, %s118
      %p127 = scmp.eq.s32.totalorder %s18, 1
      %p128 = por %p126, %p127
      %p129 = scmp.ne.s32.totalorder %s118, %s119
      %p130 = scmp.eq.s32.totalorder %s18, 0
      %p131 = por %p129, %p130
      %p132 = scmp.ne.s32.totalorder %s118, %s119
      %p133 = scmp.eq.s32.totalorder %s19, 1
      %p134 = por %p132, %p133
      %p136 = scmp.ne.s32.totalorder %s119, %s135
      %p137 = scmp.eq.s32.totalorder %s19, 0
      %p138 = por %p136, %p137
      %s139 = ssub.s32 %s21, %s28
      %p140 = scmp.eq.s32.totalorder %s139, 0
      %s142 = sadd.s32 %s141, 1
      %s143 = scalar_select %p140, %s141, %s142
      %p146 = pneg %p140
      %p147 = scmp.eq.s32.totalorder %s13, 1
      %p148 = por %p146, %p147
      %p149 = scmp.ne.s32.totalorder %s141, %s144
      %p150 = scmp.eq.s32.totalorder %s13, 0
      %p151 = por %p149, %p150
      %p152 = scmp.ne.s32.totalorder %s141, %s144
      %p153 = scmp.eq.s32.totalorder %s18, 1
      %p154 = por %p152, %p153
      %p155 = scmp.ne.s32.totalorder %s144, %s145
      %p156 = scmp.eq.s32.totalorder %s18, 0
      %p157 = por %p155, %p156
      %p158 = scmp.ne.s32.totalorder %s144, %s145
      %p159 = scmp.eq.s32.totalorder %s19, 1
      %p160 = por %p158, %p159
      %p162 = scmp.ne.s32.totalorder %s145, %s161
      %p163 = scmp.eq.s32.totalorder %s19, 0
      %p164 = por %p162, %p163
      %s165 = ssub.s32 %s21, %s28
      %p166 = scmp.eq.s32.totalorder %s165, 0
      %s168 = sadd.s32 %s167, 1
      %s169 = scalar_select %p166, %s167, %s168
      %p172 = pneg %p166
      %p173 = scmp.eq.s32.totalorder %s13, 1
      %p174 = por %p172, %p173
      %p175 = scmp.ne.s32.totalorder %s167, %s170
      %p176 = scmp.eq.s32.totalorder %s13, 0
      %p177 = por %p175, %p176
      %p178 = scmp.ne.s32.totalorder %s167, %s170
      %p179 = scmp.eq.s32.totalorder %s18, 1
      %p180 = por %p178, %p179
      %p181 = scmp.ne.s32.totalorder %s170, %s171
      %p182 = scmp.eq.s32.totalorder %s18, 0
      %p183 = por %p181, %p182
      %p184 = scmp.ne.s32.totalorder %s170, %s171
      %p185 = scmp.eq.s32.totalorder %s19, 1
      %p186 = por %p184, %p185
      %p188 = scmp.ne.s32.totalorder %s171, %s187
      %p189 = scmp.eq.s32.totalorder %s19, 0
      %p190 = por %p188, %p189
      %s191 = ssub.s32 %s20, %s32
      %s192 = ssub.s32 %s21, %s28
      %s193 = sor.u32 %s191, %s192
      %p194 = scmp.eq.s32.totalorder %s193, 0
      %s196 = sadd.s32 %s195, 1
      %s197 = scalar_select %p194, %s195, %s196
      %p200 = pneg %p194
      %p201 = scmp.eq.s32.totalorder %s13, 1
      %p202 = por %p200, %p201
      %p203 = scmp.ne.s32.totalorder %s195, %s198
      %p204 = scmp.eq.s32.totalorder %s13, 0
      %p205 = por %p203, %p204
      %p206 = scmp.ne.s32.totalorder %s195, %s198
      %p207 = scmp.eq.s32.totalorder %s18, 1
      %p208 = por %p206, %p207
      %p209 = scmp.ne.s32.totalorder %s198, %s199
      %p210 = scmp.eq.s32.totalorder %s18, 0
      %p211 = por %p209, %p210
      %p212 = scmp.ne.s32.totalorder %s198, %s199
      %p213 = scmp.eq.s32.totalorder %s19, 1
      %p214 = por %p212, %p213
      %p216 = scmp.ne.s32.totalorder %s199, %s215
      %p217 = scmp.eq.s32.totalorder %s19, 0
      %p218 = por %p216, %p217
      %p219 = scmp.le.s32.totalorder 1, %s13
      %p220 = scmp.lt.s32.totalorder %s13, 3
      %p221 = pnand %p219, %p220
      %p222 = pneg %p221
      // Predicated region
      $region9: #{midibert_back_forward.11} parent=5 // pred_check
        _
      $region10: #{midibert_back_forward.11} parent=5 // pred_check_branch
        %224 = sbr.rel (%p221) target = $region12
      $region11: #{midibert_back_forward.11} parent=5 // pred_region
        %s225 = ssub.s32 %s13, 1
        // Predicated region
        $region13: #{midibert_back_forward.11} parent=11 // pred_check
          %p226 = pneg %p77
        $region14: #{midibert_back_forward.11} parent=11 // pred_check_branch
          %228 = sbr.rel (%p226) target = $region16
        $region15: #{midibert_back_forward.11} parent=11 // pred_region
          %s229 = smul.u32 2, %s23
          %231 = vsyncadd [#allocation3], 0
          %s232 = smul.addr %s229, 4
          %s233 = scalar_lea.hbm %s1, %s232
          %s234 = sshll.u32 %s233, 4
          %s235 = int_to_ptr.hbm [resolvable:$true] %s234
          %s236 = sshll.u32 [#allocation2], 4
          %s237 = int_to_ptr.vmem [resolvable:$true] %s236
          %242 = dma.hbm_to_vmem [thread:$0]  %s235, 8192, %s237, [#allocation3], 128, 128, 8
        $region16: #{midibert_back_forward.11} parent=11 // pred_fallthru
          _
        // Predicated region
        $region17: #{midibert_back_forward.11} parent=11 // pred_check
          %p243 = pneg %p103
        $region18: #{midibert_back_forward.11} parent=11 // pred_check_branch
          %245 = sbr.rel (%p243) target = $region20
        $region19: #{midibert_back_forward.11} parent=11 // pred_region
          %s246 = smul.u32 2, %s23
          %p247 = scmp.lt.s32.totalorder %s246, 1
          %s248 = scalar_select %p247, %s246, 1
          %s249 = scalar_lea.vmem %s2, %s248
          %s250 = smul.u32 2, %s23
        $region20: #{midibert_back_forward.11} parent=11 // pred_fallthru
          _
        // Predicated region
        $region21: #{midibert_back_forward.11} parent=11 // pred_check
          %p251 = pneg %p157
        $region22: #{midibert_back_forward.11} parent=11 // pred_check_branch
          %253 = sbr.rel (%p251) target = $region24
        $region23: #{midibert_back_forward.11} parent=11 // pred_region
          %s254 = smul.u32 2, %s23
          %p255 = scmp.lt.s32.totalorder %s254, 1
          %s256 = scalar_select %p255, %s254, 1
          %s257 = scalar_lea.vmem %s4, %s256
          %s258 = smul.u32 2, %s23
        $region24: #{midibert_back_forward.11} parent=11 // pred_fallthru
          _
        // Predicated region
        $region25: #{midibert_back_forward.11} parent=11 // pred_check
          %p259 = pneg %p183
        $region26: #{midibert_back_forward.11} parent=11 // pred_check_branch
          %261 = sbr.rel (%p259) target = $region28
        $region27: #{midibert_back_forward.11} parent=11 // pred_region
          %s262 = smul.u32 2, %s23
          %p263 = scmp.lt.s32.totalorder %s262, 1
          %s264 = scalar_select %p263, %s262, 1
          %s265 = scalar_lea.vmem %s5, %s264
          %s266 = smul.u32 2, %s23
        $region28: #{midibert_back_forward.11} parent=11 // pred_fallthru
          _
      $region12: #{midibert_back_forward.11} parent=5 // pred_fallthru
        _
      %p267 = scmp.lt.s32.totalorder %s13, 2
      // Predicated region
      $region29: #{midibert_back_forward.11} parent=5 // pred_check
        %p268 = pneg %p267
      $region30: #{midibert_back_forward.11} parent=5 // pred_check_branch
        %270 = sbr.rel (%p268) target = $region32
      $region31: #{midibert_back_forward.11} parent=5 // pred_region
        // Predicated region
        $region33: #{midibert_back_forward.11} parent=31 // pred_check
          %p271 = pneg %p45
        $region34: #{midibert_back_forward.11} parent=31 // pred_check_branch
          %273 = sbr.rel (%p271) target = $region36
        $region35: #{midibert_back_forward.11} parent=31 // pred_region
          %p274 = scmp.lt.s32.totalorder %s20, 1
          %s275 = scalar_select %p274, %s20, 1
          %s276 = smul.addr %s275, 4
          %s277 = smul.addr %s276, 8
          %s278 = scalar_lea.vmem %s0, %s277
        $region36: #{midibert_back_forward.11} parent=31 // pred_fallthru
          _
        // Predicated region
        $region37: #{midibert_back_forward.11} parent=31 // pred_check
          %p279 = pneg %p125
        $region38: #{midibert_back_forward.11} parent=31 // pred_check_branch
          %281 = sbr.rel (%p279) target = $region40
        $region39: #{midibert_back_forward.11} parent=31 // pred_region
          %s282 = smul.u32 2, %s21
          %p283 = scmp.lt.s32.totalorder %s20, 1
          %s284 = scalar_select %p283, %s20, 1
          %p285 = scmp.lt.s32.totalorder %s282, 1
          %s286 = scalar_select %p285, %s282, 1
          %s287 = smul.addr %s284, 2
          %s288 = sadd.s32 %s286, %s287
          %s289 = smul.addr %s288, 8
          %s290 = scalar_lea.vmem %s3, %s289
          %s291 = smul.u32 2, %s21
        $region40: #{midibert_back_forward.11} parent=31 // pred_fallthru
          _
      $region32: #{midibert_back_forward.11} parent=5 // pred_fallthru
        _
      %p292 = scmp.le.s32.totalorder 1, %s13
      %p293 = scmp.lt.s32.totalorder %s13, 3
      %p294 = pnand %p292, %p293
      %p295 = pneg %p294
      // Predicated region
      $region41: #{midibert_back_forward.11} parent=5 // pred_check
        _
      $region42: #{midibert_back_forward.11} parent=5 // pred_check_branch
        %297 = sbr.rel (%p294) target = $region44
      $region43: #{midibert_back_forward.11} parent=5 // pred_region
        %s298 = ssub.s32 %s13, 1
        // Predicated region
        $region45: #{midibert_back_forward.11} parent=43 // pred_check
          %p299 = pneg %p77
        $region46: #{midibert_back_forward.11} parent=43 // pred_check_branch
          %301 = sbr.rel (%p299) target = $region48
        $region47: #{midibert_back_forward.11} parent=43 // pred_region
          %303 = dma.done [#allocation3], 8192
        $region48: #{midibert_back_forward.11} parent=43 // pred_fallthru
          _
        %p304 = scmp.lt.s32.totalorder %s22, 1
        %s305 = scalar_select %p304, %s22, 1
        %s306 = smul.addr %s305, 4
        %s307 = smul.addr %s306, 8
        %s308 = scalar_lea.vmem %s0, %s307
        %p309 = pneg %p51
        %p310 = pneg %p48
        %p311 = pneg %p77
        %p312 = pneg %p74
        %s313 = smul.u32 2, %s23
        %p314 = scmp.lt.s32.totalorder %s313, 1
        %s315 = scalar_select %p314, %s313, 1
        %s316 = scalar_lea.vmem %s2, %s315
        %p317 = pneg %p103
        %p318 = pneg %p100
        %s319 = smul.u32 2, %s23
        %p320 = scmp.lt.s32.totalorder %s22, 1
        %s321 = scalar_select %p320, %s22, 1
        %p322 = scmp.lt.s32.totalorder %s319, 1
        %s323 = scalar_select %p322, %s319, 1
        %s324 = smul.addr %s321, 2
        %s325 = sadd.s32 %s323, %s324
        %s326 = smul.addr %s325, 8
        %s327 = scalar_lea.vmem %s3, %s326
        %p328 = pneg %p131
        %p329 = pneg %p128
        %s330 = smul.u32 2, %s23
        %p331 = scmp.lt.s32.totalorder %s330, 1
        %s332 = scalar_select %p331, %s330, 1
        %s333 = scalar_lea.vmem %s4, %s332
        %p334 = pneg %p157
        %p335 = pneg %p154
        %s336 = smul.u32 2, %s23
        %p337 = scmp.lt.s32.totalorder %s336, 1
        %s338 = scalar_select %p337, %s336, 1
        %s339 = scalar_lea.vmem %s5, %s338
        %p340 = pneg %p183
        %p341 = pneg %p180
        %p342 = pneg %p211
        %p343 = pneg %p208
        %s344 = smul.u32 2, %s23
        %p345 = scmp.lt.s32.totalorder %s22, 1
        %s346 = scalar_select %p345, %s22, 1
        %p347 = scmp.lt.s32.totalorder %s344, 1
        %s348 = scalar_select %p347, %s344, 1
        %s349 = smul.addr %s346, 2
        %s350 = sadd.s32 %s348, %s349
        %s351 = smul.addr %s350, 8
        %s352 = scalar_lea.vmem %s6, %s351
        %p353 = scmp.lt.s32.totalorder %s22, 1
        %s354 = scalar_select %p353, %s22, 1
        %s355 = smul.addr %s354, 4
        %s356 = smul.addr %s355, 8
        %s357 = scalar_lea.vmem %s0, %s356
        %s358 = smul.u32 2, %s23
        %s359 = smul.u32 2, %s23
        %p360 = scmp.lt.s32.totalorder %s359, 1
        %s361 = scalar_select %p360, %s359, 1
        %s362 = scalar_lea.vmem %s2, %s361
        %s363 = smul.u32 2, %s23
        %s364 = smul.u32 2, %s23
        %p365 = scmp.lt.s32.totalorder %s22, 1
        %s366 = scalar_select %p365, %s22, 1
        %p367 = scmp.lt.s32.totalorder %s364, 1
        %s368 = scalar_select %p367, %s364, 1
        %s369 = smul.addr %s366, 2
        %s370 = sadd.s32 %s368, %s369
        %s371 = smul.addr %s370, 8
        %s372 = scalar_lea.vmem %s3, %s371
        %s373 = smul.u32 2, %s23
        %s374 = smul.u32 2, %s23
        %p375 = scmp.lt.s32.totalorder %s374, 1
        %s376 = scalar_select %p375, %s374, 1
        %s377 = scalar_lea.vmem %s4, %s376
        %s378 = smul.u32 2, %s23
        %s379 = smul.u32 2, %s23
        %p380 = scmp.lt.s32.totalorder %s379, 1
        %s381 = scalar_select %p380, %s379, 1
        %s382 = scalar_lea.vmem %s5, %s381
        %s383 = smul.u32 2, %s23
        %s384 = smul.u32 2, %s23
        %p385 = scmp.lt.s32.totalorder %s22, 1
        %s386 = scalar_select %p385, %s22, 1
        %p387 = scmp.lt.s32.totalorder %s384, 1
        %s388 = scalar_select %p387, %s384, 1
        %s389 = smul.addr %s386, 2
        %s390 = sadd.s32 %s388, %s389
        %s391 = smul.addr %s390, 8
        %s392 = scalar_lea.vmem %s6, %s391
        %s393 = smul.u32 2, %s23
        %v394 = vld [vmem:[%s357] sm:$0xff]
        %v395 = vld [vmem:[%s357 + $0x8] sm:$0xff]
        %v396 = vld [vmem:[%s357 + $0x10] sm:$0xff]
        %v397 = vld [vmem:[%s357 + $0x18] sm:$0xff]
        %v398 = vpack.c.bf16 %v394, %v394
        %v399 = vpack.c.bf16 %v395, %v395
        %v400 = vpack.c.bf16 %v396, %v396
        %v401 = vpack.c.bf16 %v397, %v397
        %v402 = vld [vmem:[#allocation2] sm:$0xff]
        %v403 = vld [vmem:[#allocation2 + $0x8] sm:$0xff]
        %v404 = vld [vmem:[#allocation2 + $0x10] sm:$0xff]
        %v405 = vld [vmem:[#allocation2 + $0x18] sm:$0xff]
        %v406 = vld [vmem:[#allocation2 + $0x20] sm:$0xff]
        %v407 = vld [vmem:[#allocation2 + $0x28] sm:$0xff]
        %v408 = vld [vmem:[#allocation2 + $0x30] sm:$0xff]
        %v409 = vld [vmem:[#allocation2 + $0x38] sm:$0xff]
        %v410 = vld [vmem:[#allocation2 + $0x40] sm:$0xff]
        %v411 = vld [vmem:[#allocation2 + $0x48] sm:$0xff]
        %v412 = vld [vmem:[#allocation2 + $0x50] sm:$0xff]
        %v413 = vld [vmem:[#allocation2 + $0x58] sm:$0xff]
        %v414 = vld [vmem:[#allocation2 + $0x60] sm:$0xff]
        %v415 = vld [vmem:[#allocation2 + $0x68] sm:$0xff]
        %v416 = vld [vmem:[#allocation2 + $0x70] sm:$0xff]
        %v417 = vld [vmem:[#allocation2 + $0x78] sm:$0xff]
        %v418 = vld [vmem:[#allocation2 + $0x80] sm:$0xff]
        %v419 = vld [vmem:[#allocation2 + $0x88] sm:$0xff]
        %v420 = vld [vmem:[#allocation2 + $0x90] sm:$0xff]
        %v421 = vld [vmem:[#allocation2 + $0x98] sm:$0xff]
        %v422 = vld [vmem:[#allocation2 + $0xa0] sm:$0xff]
        %v423 = vld [vmem:[#allocation2 + $0xa8] sm:$0xff]
        %v424 = vld [vmem:[#allocation2 + $0xb0] sm:$0xff]
        %v425 = vld [vmem:[#allocation2 + $0xb8] sm:$0xff]
        %v426 = vld [vmem:[#allocation2 + $0xc0] sm:$0xff]
        %v427 = vld [vmem:[#allocation2 + $0xc8] sm:$0xff]
        %v428 = vld [vmem:[#allocation2 + $0xd0] sm:$0xff]
        %v429 = vld [vmem:[#allocation2 + $0xd8] sm:$0xff]
        %v430 = vld [vmem:[#allocation2 + $0xe0] sm:$0xff]
        %v431 = vld [vmem:[#allocation2 + $0xe8] sm:$0xff]
        %v432 = vld [vmem:[#allocation2 + $0xf0] sm:$0xff]
        %v433 = vld [vmem:[#allocation2 + $0xf8] sm:$0xff]
        %v434 = vld [vmem:[#allocation2 + $0x100] sm:$0xff]
        %v435 = vld [vmem:[#allocation2 + $0x108] sm:$0xff]
        %v436 = vld [vmem:[#allocation2 + $0x110] sm:$0xff]
        %v437 = vld [vmem:[#allocation2 + $0x118] sm:$0xff]
        %v438 = vld [vmem:[#allocation2 + $0x120] sm:$0xff]
        %v439 = vld [vmem:[#allocation2 + $0x128] sm:$0xff]
        %v440 = vld [vmem:[#allocation2 + $0x130] sm:$0xff]
        %v441 = vld [vmem:[#allocation2 + $0x138] sm:$0xff]
        %v442 = vld [vmem:[#allocation2 + $0x140] sm:$0xff]
        %v443 = vld [vmem:[#allocation2 + $0x148] sm:$0xff]
        %v444 = vld [vmem:[#allocation2 + $0x150] sm:$0xff]
        %v445 = vld [vmem:[#allocation2 + $0x158] sm:$0xff]
        %v446 = vld [vmem:[#allocation2 + $0x160] sm:$0xff]
        %v447 = vld [vmem:[#allocation2 + $0x168] sm:$0xff]
        %v448 = vld [vmem:[#allocation2 + $0x170] sm:$0xff]
        %v449 = vld [vmem:[#allocation2 + $0x178] sm:$0xff]
        %v450 = vld [vmem:[#allocation2 + $0x180] sm:$0xff]
        %v451 = vld [vmem:[#allocation2 + $0x188] sm:$0xff]
        %v452 = vld [vmem:[#allocation2 + $0x190] sm:$0xff]
        %v453 = vld [vmem:[#allocation2 + $0x198] sm:$0xff]
        %v454 = vld [vmem:[#allocation2 + $0x1a0] sm:$0xff]
        %v455 = vld [vmem:[#allocation2 + $0x1a8] sm:$0xff]
        %v456 = vld [vmem:[#allocation2 + $0x1b0] sm:$0xff]
        %v457 = vld [vmem:[#allocation2 + $0x1b8] sm:$0xff]
        %v458 = vld [vmem:[#allocation2 + $0x1c0] sm:$0xff]
        %v459 = vld [vmem:[#allocation2 + $0x1c8] sm:$0xff]
        %v460 = vld [vmem:[#allocation2 + $0x1d0] sm:$0xff]
        %v461 = vld [vmem:[#allocation2 + $0x1d8] sm:$0xff]
        %v462 = vld [vmem:[#allocation2 + $0x1e0] sm:$0xff]
        %v463 = vld [vmem:[#allocation2 + $0x1e8] sm:$0xff]
        %v464 = vld [vmem:[#allocation2 + $0x1f0] sm:$0xff]
        %v465 = vld [vmem:[#allocation2 + $0x1f8] sm:$0xff]
        %v466 = vld [vmem:[%s362] sm:$0x3]
        %v468 = vperm.slane %v466, 0
        %v469 = vperm.slane %v466, 1
        %v536 = vunpack.c.l.b16 %v402
        %v537 = vunpack.c.h.b16 %v402
        %v538 = vunpack.c.l.b16 %v403
        %v539 = vunpack.c.h.b16 %v403
        %v540 = vunpack.c.l.b16 %v404
        %v541 = vunpack.c.h.b16 %v404
        %v542 = vunpack.c.l.b16 %v405
        %v543 = vunpack.c.h.b16 %v405
        %v544 = vunpack.c.l.b16 %v406
        %v545 = vunpack.c.h.b16 %v406
        %v546 = vunpack.c.l.b16 %v407
        %v547 = vunpack.c.h.b16 %v407
        %v548 = vunpack.c.l.b16 %v408
        %v549 = vunpack.c.h.b16 %v408
        %v550 = vunpack.c.l.b16 %v409
        %v551 = vunpack.c.h.b16 %v409
        %v552 = vunpack.c.l.b16 %v410
        %v553 = vunpack.c.h.b16 %v410
        %v554 = vunpack.c.l.b16 %v411
        %v555 = vunpack.c.h.b16 %v411
        %v556 = vunpack.c.l.b16 %v412
        %v557 = vunpack.c.h.b16 %v412
        %v558 = vunpack.c.l.b16 %v413
        %v559 = vunpack.c.h.b16 %v413
        %v560 = vunpack.c.l.b16 %v414
        %v561 = vunpack.c.h.b16 %v414
        %v562 = vunpack.c.l.b16 %v415
        %v563 = vunpack.c.h.b16 %v415
        %v564 = vunpack.c.l.b16 %v416
        %v565 = vunpack.c.h.b16 %v416
        %v566 = vunpack.c.l.b16 %v417
        %v567 = vunpack.c.h.b16 %v417
        %v568 = vunpack.c.l.b16 %v418
        %v569 = vunpack.c.h.b16 %v418
        %v570 = vunpack.c.l.b16 %v419
        %v571 = vunpack.c.h.b16 %v419
        %v572 = vunpack.c.l.b16 %v420
        %v573 = vunpack.c.h.b16 %v420
        %v574 = vunpack.c.l.b16 %v421
        %v575 = vunpack.c.h.b16 %v421
        %v576 = vunpack.c.l.b16 %v422
        %v577 = vunpack.c.h.b16 %v422
        %v578 = vunpack.c.l.b16 %v423
        %v579 = vunpack.c.h.b16 %v423
        %v580 = vunpack.c.l.b16 %v424
        %v581 = vunpack.c.h.b16 %v424
        %v582 = vunpack.c.l.b16 %v425
        %v583 = vunpack.c.h.b16 %v425
        %v584 = vunpack.c.l.b16 %v426
        %v585 = vunpack.c.h.b16 %v426
        %v586 = vunpack.c.l.b16 %v427
        %v587 = vunpack.c.h.b16 %v427
        %v588 = vunpack.c.l.b16 %v428
        %v589 = vunpack.c.h.b16 %v428
        %v590 = vunpack.c.l.b16 %v429
        %v591 = vunpack.c.h.b16 %v429
        %v592 = vunpack.c.l.b16 %v430
        %v593 = vunpack.c.h.b16 %v430
        %v594 = vunpack.c.l.b16 %v431
        %v595 = vunpack.c.h.b16 %v431
        %v596 = vunpack.c.l.b16 %v432
        %v597 = vunpack.c.h.b16 %v432
        %v598 = vunpack.c.l.b16 %v433
        %v599 = vunpack.c.h.b16 %v433
        %v600 = vunpack.c.l.b16 %v434
        %v601 = vunpack.c.h.b16 %v434
        %v602 = vunpack.c.l.b16 %v435
        %v603 = vunpack.c.h.b16 %v435
        %v604 = vunpack.c.l.b16 %v436
        %v605 = vunpack.c.h.b16 %v436
        %v606 = vunpack.c.l.b16 %v437
        %v607 = vunpack.c.h.b16 %v437
        %v608 = vunpack.c.l.b16 %v438
        %v609 = vunpack.c.h.b16 %v438
        %v610 = vunpack.c.l.b16 %v439
        %v611 = vunpack.c.h.b16 %v439
        %v612 = vunpack.c.l.b16 %v440
        %v613 = vunpack.c.h.b16 %v440
        %v614 = vunpack.c.l.b16 %v441
        %v615 = vunpack.c.h.b16 %v441
        %v616 = vunpack.c.l.b16 %v442
        %v617 = vunpack.c.h.b16 %v442
        %v618 = vunpack.c.l.b16 %v443
        %v619 = vunpack.c.h.b16 %v443
        %v620 = vunpack.c.l.b16 %v444
        %v621 = vunpack.c.h.b16 %v444
        %v622 = vunpack.c.l.b16 %v445
        %v623 = vunpack.c.h.b16 %v445
        %v624 = vunpack.c.l.b16 %v446
        %v625 = vunpack.c.h.b16 %v446
        %v626 = vunpack.c.l.b16 %v447
        %v627 = vunpack.c.h.b16 %v447
        %v628 = vunpack.c.l.b16 %v448
        %v629 = vunpack.c.h.b16 %v448
        %v630 = vunpack.c.l.b16 %v449
        %v631 = vunpack.c.h.b16 %v449
        %v632 = vunpack.c.l.b16 %v450
        %v633 = vunpack.c.h.b16 %v450
        %v634 = vunpack.c.l.b16 %v451
        %v635 = vunpack.c.h.b16 %v451
        %v636 = vunpack.c.l.b16 %v452
        %v637 = vunpack.c.h.b16 %v452
        %v638 = vunpack.c.l.b16 %v453
        %v639 = vunpack.c.h.b16 %v453
        %v640 = vunpack.c.l.b16 %v454
        %v641 = vunpack.c.h.b16 %v454
        %v642 = vunpack.c.l.b16 %v455
        %v643 = vunpack.c.h.b16 %v455
        %v644 = vunpack.c.l.b16 %v456
        %v645 = vunpack.c.h.b16 %v456
        %v646 = vunpack.c.l.b16 %v457
        %v647 = vunpack.c.h.b16 %v457
        %v648 = vunpack.c.l.b16 %v458
        %v649 = vunpack.c.h.b16 %v458
        %v650 = vunpack.c.l.b16 %v459
        %v651 = vunpack.c.h.b16 %v459
        %v652 = vunpack.c.l.b16 %v460
        %v653 = vunpack.c.h.b16 %v460
        %v654 = vunpack.c.l.b16 %v461
        %v655 = vunpack.c.h.b16 %v461
        %v656 = vunpack.c.l.b16 %v462
        %v657 = vunpack.c.h.b16 %v462
        %v658 = vunpack.c.l.b16 %v463
        %v659 = vunpack.c.h.b16 %v463
        %v660 = vunpack.c.l.b16 %v464
        %v661 = vunpack.c.h.b16 %v464
        %v662 = vunpack.c.l.b16 %v465
        %v663 = vunpack.c.h.b16 %v465
        %v664 = vpack.c.b16 %v538, %v536
        %v665 = vpack.c.b16 %v539, %v537
        %v666 = vpack.c.b16 %v542, %v540
        %v667 = vpack.c.b16 %v543, %v541
        %v668 = vpack.c.b16 %v546, %v544
        %v669 = vpack.c.b16 %v547, %v545
        %v670 = vpack.c.b16 %v550, %v548
        %v671 = vpack.c.b16 %v551, %v549
        %v672 = vpack.c.b16 %v554, %v552
        %v673 = vpack.c.b16 %v555, %v553
        %v674 = vpack.c.b16 %v558, %v556
        %v675 = vpack.c.b16 %v559, %v557
        %v676 = vpack.c.b16 %v562, %v560
        %v677 = vpack.c.b16 %v563, %v561
        %v678 = vpack.c.b16 %v566, %v564
        %v679 = vpack.c.b16 %v567, %v565
        %v680 = vpack.c.b16 %v570, %v568
        %v681 = vpack.c.b16 %v571, %v569
        %v682 = vpack.c.b16 %v574, %v572
        %v683 = vpack.c.b16 %v575, %v573
        %v684 = vpack.c.b16 %v578, %v576
        %v685 = vpack.c.b16 %v579, %v577
        %v686 = vpack.c.b16 %v582, %v580
        %v687 = vpack.c.b16 %v583, %v581
        %v688 = vpack.c.b16 %v586, %v584
        %v689 = vpack.c.b16 %v587, %v585
        %v690 = vpack.c.b16 %v590, %v588
        %v691 = vpack.c.b16 %v591, %v589
        %v692 = vpack.c.b16 %v594, %v592
        %v693 = vpack.c.b16 %v595, %v593
        %v694 = vpack.c.b16 %v598, %v596
        %v695 = vpack.c.b16 %v599, %v597
        %v696 = vpack.c.b16 %v602, %v600
        %v697 = vpack.c.b16 %v603, %v601
        %v698 = vpack.c.b16 %v606, %v604
        %v699 = vpack.c.b16 %v607, %v605
        %v700 = vpack.c.b16 %v610, %v608
        %v701 = vpack.c.b16 %v611, %v609
        %v702 = vpack.c.b16 %v614, %v612
        %v703 = vpack.c.b16 %v615, %v613
        %v704 = vpack.c.b16 %v618, %v616
        %v705 = vpack.c.b16 %v619, %v617
        %v706 = vpack.c.b16 %v622, %v620
        %v707 = vpack.c.b16 %v623, %v621
        %v708 = vpack.c.b16 %v626, %v624
        %v709 = vpack.c.b16 %v627, %v625
        %v710 = vpack.c.b16 %v630, %v628
        %v711 = vpack.c.b16 %v631, %v629
        %v712 = vpack.c.b16 %v634, %v632
        %v713 = vpack.c.b16 %v635, %v633
        %v714 = vpack.c.b16 %v638, %v636
        %v715 = vpack.c.b16 %v639, %v637
        %v716 = vpack.c.b16 %v642, %v640
        %v717 = vpack.c.b16 %v643, %v641
        %v718 = vpack.c.b16 %v646, %v644
        %v719 = vpack.c.b16 %v647, %v645
        %v720 = vpack.c.b16 %v650, %v648
        %v721 = vpack.c.b16 %v651, %v649
        %v722 = vpack.c.b16 %v654, %v652
        %v723 = vpack.c.b16 %v655, %v653
        %v724 = vpack.c.b16 %v658, %v656
        %v725 = vpack.c.b16 %v659, %v657
        %v726 = vpack.c.b16 %v662, %v660
        %v727 = vpack.c.b16 %v663, %v661
        %792 = vmatpush.bf16.msra.mxu0 %v678
        %793 = vmatpush.bf16.msra.mxu0 %v676
        %794 = vmatpush.bf16.msra.mxu0 %v674
        %795 = vmatpush.bf16.msra.mxu0 %v672
        %796 = vmatpush.bf16.msra.mxu0 %v670
        %797 = vmatpush.bf16.msra.mxu0 %v668
        %798 = vmatpush.bf16.msra.mxu0 %v666
        %799 = vmatpush.bf16.msra.mxu0 %v664
        %800 = vmatmul.bf16.gmra.mxu0 %v398
        %v801 = vpop.f32.mrf.mxu0
        %v802 = vadd.f32 %v468, %v801
        %v803 = vpop.f32.mrf.mxu0
        %804 = vdwg.mxu0
        %805 = vmatpush.bf16.msra.mxu0 %v694
        %806 = vmatpush.bf16.msra.mxu0 %v692
        %807 = vmatpush.bf16.msra.mxu0 %v690
        %808 = vmatpush.bf16.msra.mxu0 %v688
        %809 = vmatpush.bf16.msra.mxu0 %v686
        %810 = vmatpush.bf16.msra.mxu0 %v684
        %811 = vmatpush.bf16.msra.mxu0 %v682
        %812 = vmatpush.bf16.msra.mxu0 %v680
        %813 = vmatmul.bf16.gmra.mxu0 %v399
        %v814 = vpop.f32.mrf.mxu0
        %v815 = vadd.f32 %v802, %v814
        %v816 = vpop.f32.mrf.mxu0
        %817 = vdwg.mxu0
        %818 = vmatpush.bf16.msra.mxu0 %v710
        %819 = vmatpush.bf16.msra.mxu0 %v708
        %820 = vmatpush.bf16.msra.mxu0 %v706
        %821 = vmatpush.bf16.msra.mxu0 %v704
        %822 = vmatpush.bf16.msra.mxu0 %v702
        %823 = vmatpush.bf16.msra.mxu0 %v700
        %824 = vmatpush.bf16.msra.mxu0 %v698
        %825 = vmatpush.bf16.msra.mxu0 %v696
        %826 = vmatmul.bf16.gmra.mxu0 %v400
        %v827 = vpop.f32.mrf.mxu0
        %v828 = vadd.f32 %v815, %v827
        %v829 = vpop.f32.mrf.mxu0
        %830 = vdwg.mxu0
        %831 = vmatpush.bf16.msra.mxu0 %v726
        %832 = vmatpush.bf16.msra.mxu0 %v724
        %833 = vmatpush.bf16.msra.mxu0 %v722
        %834 = vmatpush.bf16.msra.mxu0 %v720
        %835 = vmatpush.bf16.msra.mxu0 %v718
        %836 = vmatpush.bf16.msra.mxu0 %v716
        %837 = vmatpush.bf16.msra.mxu0 %v714
        %838 = vmatpush.bf16.msra.mxu0 %v712
        %839 = vmatmul.bf16.gmra.mxu0 %v401
        %v840 = vpop.f32.mrf.mxu0
        %v841 = vadd.f32 %v828, %v840
        %v842 = vpop.f32.mrf.mxu0
        %843 = vdwg.mxu0
        %844 = vmatpush.bf16.msra.mxu0 %v679
        %845 = vmatpush.bf16.msra.mxu0 %v677
        %846 = vmatpush.bf16.msra.mxu0 %v675
        %847 = vmatpush.bf16.msra.mxu0 %v673
        %848 = vmatpush.bf16.msra.mxu0 %v671
        %849 = vmatpush.bf16.msra.mxu0 %v669
        %850 = vmatpush.bf16.msra.mxu0 %v667
        %851 = vmatpush.bf16.msra.mxu0 %v665
        %852 = vmatmul.bf16.gmra.mxu0 %v398
        %v853 = vpop.f32.mrf.mxu0
        %v854 = vadd.f32 %v469, %v853
        %v855 = vpop.f32.mrf.mxu0
        %856 = vdwg.mxu0
        %857 = vmatpush.bf16.msra.mxu0 %v695
        %858 = vmatpush.bf16.msra.mxu0 %v693
        %859 = vmatpush.bf16.msra.mxu0 %v691
        %860 = vmatpush.bf16.msra.mxu0 %v689
        %861 = vmatpush.bf16.msra.mxu0 %v687
        %862 = vmatpush.bf16.msra.mxu0 %v685
        %863 = vmatpush.bf16.msra.mxu0 %v683
        %864 = vmatpush.bf16.msra.mxu0 %v681
        %865 = vmatmul.bf16.gmra.mxu0 %v399
        %v866 = vpop.f32.mrf.mxu0
        %v867 = vadd.f32 %v854, %v866
        %v868 = vpop.f32.mrf.mxu0
        %869 = vdwg.mxu0
        %870 = vmatpush.bf16.msra.mxu0 %v711
        %871 = vmatpush.bf16.msra.mxu0 %v709
        %872 = vmatpush.bf16.msra.mxu0 %v707
        %873 = vmatpush.bf16.msra.mxu0 %v705
        %874 = vmatpush.bf16.msra.mxu0 %v703
        %875 = vmatpush.bf16.msra.mxu0 %v701
        %876 = vmatpush.bf16.msra.mxu0 %v699
        %877 = vmatpush.bf16.msra.mxu0 %v697
        %878 = vmatmul.bf16.gmra.mxu0 %v400
        %v879 = vpop.f32.mrf.mxu0
        %v880 = vadd.f32 %v867, %v879
        %v881 = vpop.f32.mrf.mxu0
        %882 = vdwg.mxu0
        %883 = vmatpush.bf16.msra.mxu0 %v727
        %884 = vmatpush.bf16.msra.mxu0 %v725
        %885 = vmatpush.bf16.msra.mxu0 %v723
        %886 = vmatpush.bf16.msra.mxu0 %v721
        %887 = vmatpush.bf16.msra.mxu0 %v719
        %888 = vmatpush.bf16.msra.mxu0 %v717
        %889 = vmatpush.bf16.msra.mxu0 %v715
        %890 = vmatpush.bf16.msra.mxu0 %v713
        %891 = vmatmul.bf16.gmra.mxu0 %v401
        %v892 = vpop.f32.mrf.mxu0
        %v893 = vadd.f32 %v880, %v892
        %v894 = vpop.f32.mrf.mxu0
        %895 = vdwg.mxu0
        %v896 = vld [vmem:[%s372] sm:$0xff]
        %v897 = vld [vmem:[%s372 + $0x8] sm:$0xff]
        %v898 = vadd.f32 %v841, %v896
        %v899 = vadd.f32 %v893, %v897
        %v900 = vld [vmem:[%s377] sm:$0x3]
        %v901 = vld [vmem:[%s382] sm:$0x3]
        %v902 = vadd.f32 %v898, %v899
        %903 = vadd.xlane.f32.xlu0 %v902
        %v904 = vpop.xlane.xlu0 %903
        %v905 = vrcp.pop 256.0
        %v906 = vmul.f32 256.0, %v905
        %v907 = vsub.f32 1.0, %v906
        %v908 = vmul.f32 %v905, %v907
        %v909 = vadd.f32 %v905, %v908
        %vm910 = vweird.f32 %v905
        %v911 = vsel %vm910, %v905, %v909
        %v912 = vmul.f32 %v904, %v911
        %v913 = vsub.f32 %v898, %v912
        %v914 = vsub.f32 %v899, %v912
        %v915 = vmul.f32 %v913, %v913
        %v916 = vmul.f32 %v914, %v914
        %v917 = vadd.f32 %v915, %v916
        %918 = vadd.xlane.f32.xlu0 %v917
        %v919 = vpop.xlane.xlu0 %918
        %v920 = vmul.f32 %v919, %v911
        %v921 = vadd.f32 %v920, 1e-12
        %v922 = vrsqrt.pop %v921
        %v923 = vmul.f32 %v922, %v921
        %v924 = vmul.f32 %v923, %v922
        %v925 = vmul.f32 0.5, %v924
        %v926 = vsub.f32 1.5, %v925
        %v927 = vmul.f32 %v922, %v926
        %vm928 = vweird.f32 %v921
        %vm929 = vweird.f32 %v922
        %vm930 = vmor %vm928, %vm929
        %v931 = vsel %vm930, %v922, %v927
        %v932 = vmul.f32 %v913, %v931
        %v933 = vmul.f32 %v914, %v931
        %v935 = vperm.slane %v900, 0
        %v936 = vperm.slane %v900, 1
        %v939 = vmul.f32 %v932, %v935
        %v940 = vmul.f32 %v933, %v936
        %v942 = vperm.slane %v901, 0
        %v943 = vperm.slane %v901, 1
        %v946 = vadd.f32 %v939, %v942
        %v947 = vadd.f32 %v940, %v943
        %948 = vst [vmem:[%s392] sm:$0xff] %v946
        %949 = vst [vmem:[%s392 + $0x8] sm:$0xff] %v947
        %s950 = smul.u32 2, %s23
        %p951 = scmp.lt.s32.totalorder %s22, 1
        %s952 = scalar_select %p951, %s22, 1
        %p953 = scmp.lt.s32.totalorder %s950, 1
        %s954 = scalar_select %p953, %s950, 1
        %s955 = smul.addr %s952, 2
        %s956 = sadd.s32 %s954, %s955
        %s957 = smul.addr %s956, 8
        %s958 = scalar_lea.vmem %s6, %s957
        // Predicated region
        $region49: #{midibert_back_forward.11} parent=43 // pred_check
          %p959 = pneg %p208
        $region50: #{midibert_back_forward.11} parent=43 // pred_check_branch
          %961 = sbr.rel (%p959) target = $region52
        $region51: #{midibert_back_forward.11} parent=43 // pred_region
          %s962 = smul.u32 2, %s23
        $region52: #{midibert_back_forward.11} parent=43 // pred_fallthru
          _
      $region44: #{midibert_back_forward.11} parent=5 // pred_fallthru
        _
      %p963 = scmp.le.s32.totalorder 2, %s13
      // Predicated region
      $region53: #{midibert_back_forward.11} parent=5 // pred_check
        %p964 = pneg %p963
      $region54: #{midibert_back_forward.11} parent=5 // pred_check_branch
        %966 = sbr.rel (%p964) target = $region56
      $region55: #{midibert_back_forward.11} parent=5 // pred_region
        %s967 = ssub.s32 %s13, 2
        // Predicated region
        $region57: #{midibert_back_forward.11} parent=55 // pred_check
          %p968 = pneg %p214
        $region58: #{midibert_back_forward.11} parent=55 // pred_check_branch
          %970 = sbr.rel (%p968) target = $region60
        $region59: #{midibert_back_forward.11} parent=55 // pred_region
          %s971 = smul.u32 2, %s25
          %p972 = scmp.lt.s32.totalorder %s24, 1
          %s973 = scalar_select %p972, %s24, 1
          %p974 = scmp.lt.s32.totalorder %s971, 1
          %s975 = scalar_select %p974, %s971, 1
          %s976 = smul.addr %s973, 2
          %s977 = sadd.s32 %s975, %s976
          %s978 = smul.addr %s977, 8
          %s979 = scalar_lea.vmem %s6, %s978
        $region60: #{midibert_back_forward.11} parent=55 // pred_fallthru
          _
      $region56: #{midibert_back_forward.11} parent=5 // pred_fallthru
        _
    $region6: #{midibert_back_forward.11} parent=1 // loop_footer
      %s17 = sadd.s32 1, %s13
    $region7: #{midibert_back_forward.11} parent=1 // loop_footer_branch
      %12 = sbr.rel target = $region3
    $region8: #{midibert_back_forward.11} parent=1 // loop_exit
      _
    %980 = vsyncpa [#allocation3], 1
    %s981 = scalar_lea.sflag [#allocation3], 1
    %982 = vsyncpa %s981, 1

// kernel: midibert_back_forward.12
$region0: #{midibert_back_forward.12}
  #allocation0 [shape = 'u32[]', space=smem, size = 0x4, offset = 0x4, fixed_abs, tag = 'smem constant byte address 0x4 - core index']
  #allocation1 [shape = 'u32[72,128]{1,0:T(1,128)}', space=vmem, size = 0x9000, scoped, tag = 'internal scratch']
  %s0 = inlined_call_operand.vmem [shape: f32[16,256], index: 0, kind: input, shape index: {}]
  %s1 = inlined_call_operand.hbm [shape: bf16[256,768], index: 1, kind: input, shape index: {}]
  %s2 = inlined_call_operand.vmem [shape: f32[1,768], index: 2, kind: input, shape index: {}]
  %s3 = inlined_call_operand.vmem [shape: bf16[16,768], index: 3, kind: output, shape index: {}]
  %s4 = sld [smem:[#allocation0]]
  $region71: #{midibert_back_forward.12} parent=0
    _
  %s6 = ssub.s32 1, %s4
  %s7 = scalar_select 0, %s6, %s4
  $region1: #{midibert_back_forward.12} parent=0
    #allocation2 [shape = 'u8[393216]{0}', space=vmem, size = 0x60000, scoped, tag = 'input window, operand 1']
    #allocation3 [shape = 's32[2]{0}', space=sflag, size = 0x8, scoped, tag = 'scoped memory for midibert_back_forward.12']
    #allocation4 [shape = 'u8[24576]{0}', space=vmem, size = 0x6000, scoped, tag = 'output window, operand 0']
    %8 = vsyncpa [#allocation3], 0
    %s9 = scalar_lea.sflag [#allocation3], 1
    %10 = vsyncpa %s9, 0
    loop: start=0, step=1, limit=4
    $region2: #{midibert_back_forward.12} parent=1 // loop_pre_header
      _
    $region3: #{midibert_back_forward.12} parent=1 // loop_header
      %s12 = sphi 0, %s16
      %p13 = scmp.ge.s32.totalorder %s12, 4
      %s19 = sphi 0, %s31
      %s20 = sphi 0, %s27
      %s21 = sphi 0, %s19
      %s22 = sphi 0, %s20
      %s23 = sphi 0, %s21
      %s24 = sphi 0, %s22
      %s34 = sphi 0, %s36
      %s37 = sphi 0, %s34
      %s38 = sphi 0, %s37
      %s54 = sphi 0, %s38
      %s60 = sphi 0, %s62
      %s63 = sphi 0, %s60
      %s64 = sphi 0, %s63
      %s80 = sphi 0, %s64
      %s86 = sphi 0, %s88
      %s89 = sphi 0, %s86
      %s90 = sphi 0, %s89
      %s106 = sphi 0, %s90
      %s114 = sphi 0, %s116
      %s117 = sphi 0, %s114
      %s118 = sphi 0, %s117
      %s134 = sphi 0, %s118
    $region4: #{midibert_back_forward.12} parent=1 // loop_header_branch
      %15 = sbr.rel (%p13) target = $region8
    $region5: #{midibert_back_forward.12} parent=1 // loop_body
      %s17 = ssub.s32 %s12, 1
      %s18 = ssub.s32 %s12, 2
      %s25 = sadd.s32 1, %s20
      %p26 = scmp.ge.s32.totalorder %s25, 2
      %s27 = scalar_select %p26, 0, %s25
      %s28 = sadd.s32 1, %s19
      %s29 = scalar_select %p26, %s28, %s19
      %p30 = scmp.ge.s32.totalorder %s29, 1
      %s31 = scalar_select %p30, 0, %s29
      %s32 = ssub.s32 %s19, %s31
      %p33 = scmp.eq.s32.totalorder %s32, 0
      %s35 = sadd.s32 %s34, 1
      %s36 = scalar_select %p33, %s34, %s35
      %p39 = pneg %p33
      %p40 = scmp.eq.s32.totalorder %s12, 1
      %p41 = por %p39, %p40
      %p42 = scmp.ne.s32.totalorder %s34, %s37
      %p43 = scmp.eq.s32.totalorder %s12, 0
      %p44 = por %p42, %p43
      %p45 = scmp.ne.s32.totalorder %s34, %s37
      %p46 = scmp.eq.s32.totalorder %s17, 1
      %p47 = por %p45, %p46
      %p48 = scmp.ne.s32.totalorder %s37, %s38
      %p49 = scmp.eq.s32.totalorder %s17, 0
      %p50 = por %p48, %p49
      %p51 = scmp.ne.s32.totalorder %s37, %s38
      %p52 = scmp.eq.s32.totalorder %s18, 1
      %p53 = por %p51, %p52
      %p55 = scmp.ne.s32.totalorder %s38, %s54
      %p56 = scmp.eq.s32.totalorder %s18, 0
      %p57 = por %p55, %p56
      %s58 = ssub.s32 %s20, %s27
      %p59 = scmp.eq.s32.totalorder %s58, 0
      %s61 = sadd.s32 %s60, 1
      %s62 = scalar_select %p59, %s60, %s61
      %p65 = pneg %p59
      %p66 = scmp.eq.s32.totalorder %s12, 1
      %p67 = por %p65, %p66
      %p68 = scmp.ne.s32.totalorder %s60, %s63
      %p69 = scmp.eq.s32.totalorder %s12, 0
      %p70 = por %p68, %p69
      %p71 = scmp.ne.s32.totalorder %s60, %s63
      %p72 = scmp.eq.s32.totalorder %s17, 1
      %p73 = por %p71, %p72
      %p74 = scmp.ne.s32.totalorder %s63, %s64
      %p75 = scmp.eq.s32.totalorder %s17, 0
      %p76 = por %p74, %p75
      %p77 = scmp.ne.s32.totalorder %s63, %s64
      %p78 = scmp.eq.s32.totalorder %s18, 1
      %p79 = por %p77, %p78
      %p81 = scmp.ne.s32.totalorder %s64, %s80
      %p82 = scmp.eq.s32.totalorder %s18, 0
      %p83 = por %p81, %p82
      %s84 = ssub.s32 %s20, %s27
      %p85 = scmp.eq.s32.totalorder %s84, 0
      %s87 = sadd.s32 %s86, 1
      %s88 = scalar_select %p85, %s86, %s87
      %p91 = pneg %p85
      %p92 = scmp.eq.s32.totalorder %s12, 1
      %p93 = por %p91, %p92
      %p94 = scmp.ne.s32.totalorder %s86, %s89
      %p95 = scmp.eq.s32.totalorder %s12, 0
      %p96 = por %p94, %p95
      %p97 = scmp.ne.s32.totalorder %s86, %s89
      %p98 = scmp.eq.s32.totalorder %s17, 1
      %p99 = por %p97, %p98
      %p100 = scmp.ne.s32.totalorder %s89, %s90
      %p101 = scmp.eq.s32.totalorder %s17, 0
      %p102 = por %p100, %p101
      %p103 = scmp.ne.s32.totalorder %s89, %s90
      %p104 = scmp.eq.s32.totalorder %s18, 1
      %p105 = por %p103, %p104
      %p107 = scmp.ne.s32.totalorder %s90, %s106
      %p108 = scmp.eq.s32.totalorder %s18, 0
      %p109 = por %p107, %p108
      %s110 = ssub.s32 %s19, %s31
      %s111 = ssub.s32 %s20, %s27
      %s112 = sor.u32 %s110, %s111
      %p113 = scmp.eq.s32.totalorder %s112, 0
      %s115 = sadd.s32 %s114, 1
      %s116 = scalar_select %p113, %s114, %s115
      %p119 = pneg %p113
      %p120 = scmp.eq.s32.totalorder %s12, 1
      %p121 = por %p119, %p120
      %p122 = scmp.ne.s32.totalorder %s114, %s117
      %p123 = scmp.eq.s32.totalorder %s12, 0
      %p124 = por %p122, %p123
      %p125 = scmp.ne.s32.totalorder %s114, %s117
      %p126 = scmp.eq.s32.totalorder %s17, 1
      %p127 = por %p125, %p126
      %p128 = scmp.ne.s32.totalorder %s117, %s118
      %p129 = scmp.eq.s32.totalorder %s17, 0
      %p130 = por %p128, %p129
      %p131 = scmp.ne.s32.totalorder %s117, %s118
      %p132 = scmp.eq.s32.totalorder %s18, 1
      %p133 = por %p131, %p132
      %p135 = scmp.ne.s32.totalorder %s118, %s134
      %p136 = scmp.eq.s32.totalorder %s18, 0
      %p137 = por %p135, %p136
      %p138 = scmp.le.s32.totalorder 1, %s12
      %p139 = scmp.lt.s32.totalorder %s12, 3
      %p140 = pnand %p138, %p139
      %p141 = pneg %p140
      // Predicated region
      $region9: #{midibert_back_forward.12} parent=5 // pred_check
        _
      $region10: #{midibert_back_forward.12} parent=5 // pred_check_branch
        %143 = sbr.rel (%p140) target = $region12
      $region11: #{midibert_back_forward.12} parent=5 // pred_region
        %s144 = ssub.s32 %s12, 1
        // Predicated region
        $region13: #{midibert_back_forward.12} parent=11 // pred_check
          %p145 = pneg %p50
        $region14: #{midibert_back_forward.12} parent=11 // pred_check_branch
          %147 = sbr.rel (%p145) target = $region16
        $region15: #{midibert_back_forward.12} parent=11 // pred_region
          %s148 = smul.u32 2, %s21
          %p149 = scmp.lt.s32.totalorder %s148, 1
          %s150 = scalar_select %p149, %s148, 1
          %s151 = smul.addr %s150, 2
          %s152 = smul.addr %s151, 8
          %s153 = scalar_lea.vmem %s0, %s152
          %s154 = smul.u32 2, %s21
        $region16: #{midibert_back_forward.12} parent=11 // pred_fallthru
          _
      $region12: #{midibert_back_forward.12} parent=5 // pred_fallthru
        _
      %p155 = scmp.lt.s32.totalorder %s12, 2
      // Predicated region
      $region17: #{midibert_back_forward.12} parent=5 // pred_check
        %p156 = pneg %p155
      $region18: #{midibert_back_forward.12} parent=5 // pred_check_branch
        %158 = sbr.rel (%p156) target = $region20
      $region19: #{midibert_back_forward.12} parent=5 // pred_region
        // Predicated region
        $region21: #{midibert_back_forward.12} parent=19 // pred_check
          %p159 = pneg %p70
        $region22: #{midibert_back_forward.12} parent=19 // pred_check_branch
          %161 = sbr.rel (%p159) target = $region24
        $region23: #{midibert_back_forward.12} parent=19 // pred_region
          %s162 = sand.u32 %s60, 1
          %s163 = scalar_lea.sflag [#allocation3], %s162
          %s164 = sand.u32 %s60, 1
          %s165 = smul.addr %s164, 384
          %s166 = scalar_lea.vmem [#allocation2], %s165
          %s167 = smul.u32 3, %s20
          %169 = vsyncadd %s163, 0
          %s170 = smul.addr %s167, 4
          %s171 = scalar_lea.hbm %s1, %s170
          %s172 = sshll.u32 %s171, 4
          %s173 = int_to_ptr.hbm [resolvable:$true] %s172
          %s174 = sshll.u32 %s166, 4
          %s175 = int_to_ptr.vmem [resolvable:$true] %s174
          %180 = dma.hbm_to_vmem [thread:$0]  %s173, 6144, %s175, %s163, 384, 192, 12
        $region24: #{midibert_back_forward.12} parent=19 // pred_fallthru
          _
        // Predicated region
        $region25: #{midibert_back_forward.12} parent=19 // pred_check
          %p181 = pneg %p96
        $region26: #{midibert_back_forward.12} parent=19 // pred_check_branch
          %183 = sbr.rel (%p181) target = $region28
        $region27: #{midibert_back_forward.12} parent=19 // pred_region
          %s184 = smul.u32 3, %s20
          %p185 = scmp.lt.s32.totalorder %s184, 5
          %s186 = scalar_select %p185, %s184, 5
          %s187 = scalar_lea.vmem %s2, %s186
          %s188 = smul.u32 3, %s20
        $region28: #{midibert_back_forward.12} parent=19 // pred_fallthru
          _
      $region20: #{midibert_back_forward.12} parent=5 // pred_fallthru
        _
      %p189 = scmp.le.s32.totalorder 1, %s12
      %p190 = scmp.lt.s32.totalorder %s12, 3
      %p191 = pnand %p189, %p190
      %p192 = pneg %p191
      // Predicated region
      $region29: #{midibert_back_forward.12} parent=5 // pred_check
        _
      $region30: #{midibert_back_forward.12} parent=5 // pred_check_branch
        %194 = sbr.rel (%p191) target = $region32
      $region31: #{midibert_back_forward.12} parent=5 // pred_region
        %s195 = ssub.s32 %s12, 1
        %s196 = sand.u32 %s63, 1
        %s197 = scalar_lea.sflag [#allocation3], %s196
        %s198 = sand.u32 %s63, 1
        %s199 = smul.addr %s198, 384
        %s200 = scalar_lea.vmem [#allocation2], %s199
        // Predicated region
        $region33: #{midibert_back_forward.12} parent=31 // pred_check
          %p201 = pneg %p76
        $region34: #{midibert_back_forward.12} parent=31 // pred_check_branch
          %203 = sbr.rel (%p201) target = $region36
        $region35: #{midibert_back_forward.12} parent=31 // pred_region
          %205 = dma.done %s197, 6144
        $region36: #{midibert_back_forward.12} parent=31 // pred_fallthru
          _
        %s206 = smul.u32 2, %s21
        %p207 = scmp.lt.s32.totalorder %s206, 1
        %s208 = scalar_select %p207, %s206, 1
        %s209 = smul.addr %s208, 2
        %s210 = smul.addr %s209, 8
        %s211 = scalar_lea.vmem %s0, %s210
        %p212 = pneg %p50
        %p213 = pneg %p47
        %s214 = sand.u32 %s63, 1
        %s215 = scalar_lea.sflag [#allocation3], %s214
        %s216 = sand.u32 %s63, 1
        %s217 = smul.addr %s216, 384
        %s218 = scalar_lea.vmem [#allocation2], %s217
        %p219 = pneg %p76
        %p220 = pneg %p73
        %s221 = smul.u32 3, %s22
        %p222 = scmp.lt.s32.totalorder %s221, 5
        %s223 = scalar_select %p222, %s221, 5
        %s224 = scalar_lea.vmem %s2, %s223
        %p225 = pneg %p102
        %p226 = pneg %p99
        %p227 = pneg %p130
        %p228 = pneg %p127
        %s229 = sand.u32 %s117, 1
        %s230 = sand.u32 %s117, 1
        %s231 = smul.addr %s230, 24
        %s232 = scalar_lea.vmem [#allocation4], %s231
        %s233 = smul.u32 2, %s21
        %p234 = scmp.lt.s32.totalorder %s233, 1
        %s235 = scalar_select %p234, %s233, 1
        %s236 = smul.addr %s235, 2
        %s237 = smul.addr %s236, 8
        %s238 = scalar_lea.vmem %s0, %s237
        %s239 = smul.u32 2, %s21
        %s240 = smul.u32 3, %s22
        %s241 = smul.u32 3, %s22
        %p242 = scmp.lt.s32.totalorder %s241, 5
        %s243 = scalar_select %p242, %s241, 5
        %s244 = scalar_lea.vmem %s2, %s243
        %s245 = smul.u32 3, %s22
        %s246 = smul.u32 2, %s21
        %s247 = smul.u32 3, %s22
        %v248 = vld [vmem:[%s238] sm:$0xff]
        %v249 = vld [vmem:[%s238 + $0x8] sm:$0xff]
        %v250 = vld [vmem:[%s238 + $0x10] sm:$0xff]
        %v251 = vld [vmem:[%s238 + $0x18] sm:$0xff]
        %v252 = vpack.c.bf16 %v250, %v248
        %v253 = vpack.c.bf16 %v251, %v249
        %v254 = vld [vmem:[%s200] sm:$0xff]
        %v255 = vld [vmem:[%s200 + $0x8] sm:$0xf]
        %v256 = vld [vmem:[%s200 + $0xc] sm:$0xff]
        %v257 = vld [vmem:[%s200 + $0x14] sm:$0xf]
        %v258 = vld [vmem:[%s200 + $0x18] sm:$0xff]
        %v259 = vld [vmem:[%s200 + $0x20] sm:$0xf]
        %v260 = vld [vmem:[%s200 + $0x24] sm:$0xff]
        %v261 = vld [vmem:[%s200 + $0x2c] sm:$0xf]
        %v262 = vld [vmem:[%s200 + $0x30] sm:$0xff]
        %v263 = vld [vmem:[%s200 + $0x38] sm:$0xf]
        %v264 = vld [vmem:[%s200 + $0x3c] sm:$0xff]
        %v265 = vld [vmem:[%s200 + $0x44] sm:$0xf]
        %v266 = vld [vmem:[%s200 + $0x48] sm:$0xff]
        %v267 = vld [vmem:[%s200 + $0x50] sm:$0xf]
        %v268 = vld [vmem:[%s200 + $0x54] sm:$0xff]
        %v269 = vld [vmem:[%s200 + $0x5c] sm:$0xf]
        %v270 = vld [vmem:[%s200 + $0x60] sm:$0xff]
        %v271 = vld [vmem:[%s200 + $0x68] sm:$0xf]
        %v272 = vld [vmem:[%s200 + $0x6c] sm:$0xff]
        %v273 = vld [vmem:[%s200 + $0x74] sm:$0xf]
        %v274 = vld [vmem:[%s200 + $0x78] sm:$0xff]
        %v275 = vld [vmem:[%s200 + $0x80] sm:$0xf]
        %v276 = vld [vmem:[%s200 + $0x84] sm:$0xff]
        %v277 = vld [vmem:[%s200 + $0x8c] sm:$0xf]
        %v278 = vld [vmem:[%s200 + $0x90] sm:$0xff]
        %v279 = vld [vmem:[%s200 + $0x98] sm:$0xf]
        %v280 = vld [vmem:[%s200 + $0x9c] sm:$0xff]
        %v281 = vld [vmem:[%s200 + $0xa4] sm:$0xf]
        %v282 = vld [vmem:[%s200 + $0xa8] sm:$0xff]
        %v283 = vld [vmem:[%s200 + $0xb0] sm:$0xf]
        %v284 = vld [vmem:[%s200 + $0xb4] sm:$0xff]
        %v285 = vld [vmem:[%s200 + $0xbc] sm:$0xf]
        %v286 = vld [vmem:[%s200 + $0xc0] sm:$0xff]
        %v287 = vld [vmem:[%s200 + $0xc8] sm:$0xf]
        %v288 = vld [vmem:[%s200 + $0xcc] sm:$0xff]
        %v289 = vld [vmem:[%s200 + $0xd4] sm:$0xf]
        %v290 = vld [vmem:[%s200 + $0xd8] sm:$0xff]
        %v291 = vld [vmem:[%s200 + $0xe0] sm:$0xf]
        %v292 = vld [vmem:[%s200 + $0xe4] sm:$0xff]
        %v293 = vld [vmem:[%s200 + $0xec] sm:$0xf]
        %v294 = vld [vmem:[%s200 + $0xf0] sm:$0xff]
        %v295 = vld [vmem:[%s200 + $0xf8] sm:$0xf]
        %v296 = vld [vmem:[%s200 + $0xfc] sm:$0xff]
        %v297 = vld [vmem:[%s200 + $0x104] sm:$0xf]
        %v298 = vld [vmem:[%s200 + $0x108] sm:$0xff]
        %v299 = vld [vmem:[%s200 + $0x110] sm:$0xf]
        %v300 = vld [vmem:[%s200 + $0x114] sm:$0xff]
        %v301 = vld [vmem:[%s200 + $0x11c] sm:$0xf]
        %v302 = vld [vmem:[%s200 + $0x120] sm:$0xff]
        %v303 = vld [vmem:[%s200 + $0x128] sm:$0xf]
        %v304 = vld [vmem:[%s200 + $0x12c] sm:$0xff]
        %v305 = vld [vmem:[%s200 + $0x134] sm:$0xf]
        %v306 = vld [vmem:[%s200 + $0x138] sm:$0xff]
        %v307 = vld [vmem:[%s200 + $0x140] sm:$0xf]
        %v308 = vld [vmem:[%s200 + $0x144] sm:$0xff]
        %v309 = vld [vmem:[%s200 + $0x14c] sm:$0xf]
        %v310 = vld [vmem:[%s200 + $0x150] sm:$0xff]
        %v311 = vld [vmem:[%s200 + $0x158] sm:$0xf]
        %v312 = vld [vmem:[%s200 + $0x15c] sm:$0xff]
        %v313 = vld [vmem:[%s200 + $0x164] sm:$0xf]
        %v314 = vld [vmem:[%s200 + $0x168] sm:$0xff]
        %v315 = vld [vmem:[%s200 + $0x170] sm:$0xf]
        %v316 = vld [vmem:[%s200 + $0x174] sm:$0xff]
        %v317 = vld [vmem:[%s200 + $0x17c] sm:$0xf]
        %v318 = vld [vmem:[%s244] sm:$0x7]
        %v320 = vperm.slane %v318, 0
        %v321 = vperm.slane %v318, 1
        %v322 = vperm.slane %v318, 2
        %v390 = vunpack.c.l.b16 %v254
        %v391 = vunpack.c.h.b16 %v254
        %v392 = vunpack.c.l.b16 %v255
        %v393 = vunpack.c.l.b16 %v256
        %v394 = vunpack.c.h.b16 %v256
        %v395 = vunpack.c.l.b16 %v257
        %v396 = vunpack.c.l.b16 %v258
        %v397 = vunpack.c.h.b16 %v258
        %v398 = vunpack.c.l.b16 %v259
        %v399 = vunpack.c.l.b16 %v260
        %v400 = vunpack.c.h.b16 %v260
        %v401 = vunpack.c.l.b16 %v261
        %v402 = vunpack.c.l.b16 %v262
        %v403 = vunpack.c.h.b16 %v262
        %v404 = vunpack.c.l.b16 %v263
        %v405 = vunpack.c.l.b16 %v264
        %v406 = vunpack.c.h.b16 %v264
        %v407 = vunpack.c.l.b16 %v265
        %v408 = vunpack.c.l.b16 %v266
        %v409 = vunpack.c.h.b16 %v266
        %v410 = vunpack.c.l.b16 %v267
        %v411 = vunpack.c.l.b16 %v268
        %v412 = vunpack.c.h.b16 %v268
        %v413 = vunpack.c.l.b16 %v269
        %v414 = vunpack.c.l.b16 %v270
        %v415 = vunpack.c.h.b16 %v270
        %v416 = vunpack.c.l.b16 %v271
        %v417 = vunpack.c.l.b16 %v272
        %v418 = vunpack.c.h.b16 %v272
        %v419 = vunpack.c.l.b16 %v273
        %v420 = vunpack.c.l.b16 %v274
        %v421 = vunpack.c.h.b16 %v274
        %v422 = vunpack.c.l.b16 %v275
        %v423 = vunpack.c.l.b16 %v276
        %v424 = vunpack.c.h.b16 %v276
        %v425 = vunpack.c.l.b16 %v277
        %v426 = vunpack.c.l.b16 %v278
        %v427 = vunpack.c.h.b16 %v278
        %v428 = vunpack.c.l.b16 %v279
        %v429 = vunpack.c.l.b16 %v280
        %v430 = vunpack.c.h.b16 %v280
        %v431 = vunpack.c.l.b16 %v281
        %v432 = vunpack.c.l.b16 %v282
        %v433 = vunpack.c.h.b16 %v282
        %v434 = vunpack.c.l.b16 %v283
        %v435 = vunpack.c.l.b16 %v284
        %v436 = vunpack.c.h.b16 %v284
        %v437 = vunpack.c.l.b16 %v285
        %v438 = vunpack.c.l.b16 %v286
        %v439 = vunpack.c.h.b16 %v286
        %v440 = vunpack.c.l.b16 %v287
        %v441 = vunpack.c.l.b16 %v288
        %v442 = vunpack.c.h.b16 %v288
        %v443 = vunpack.c.l.b16 %v289
        %v444 = vunpack.c.l.b16 %v290
        %v445 = vunpack.c.h.b16 %v290
        %v446 = vunpack.c.l.b16 %v291
        %v447 = vunpack.c.l.b16 %v292
        %v448 = vunpack.c.h.b16 %v292
        %v449 = vunpack.c.l.b16 %v293
        %v450 = vunpack.c.l.b16 %v294
        %v451 = vunpack.c.h.b16 %v294
        %v452 = vunpack.c.l.b16 %v295
        %v453 = vunpack.c.l.b16 %v296
        %v454 = vunpack.c.h.b16 %v296
        %v455 = vunpack.c.l.b16 %v297
        %v456 = vunpack.c.l.b16 %v298
        %v457 = vunpack.c.h.b16 %v298
        %v458 = vunpack.c.l.b16 %v299
        %v459 = vunpack.c.l.b16 %v300
        %v460 = vunpack.c.h.b16 %v300
        %v461 = vunpack.c.l.b16 %v301
        %v462 = vunpack.c.l.b16 %v302
        %v463 = vunpack.c.h.b16 %v302
        %v464 = vunpack.c.l.b16 %v303
        %v465 = vunpack.c.l.b16 %v304
        %v466 = vunpack.c.h.b16 %v304
        %v467 = vunpack.c.l.b16 %v305
        %v468 = vunpack.c.l.b16 %v306
        %v469 = vunpack.c.h.b16 %v306
        %v470 = vunpack.c.l.b16 %v307
        %v471 = vunpack.c.l.b16 %v308
        %v472 = vunpack.c.h.b16 %v308
        %v473 = vunpack.c.l.b16 %v309
        %v474 = vunpack.c.l.b16 %v310
        %v475 = vunpack.c.h.b16 %v310
        %v476 = vunpack.c.l.b16 %v311
        %v477 = vunpack.c.l.b16 %v312
        %v478 = vunpack.c.h.b16 %v312
        %v479 = vunpack.c.l.b16 %v313
        %v480 = vunpack.c.l.b16 %v314
        %v481 = vunpack.c.h.b16 %v314
        %v482 = vunpack.c.l.b16 %v315
        %v483 = vunpack.c.l.b16 %v316
        %v484 = vunpack.c.h.b16 %v316
        %v485 = vunpack.c.l.b16 %v317
        %v486 = vpack.c.b16 %v393, %v390
        %v487 = vpack.c.b16 %v394, %v391
        %v488 = vpack.c.b16 %v395, %v392
        %v489 = vpack.c.b16 %v399, %v396
        %v490 = vpack.c.b16 %v400, %v397
        %v491 = vpack.c.b16 %v401, %v398
        %v492 = vpack.c.b16 %v405, %v402
        %v493 = vpack.c.b16 %v406, %v403
        %v494 = vpack.c.b16 %v407, %v404
        %v495 = vpack.c.b16 %v411, %v408
        %v496 = vpack.c.b16 %v412, %v409
        %v497 = vpack.c.b16 %v413, %v410
        %v498 = vpack.c.b16 %v417, %v414
        %v499 = vpack.c.b16 %v418, %v415
        %v500 = vpack.c.b16 %v419, %v416
        %v501 = vpack.c.b16 %v423, %v420
        %v502 = vpack.c.b16 %v424, %v421
        %v503 = vpack.c.b16 %v425, %v422
        %v504 = vpack.c.b16 %v429, %v426
        %v505 = vpack.c.b16 %v430, %v427
        %v506 = vpack.c.b16 %v431, %v428
        %v507 = vpack.c.b16 %v435, %v432
        %v508 = vpack.c.b16 %v436, %v433
        %v509 = vpack.c.b16 %v437, %v434
        %v510 = vpack.c.b16 %v441, %v438
        %v511 = vpack.c.b16 %v442, %v439
        %v512 = vpack.c.b16 %v443, %v440
        %v513 = vpack.c.b16 %v447, %v444
        %v514 = vpack.c.b16 %v448, %v445
        %v515 = vpack.c.b16 %v449, %v446
        %v516 = vpack.c.b16 %v453, %v450
        %v517 = vpack.c.b16 %v454, %v451
        %v518 = vpack.c.b16 %v455, %v452
        %v519 = vpack.c.b16 %v459, %v456
        %v520 = vpack.c.b16 %v460, %v457
        %v521 = vpack.c.b16 %v461, %v458
        %v522 = vpack.c.b16 %v465, %v462
        %v523 = vpack.c.b16 %v466, %v463
        %v524 = vpack.c.b16 %v467, %v464
        %v525 = vpack.c.b16 %v471, %v468
        %v526 = vpack.c.b16 %v472, %v469
        %v527 = vpack.c.b16 %v473, %v470
        %v528 = vpack.c.b16 %v477, %v474
        %v529 = vpack.c.b16 %v478, %v475
        %v530 = vpack.c.b16 %v479, %v476
        %v531 = vpack.c.b16 %v483, %v480
        %v532 = vpack.c.b16 %v484, %v481
        %v533 = vpack.c.b16 %v485, %v482
        %582 = vmatpush.bf16.msra.mxu0 %v507
        %583 = vmatpush.bf16.msra.mxu0 %v504
        %584 = vmatpush.bf16.msra.mxu0 %v501
        %585 = vmatpush.bf16.msra.mxu0 %v498
        %586 = vmatpush.bf16.msra.mxu0 %v495
        %587 = vmatpush.bf16.msra.mxu0 %v492
        %588 = vmatpush.bf16.msra.mxu0 %v489
        %589 = vmatpush.bf16.msra.mxu0 %v486
        %590 = vmatmul.bf16.gmra.mxu0 %v252
        %v591 = vpop.f32.mrf.mxu0
        %v592 = vadd.f32 %v320, %v591
        %v593 = vpop.f32.mrf.mxu0
        %v594 = vadd.f32 %v320, %v593
        %595 = vdwg.mxu0
        %596 = vmatpush.bf16.msra.mxu0 %v531
        %597 = vmatpush.bf16.msra.mxu0 %v528
        %598 = vmatpush.bf16.msra.mxu0 %v525
        %599 = vmatpush.bf16.msra.mxu0 %v522
        %600 = vmatpush.bf16.msra.mxu0 %v519
        %601 = vmatpush.bf16.msra.mxu0 %v516
        %602 = vmatpush.bf16.msra.mxu0 %v513
        %603 = vmatpush.bf16.msra.mxu0 %v510
        %604 = vmatmul.bf16.gmra.mxu0 %v253
        %v605 = vpop.f32.mrf.mxu0
        %v606 = vadd.f32 %v592, %v605
        %v607 = vpop.f32.mrf.mxu0
        %v608 = vadd.f32 %v594, %v607
        %609 = vdwg.mxu0
        %610 = vmatpush.bf16.msra.mxu0 %v508
        %611 = vmatpush.bf16.msra.mxu0 %v505
        %612 = vmatpush.bf16.msra.mxu0 %v502
        %613 = vmatpush.bf16.msra.mxu0 %v499
        %614 = vmatpush.bf16.msra.mxu0 %v496
        %615 = vmatpush.bf16.msra.mxu0 %v493
        %616 = vmatpush.bf16.msra.mxu0 %v490
        %617 = vmatpush.bf16.msra.mxu0 %v487
        %618 = vmatmul.bf16.gmra.mxu0 %v252
        %v619 = vpop.f32.mrf.mxu0
        %v620 = vadd.f32 %v321, %v619
        %v621 = vpop.f32.mrf.mxu0
        %v622 = vadd.f32 %v321, %v621
        %623 = vdwg.mxu0
        %624 = vmatpush.bf16.msra.mxu0 %v532
        %625 = vmatpush.bf16.msra.mxu0 %v529
        %626 = vmatpush.bf16.msra.mxu0 %v526
        %627 = vmatpush.bf16.msra.mxu0 %v523
        %628 = vmatpush.bf16.msra.mxu0 %v520
        %629 = vmatpush.bf16.msra.mxu0 %v517
        %630 = vmatpush.bf16.msra.mxu0 %v514
        %631 = vmatpush.bf16.msra.mxu0 %v511
        %632 = vmatmul.bf16.gmra.mxu0 %v253
        %v633 = vpop.f32.mrf.mxu0
        %v634 = vadd.f32 %v620, %v633
        %v635 = vpop.f32.mrf.mxu0
        %v636 = vadd.f32 %v622, %v635
        %637 = vdwg.mxu0
        %638 = vmatpush.bf16.msra.mxu0 %v509
        %639 = vmatpush.bf16.msra.mxu0 %v506
        %640 = vmatpush.bf16.msra.mxu0 %v503
        %641 = vmatpush.bf16.msra.mxu0 %v500
        %642 = vmatpush.bf16.msra.mxu0 %v497
        %643 = vmatpush.bf16.msra.mxu0 %v494
        %644 = vmatpush.bf16.msra.mxu0 %v491
        %645 = vmatpush.bf16.msra.mxu0 %v488
        %646 = vmatmul.bf16.gmra.mxu0 %v252
        %v647 = vpop.f32.mrf.mxu0
        %v648 = vadd.f32 %v322, %v647
        %v649 = vpop.f32.mrf.mxu0
        %v650 = vadd.f32 %v322, %v649
        %651 = vdwg.mxu0
        %652 = vmatpush.bf16.msra.mxu0 %v533
        %653 = vmatpush.bf16.msra.mxu0 %v530
        %654 = vmatpush.bf16.msra.mxu0 %v527
        %655 = vmatpush.bf16.msra.mxu0 %v524
        %656 = vmatpush.bf16.msra.mxu0 %v521
        %657 = vmatpush.bf16.msra.mxu0 %v518
        %658 = vmatpush.bf16.msra.mxu0 %v515
        %659 = vmatpush.bf16.msra.mxu0 %v512
        %660 = vmatmul.bf16.gmra.mxu0 %v253
        %v661 = vpop.f32.mrf.mxu0
        %v662 = vadd.f32 %v648, %v661
        %v663 = vpop.f32.mrf.mxu0
        %v664 = vadd.f32 %v650, %v663
        %665 = vdwg.mxu0
        %v666 = vpack.c.bf16 %v634, %v606
        %v667 = vpack.c.bf16 %v662, %v662
        %v668 = vpack.c.bf16 %v636, %v608
        %v669 = vpack.c.bf16 %v664, %v664
        %670 = vst [vmem:[%s232] sm:$0xff] %v666
        %671 = vst [vmem:[%s232 + $0x8] sm:$0xf] %v667
        %672 = vst [vmem:[%s232 + $0xc] sm:$0xff] %v668
        %673 = vst [vmem:[%s232 + $0x14] sm:$0xf] %v669
        %s674 = sand.u32 %s117, 1
        %s675 = sand.u32 %s117, 1
        %s676 = smul.addr %s675, 24
        %s677 = scalar_lea.vmem [#allocation4], %s676
        // Predicated region
        $region37: #{midibert_back_forward.12} parent=31 // pred_check
          %p678 = pneg %p127
        $region38: #{midibert_back_forward.12} parent=31 // pred_check_branch
          %680 = sbr.rel (%p678) target = $region40
        $region39: #{midibert_back_forward.12} parent=31 // pred_region
          %s681 = smul.u32 2, %s21
          %s682 = smul.u32 3, %s22
          %s683 = smul.addr %s681, 6
          %s684 = sadd.s32 %s682, %s683
          %s685 = smul.addr %s684, 4
          %s686 = scalar_lea.vmem %s3, %s685
          // Predicated region
          $region41: #{midibert_back_forward.12} parent=39 // pred_check
            _
          $region42: #{midibert_back_forward.12} parent=39 // pred_check_branch
            %688 = sbr.rel (0) target = $region44
          $region43: #{midibert_back_forward.12} parent=39 // pred_region
            // Predicated region
            $region45: #{midibert_back_forward.12} parent=43 // pred_check
              _
            $region46: #{midibert_back_forward.12} parent=43 // pred_check_branch
              %690 = sbr.rel (0) target = $region48
            $region47: #{midibert_back_forward.12} parent=43 // pred_region
              %s691 = scalar_lea.vmem %s677, 8 [#allocation4]
              %s692 = scalar_lea.vmem %s686, 8
              loop: start=0, step=1, limit=1
              $region49: #{midibert_back_forward.12} parent=47 // loop_pre_header
                _
              $region50: #{midibert_back_forward.12} parent=47 // loop_header
                %s694 = sphi 0, %s698
                %p695 = scmp.ge.s32.totalorder %s694, 1
                %s699 = sphi %s677, %s677
                %s700 = sphi %s686, %s686
              $region51: #{midibert_back_forward.12} parent=47 // loop_header_branch
                %697 = sbr.rel (%p695) target = $region55
              $region52: #{midibert_back_forward.12} parent=47 // loop_body
                %v701 = vld [vmem:[%s699] sm:$0xff]
                %702 = vst [vmem:[%s700] sm:$0xff] %v701
                %v703 = vld [vmem:[%s699 + $0xc] sm:$0xff]
                %704 = vst [vmem:[%s700 + $0x18] sm:$0xff] %v703
              $region53: #{midibert_back_forward.12} parent=47 // loop_footer
                %s698 = sadd.s32 1, %s694
              $region54: #{midibert_back_forward.12} parent=47 // loop_footer_branch
                %693 = sbr.rel target = $region50
              $region55: #{midibert_back_forward.12} parent=47 // loop_exit
                _
              %s706 = ssub.s32 16, 1
              loop: start=0, step=1, limit=1
              $region56: #{midibert_back_forward.12} parent=47 // loop_pre_header
                _
              $region57: #{midibert_back_forward.12} parent=47 // loop_header
                %s708 = sphi 0, %s712
                %p709 = scmp.ge.s32.totalorder %s708, 1
                %s713 = sphi %s691, %s691
                %s714 = sphi %s692, %s692
              $region58: #{midibert_back_forward.12} parent=47 // loop_header_branch
                %711 = sbr.rel (%p709) target = $region62
              $region59: #{midibert_back_forward.12} parent=47 // loop_body
                %v715 = vld [vmem:[%s713] sm:%s706]
                %716 = vst [vmem:[%s714] sm:%s706] %v715
                %v717 = vld [vmem:[%s713 + $0xc] sm:%s706]
                %718 = vst [vmem:[%s714 + $0x18] sm:%s706] %v717
              $region60: #{midibert_back_forward.12} parent=47 // loop_footer
                %s712 = sadd.s32 1, %s708
              $region61: #{midibert_back_forward.12} parent=47 // loop_footer_branch
                %707 = sbr.rel target = $region57
              $region62: #{midibert_back_forward.12} parent=47 // loop_exit
                _
            $region48: #{midibert_back_forward.12} parent=43 // pred_fallthru
              _
          $region44: #{midibert_back_forward.12} parent=39 // pred_fallthru
            _
          %719 = vnop
        $region40: #{midibert_back_forward.12} parent=31 // pred_fallthru
          _
      $region32: #{midibert_back_forward.12} parent=5 // pred_fallthru
        _
      %p720 = scmp.le.s32.totalorder 2, %s12
      // Predicated region
      $region63: #{midibert_back_forward.12} parent=5 // pred_check
        %p721 = pneg %p720
      $region64: #{midibert_back_forward.12} parent=5 // pred_check_branch
        %723 = sbr.rel (%p721) target = $region66
      $region65: #{midibert_back_forward.12} parent=5 // pred_region
        %s724 = ssub.s32 %s12, 2
        // Predicated region
        $region67: #{midibert_back_forward.12} parent=65 // pred_check
          %p725 = pneg %p133
        $region68: #{midibert_back_forward.12} parent=65 // pred_check_branch
          %727 = sbr.rel (%p725) target = $region70
        $region69: #{midibert_back_forward.12} parent=65 // pred_region
          %s728 = sand.u32 %s118, 1
          %s729 = sand.u32 %s118, 1
          %s730 = smul.addr %s729, 24
          %s731 = scalar_lea.vmem [#allocation4], %s730
        $region70: #{midibert_back_forward.12} parent=65 // pred_fallthru
          _
      $region66: #{midibert_back_forward.12} parent=5 // pred_fallthru
        _
    $region6: #{midibert_back_forward.12} parent=1 // loop_footer
      %s16 = sadd.s32 1, %s12
    $region7: #{midibert_back_forward.12} parent=1 // loop_footer_branch
      %11 = sbr.rel target = $region3
    $region8: #{midibert_back_forward.12} parent=1 // loop_exit
      _
    %732 = vsyncpa [#allocation3], 1
    %s733 = scalar_lea.sflag [#allocation3], 1
    %734 = vsyncpa %s733, 1

// kernel: midibert_back_forward.15
$region0: #{midibert_back_forward.15}
  #allocation0 [shape = 'u32[]', space=smem, size = 0x4, offset = 0x4, fixed_abs, tag = 'smem constant byte address 0x4 - core index']
  #allocation1 [shape = 'u32[72,128]{1,0:T(1,128)}', space=vmem, size = 0x9000, scoped, tag = 'internal scratch']
  %s0 = inlined_call_operand.vmem [shape: f32[16,512], index: 0, kind: input, shape index: {}]
  %s1 = inlined_call_operand.hbm [shape: bf16[512,256], index: 1, kind: input, shape index: {}]
  %s2 = inlined_call_operand.vmem [shape: f32[1,256], index: 2, kind: input, shape index: {}]
  %s3 = inlined_call_operand.vmem [shape: f32[16,256], index: 3, kind: input, shape index: {}]
  %s4 = inlined_call_operand.vmem [shape: f32[1,256], index: 4, kind: input, shape index: {}]
  %s5 = inlined_call_operand.vmem [shape: f32[1,256], index: 5, kind: input, shape index: {}]
  %s6 = inlined_call_operand.hbm [shape: f32[16,256], index: 6, kind: output, shape index: {}]
  %s7 = sld [smem:[#allocation0]]
  $region61: #{midibert_back_forward.15} parent=0
    _
  %s9 = ssub.s32 1, %s7
  %s10 = scalar_select 0, %s9, %s7
  $region1: #{midibert_back_forward.15} parent=0
    #allocation2 [shape = 'u8[262144]{0}', space=vmem, size = 0x40000, scoped, tag = 'input window, operand 1, single buffered']
    #allocation3 [shape = 's32[2]{0}', space=sflag, size = 0x8, scoped, tag = 'scoped memory for midibert_back_forward.15']
    #allocation4 [shape = 's32[2]{0}', space=sflag, size = 0x8, scoped, tag = 'scoped memory for midibert_back_forward.15']
    #allocation5 [shape = 'u8[16384]{0}', space=vmem, size = 0x4000, scoped, tag = 'output window, operand 0']
    %11 = vsyncpa [#allocation3], 0
    %12 = vsyncpa [#allocation4], 0
    %s13 = scalar_lea.sflag [#allocation4], 1
    %14 = vsyncpa %s13, 0
    loop: start=0, step=1, limit=4
    $region2: #{midibert_back_forward.15} parent=1 // loop_pre_header
      _
    $region3: #{midibert_back_forward.15} parent=1 // loop_header
      %s16 = sphi 0, %s20
      %p17 = scmp.ge.s32.totalorder %s16, 4
      %s23 = sphi 0, %s35
      %s24 = sphi 0, %s31
      %s25 = sphi 0, %s23
      %s26 = sphi 0, %s24
      %s27 = sphi 0, %s25
      %s28 = sphi 0, %s26
      %s38 = sphi 0, %s40
      %s41 = sphi 0, %s38
      %s42 = sphi 0, %s41
      %s58 = sphi 0, %s42
      %s64 = sphi 0, %s66
      %s67 = sphi 0, %s64
      %s68 = sphi 0, %s67
      %s84 = sphi 0, %s68
      %s90 = sphi 0, %s92
      %s93 = sphi 0, %s90
      %s94 = sphi 0, %s93
      %s110 = sphi 0, %s94
      %s118 = sphi 0, %s120
      %s121 = sphi 0, %s118
      %s122 = sphi 0, %s121
      %s138 = sphi 0, %s122
      %s144 = sphi 0, %s146
      %s147 = sphi 0, %s144
      %s148 = sphi 0, %s147
      %s164 = sphi 0, %s148
      %s170 = sphi 0, %s172
      %s173 = sphi 0, %s170
      %s174 = sphi 0, %s173
      %s190 = sphi 0, %s174
      %s198 = sphi 0, %s200
      %s201 = sphi 0, %s198
      %s202 = sphi 0, %s201
      %s218 = sphi 0, %s202
    $region4: #{midibert_back_forward.15} parent=1 // loop_header_branch
      %19 = sbr.rel (%p17) target = $region8
    $region5: #{midibert_back_forward.15} parent=1 // loop_body
      %s21 = ssub.s32 %s16, 1
      %s22 = ssub.s32 %s16, 2
      %s29 = sadd.s32 1, %s24
      %p30 = scmp.ge.s32.totalorder %s29, 1
      %s31 = scalar_select %p30, 0, %s29
      %s32 = sadd.s32 1, %s23
      %s33 = scalar_select %p30, %s32, %s23
      %p34 = scmp.ge.s32.totalorder %s33, 2
      %s35 = scalar_select %p34, 0, %s33
      %s36 = ssub.s32 %s23, %s35
      %p37 = scmp.eq.s32.totalorder %s36, 0
      %s39 = sadd.s32 %s38, 1
      %s40 = scalar_select %p37, %s38, %s39
      %p43 = pneg %p37
      %p44 = scmp.eq.s32.totalorder %s16, 1
      %p45 = por %p43, %p44
      %p46 = scmp.ne.s32.totalorder %s38, %s41
      %p47 = scmp.eq.s32.totalorder %s16, 0
      %p48 = por %p46, %p47
      %p49 = scmp.ne.s32.totalorder %s38, %s41
      %p50 = scmp.eq.s32.totalorder %s21, 1
      %p51 = por %p49, %p50
      %p52 = scmp.ne.s32.totalorder %s41, %s42
      %p53 = scmp.eq.s32.totalorder %s21, 0
      %p54 = por %p52, %p53
      %p55 = scmp.ne.s32.totalorder %s41, %s42
      %p56 = scmp.eq.s32.totalorder %s22, 1
      %p57 = por %p55, %p56
      %p59 = scmp.ne.s32.totalorder %s42, %s58
      %p60 = scmp.eq.s32.totalorder %s22, 0
      %p61 = por %p59, %p60
      %s62 = ssub.s32 %s24, %s31
      %p63 = scmp.eq.s32.totalorder %s62, 0
      %s65 = sadd.s32 %s64, 1
      %s66 = scalar_select %p63, %s64, %s65
      %p69 = pneg %p63
      %p70 = scmp.eq.s32.totalorder %s16, 1
      %p71 = por %p69, %p70
      %p72 = scmp.ne.s32.totalorder %s64, %s67
      %p73 = scmp.eq.s32.totalorder %s16, 0
      %p74 = por %p72, %p73
      %p75 = scmp.ne.s32.totalorder %s64, %s67
      %p76 = scmp.eq.s32.totalorder %s21, 1
      %p77 = por %p75, %p76
      %p78 = scmp.ne.s32.totalorder %s67, %s68
      %p79 = scmp.eq.s32.totalorder %s21, 0
      %p80 = por %p78, %p79
      %p81 = scmp.ne.s32.totalorder %s67, %s68
      %p82 = scmp.eq.s32.totalorder %s22, 1
      %p83 = por %p81, %p82
      %p85 = scmp.ne.s32.totalorder %s68, %s84
      %p86 = scmp.eq.s32.totalorder %s22, 0
      %p87 = por %p85, %p86
      %s88 = ssub.s32 %s24, %s31
      %p89 = scmp.eq.s32.totalorder %s88, 0
      %s91 = sadd.s32 %s90, 1
      %s92 = scalar_select %p89, %s90, %s91
      %p95 = pneg %p89
      %p96 = scmp.eq.s32.totalorder %s16, 1
      %p97 = por %p95, %p96
      %p98 = scmp.ne.s32.totalorder %s90, %s93
      %p99 = scmp.eq.s32.totalorder %s16, 0
      %p100 = por %p98, %p99
      %p101 = scmp.ne.s32.totalorder %s90, %s93
      %p102 = scmp.eq.s32.totalorder %s21, 1
      %p103 = por %p101, %p102
      %p104 = scmp.ne.s32.totalorder %s93, %s94
      %p105 = scmp.eq.s32.totalorder %s21, 0
      %p106 = por %p104, %p105
      %p107 = scmp.ne.s32.totalorder %s93, %s94
      %p108 = scmp.eq.s32.totalorder %s22, 1
      %p109 = por %p107, %p108
      %p111 = scmp.ne.s32.totalorder %s94, %s110
      %p112 = scmp.eq.s32.totalorder %s22, 0
      %p113 = por %p111, %p112
      %s114 = ssub.s32 %s23, %s35
      %s115 = ssub.s32 %s24, %s31
      %s116 = sor.u32 %s114, %s115
      %p117 = scmp.eq.s32.totalorder %s116, 0
      %s119 = sadd.s32 %s118, 1
      %s120 = scalar_select %p117, %s118, %s119
      %p123 = pneg %p117
      %p124 = scmp.eq.s32.totalorder %s16, 1
      %p125 = por %p123, %p124
      %p126 = scmp.ne.s32.totalorder %s118, %s121
      %p127 = scmp.eq.s32.totalorder %s16, 0
      %p128 = por %p126, %p127
      %p129 = scmp.ne.s32.totalorder %s118, %s121
      %p130 = scmp.eq.s32.totalorder %s21, 1
      %p131 = por %p129, %p130
      %p132 = scmp.ne.s32.totalorder %s121, %s122
      %p133 = scmp.eq.s32.totalorder %s21, 0
      %p134 = por %p132, %p133
      %p135 = scmp.ne.s32.totalorder %s121, %s122
      %p136 = scmp.eq.s32.totalorder %s22, 1
      %p137 = por %p135, %p136
      %p139 = scmp.ne.s32.totalorder %s122, %s138
      %p140 = scmp.eq.s32.totalorder %s22, 0
      %p141 = por %p139, %p140
      %s142 = ssub.s32 %s24, %s31
      %p143 = scmp.eq.s32.totalorder %s142, 0
      %s145 = sadd.s32 %s144, 1
      %s146 = scalar_select %p143, %s144, %s145
      %p149 = pneg %p143
      %p150 = scmp.eq.s32.totalorder %s16, 1
      %p151 = por %p149, %p150
      %p152 = scmp.ne.s32.totalorder %s144, %s147
      %p153 = scmp.eq.s32.totalorder %s16, 0
      %p154 = por %p152, %p153
      %p155 = scmp.ne.s32.totalorder %s144, %s147
      %p156 = scmp.eq.s32.totalorder %s21, 1
      %p157 = por %p155, %p156
      %p158 = scmp.ne.s32.totalorder %s147, %s148
      %p159 = scmp.eq.s32.totalorder %s21, 0
      %p160 = por %p158, %p159
      %p161 = scmp.ne.s32.totalorder %s147, %s148
      %p162 = scmp.eq.s32.totalorder %s22, 1
      %p163 = por %p161, %p162
      %p165 = scmp.ne.s32.totalorder %s148, %s164
      %p166 = scmp.eq.s32.totalorder %s22, 0
      %p167 = por %p165, %p166
      %s168 = ssub.s32 %s24, %s31
      %p169 = scmp.eq.s32.totalorder %s168, 0
      %s171 = sadd.s32 %s170, 1
      %s172 = scalar_select %p169, %s170, %s171
      %p175 = pneg %p169
      %p176 = scmp.eq.s32.totalorder %s16, 1
      %p177 = por %p175, %p176
      %p178 = scmp.ne.s32.totalorder %s170, %s173
      %p179 = scmp.eq.s32.totalorder %s16, 0
      %p180 = por %p178, %p179
      %p181 = scmp.ne.s32.totalorder %s170, %s173
      %p182 = scmp.eq.s32.totalorder %s21, 1
      %p183 = por %p181, %p182
      %p184 = scmp.ne.s32.totalorder %s173, %s174
      %p185 = scmp.eq.s32.totalorder %s21, 0
      %p186 = por %p184, %p185
      %p187 = scmp.ne.s32.totalorder %s173, %s174
      %p188 = scmp.eq.s32.totalorder %s22, 1
      %p189 = por %p187, %p188
      %p191 = scmp.ne.s32.totalorder %s174, %s190
      %p192 = scmp.eq.s32.totalorder %s22, 0
      %p193 = por %p191, %p192
      %s194 = ssub.s32 %s23, %s35
      %s195 = ssub.s32 %s24, %s31
      %s196 = sor.u32 %s194, %s195
      %p197 = scmp.eq.s32.totalorder %s196, 0
      %s199 = sadd.s32 %s198, 1
      %s200 = scalar_select %p197, %s198, %s199
      %p203 = pneg %p197
      %p204 = scmp.eq.s32.totalorder %s16, 1
      %p205 = por %p203, %p204
      %p206 = scmp.ne.s32.totalorder %s198, %s201
      %p207 = scmp.eq.s32.totalorder %s16, 0
      %p208 = por %p206, %p207
      %p209 = scmp.ne.s32.totalorder %s198, %s201
      %p210 = scmp.eq.s32.totalorder %s21, 1
      %p211 = por %p209, %p210
      %p212 = scmp.ne.s32.totalorder %s201, %s202
      %p213 = scmp.eq.s32.totalorder %s21, 0
      %p214 = por %p212, %p213
      %p215 = scmp.ne.s32.totalorder %s201, %s202
      %p216 = scmp.eq.s32.totalorder %s22, 1
      %p217 = por %p215, %p216
      %p219 = scmp.ne.s32.totalorder %s202, %s218
      %p220 = scmp.eq.s32.totalorder %s22, 0
      %p221 = por %p219, %p220
      %p222 = scmp.le.s32.totalorder 1, %s16
      %p223 = scmp.lt.s32.totalorder %s16, 3
      %p224 = pnand %p222, %p223
      %p225 = pneg %p224
      // Predicated region
      $region9: #{midibert_back_forward.15} parent=5 // pred_check
        _
      $region10: #{midibert_back_forward.15} parent=5 // pred_check_branch
        %227 = sbr.rel (%p224) target = $region12
      $region11: #{midibert_back_forward.15} parent=5 // pred_region
        %s228 = ssub.s32 %s16, 1
        // Predicated region
        $region13: #{midibert_back_forward.15} parent=11 // pred_check
          %p229 = pneg %p80
        $region14: #{midibert_back_forward.15} parent=11 // pred_check_branch
          %231 = sbr.rel (%p229) target = $region16
        $region15: #{midibert_back_forward.15} parent=11 // pred_region
          %s232 = smul.u32 2, %s26
          %234 = vsyncadd [#allocation3], 0
          %s235 = smul.addr %s232, 4
          %s236 = scalar_lea.hbm %s1, %s235
          %s237 = sshll.u32 %s236, 4
          %s238 = int_to_ptr.hbm [resolvable:$true] %s237
          %s239 = sshll.u32 [#allocation2], 4
          %s240 = int_to_ptr.vmem [resolvable:$true] %s239
          %245 = dma.hbm_to_vmem [thread:$0]  %s238, 8192, %s240, [#allocation3], 128, 128, 8
        $region16: #{midibert_back_forward.15} parent=11 // pred_fallthru
          _
        // Predicated region
        $region17: #{midibert_back_forward.15} parent=11 // pred_check
          %p246 = pneg %p106
        $region18: #{midibert_back_forward.15} parent=11 // pred_check_branch
          %248 = sbr.rel (%p246) target = $region20
        $region19: #{midibert_back_forward.15} parent=11 // pred_region
          %s249 = smul.u32 2, %s26
          %p250 = scmp.lt.s32.totalorder %s249, 1
          %s251 = scalar_select %p250, %s249, 1
          %s252 = scalar_lea.vmem %s2, %s251
          %s253 = smul.u32 2, %s26
        $region20: #{midibert_back_forward.15} parent=11 // pred_fallthru
          _
        // Predicated region
        $region21: #{midibert_back_forward.15} parent=11 // pred_check
          %p254 = pneg %p160
        $region22: #{midibert_back_forward.15} parent=11 // pred_check_branch
          %256 = sbr.rel (%p254) target = $region24
        $region23: #{midibert_back_forward.15} parent=11 // pred_region
          %s257 = smul.u32 2, %s26
          %p258 = scmp.lt.s32.totalorder %s257, 1
          %s259 = scalar_select %p258, %s257, 1
          %s260 = scalar_lea.vmem %s4, %s259
          %s261 = smul.u32 2, %s26
        $region24: #{midibert_back_forward.15} parent=11 // pred_fallthru
          _
        // Predicated region
        $region25: #{midibert_back_forward.15} parent=11 // pred_check
          %p262 = pneg %p186
        $region26: #{midibert_back_forward.15} parent=11 // pred_check_branch
          %264 = sbr.rel (%p262) target = $region28
        $region27: #{midibert_back_forward.15} parent=11 // pred_region
          %s265 = smul.u32 2, %s26
          %p266 = scmp.lt.s32.totalorder %s265, 1
          %s267 = scalar_select %p266, %s265, 1
          %s268 = scalar_lea.vmem %s5, %s267
          %s269 = smul.u32 2, %s26
        $region28: #{midibert_back_forward.15} parent=11 // pred_fallthru
          _
      $region12: #{midibert_back_forward.15} parent=5 // pred_fallthru
        _
      %p270 = scmp.lt.s32.totalorder %s16, 2
      // Predicated region
      $region29: #{midibert_back_forward.15} parent=5 // pred_check
        %p271 = pneg %p270
      $region30: #{midibert_back_forward.15} parent=5 // pred_check_branch
        %273 = sbr.rel (%p271) target = $region32
      $region31: #{midibert_back_forward.15} parent=5 // pred_region
        // Predicated region
        $region33: #{midibert_back_forward.15} parent=31 // pred_check
          %p274 = pneg %p48
        $region34: #{midibert_back_forward.15} parent=31 // pred_check_branch
          %276 = sbr.rel (%p274) target = $region36
        $region35: #{midibert_back_forward.15} parent=31 // pred_region
          %p277 = scmp.lt.s32.totalorder %s23, 1
          %s278 = scalar_select %p277, %s23, 1
          %s279 = smul.addr %s278, 4
          %s280 = smul.addr %s279, 8
          %s281 = scalar_lea.vmem %s0, %s280
        $region36: #{midibert_back_forward.15} parent=31 // pred_fallthru
          _
        // Predicated region
        $region37: #{midibert_back_forward.15} parent=31 // pred_check
          %p282 = pneg %p128
        $region38: #{midibert_back_forward.15} parent=31 // pred_check_branch
          %284 = sbr.rel (%p282) target = $region40
        $region39: #{midibert_back_forward.15} parent=31 // pred_region
          %s285 = smul.u32 2, %s24
          %p286 = scmp.lt.s32.totalorder %s23, 1
          %s287 = scalar_select %p286, %s23, 1
          %p288 = scmp.lt.s32.totalorder %s285, 1
          %s289 = scalar_select %p288, %s285, 1
          %s290 = smul.addr %s287, 2
          %s291 = sadd.s32 %s289, %s290
          %s292 = smul.addr %s291, 8
          %s293 = scalar_lea.vmem %s3, %s292
          %s294 = smul.u32 2, %s24
        $region40: #{midibert_back_forward.15} parent=31 // pred_fallthru
          _
      $region32: #{midibert_back_forward.15} parent=5 // pred_fallthru
        _
      %p295 = scmp.le.s32.totalorder 1, %s16
      %p296 = scmp.lt.s32.totalorder %s16, 3
      %p297 = pnand %p295, %p296
      %p298 = pneg %p297
      // Predicated region
      $region41: #{midibert_back_forward.15} parent=5 // pred_check
        _
      $region42: #{midibert_back_forward.15} parent=5 // pred_check_branch
        %300 = sbr.rel (%p297) target = $region44
      $region43: #{midibert_back_forward.15} parent=5 // pred_region
        %s301 = ssub.s32 %s16, 1
        // Predicated region
        $region45: #{midibert_back_forward.15} parent=43 // pred_check
          %p302 = pneg %p80
        $region46: #{midibert_back_forward.15} parent=43 // pred_check_branch
          %304 = sbr.rel (%p302) target = $region48
        $region47: #{midibert_back_forward.15} parent=43 // pred_region
          %306 = dma.done [#allocation3], 8192
        $region48: #{midibert_back_forward.15} parent=43 // pred_fallthru
          _
        %p307 = scmp.lt.s32.totalorder %s25, 1
        %s308 = scalar_select %p307, %s25, 1
        %s309 = smul.addr %s308, 4
        %s310 = smul.addr %s309, 8
        %s311 = scalar_lea.vmem %s0, %s310
        %p312 = pneg %p54
        %p313 = pneg %p51
        %p314 = pneg %p80
        %p315 = pneg %p77
        %s316 = smul.u32 2, %s26
        %p317 = scmp.lt.s32.totalorder %s316, 1
        %s318 = scalar_select %p317, %s316, 1
        %s319 = scalar_lea.vmem %s2, %s318
        %p320 = pneg %p106
        %p321 = pneg %p103
        %s322 = smul.u32 2, %s26
        %p323 = scmp.lt.s32.totalorder %s25, 1
        %s324 = scalar_select %p323, %s25, 1
        %p325 = scmp.lt.s32.totalorder %s322, 1
        %s326 = scalar_select %p325, %s322, 1
        %s327 = smul.addr %s324, 2
        %s328 = sadd.s32 %s326, %s327
        %s329 = smul.addr %s328, 8
        %s330 = scalar_lea.vmem %s3, %s329
        %p331 = pneg %p134
        %p332 = pneg %p131
        %s333 = smul.u32 2, %s26
        %p334 = scmp.lt.s32.totalorder %s333, 1
        %s335 = scalar_select %p334, %s333, 1
        %s336 = scalar_lea.vmem %s4, %s335
        %p337 = pneg %p160
        %p338 = pneg %p157
        %s339 = smul.u32 2, %s26
        %p340 = scmp.lt.s32.totalorder %s339, 1
        %s341 = scalar_select %p340, %s339, 1
        %s342 = scalar_lea.vmem %s5, %s341
        %p343 = pneg %p186
        %p344 = pneg %p183
        %p345 = pneg %p214
        %p346 = pneg %p211
        %s347 = sand.u32 %s201, 1
        %s348 = scalar_lea.sflag [#allocation4], %s347
        %s349 = sand.u32 %s201, 1
        %s350 = smul.addr %s349, 16
        %s351 = scalar_lea.vmem [#allocation5], %s350
        %p352 = scmp.lt.s32.totalorder %s25, 1
        %s353 = scalar_select %p352, %s25, 1
        %s354 = smul.addr %s353, 4
        %s355 = smul.addr %s354, 8
        %s356 = scalar_lea.vmem %s0, %s355
        %s357 = smul.u32 2, %s26
        %s358 = smul.u32 2, %s26
        %p359 = scmp.lt.s32.totalorder %s358, 1
        %s360 = scalar_select %p359, %s358, 1
        %s361 = scalar_lea.vmem %s2, %s360
        %s362 = smul.u32 2, %s26
        %s363 = smul.u32 2, %s26
        %p364 = scmp.lt.s32.totalorder %s25, 1
        %s365 = scalar_select %p364, %s25, 1
        %p366 = scmp.lt.s32.totalorder %s363, 1
        %s367 = scalar_select %p366, %s363, 1
        %s368 = smul.addr %s365, 2
        %s369 = sadd.s32 %s367, %s368
        %s370 = smul.addr %s369, 8
        %s371 = scalar_lea.vmem %s3, %s370
        %s372 = smul.u32 2, %s26
        %s373 = smul.u32 2, %s26
        %p374 = scmp.lt.s32.totalorder %s373, 1
        %s375 = scalar_select %p374, %s373, 1
        %s376 = scalar_lea.vmem %s4, %s375
        %s377 = smul.u32 2, %s26
        %s378 = smul.u32 2, %s26
        %p379 = scmp.lt.s32.totalorder %s378, 1
        %s380 = scalar_select %p379, %s378, 1
        %s381 = scalar_lea.vmem %s5, %s380
        %s382 = smul.u32 2, %s26
        %s383 = smul.u32 2, %s26
        %v384 = vld [vmem:[%s356] sm:$0xff]
        %v385 = vld [vmem:[%s356 + $0x8] sm:$0xff]
        %v386 = vld [vmem:[%s356 + $0x10] sm:$0xff]
        %v387 = vld [vmem:[%s356 + $0x18] sm:$0xff]
        %v388 = vpack.c.bf16 %v384, %v384
        %v389 = vpack.c.bf16 %v385, %v385
        %v390 = vpack.c.bf16 %v386, %v386
        %v391 = vpack.c.bf16 %v387, %v387
        %v392 = vld [vmem:[#allocation2] sm:$0xff]
        %v393 = vld [vmem:[#allocation2 + $0x8] sm:$0xff]
        %v394 = vld [vmem:[#allocation2 + $0x10] sm:$0xff]
        %v395 = vld [vmem:[#allocation2 + $0x18] sm:$0xff]
        %v396 = vld [vmem:[#allocation2 + $0x20] sm:$0xff]
        %v397 = vld [vmem:[#allocation2 + $0x28] sm:$0xff]
        %v398 = vld [vmem:[#allocation2 + $0x30] sm:$0xff]
        %v399 = vld [vmem:[#allocation2 + $0x38] sm:$0xff]
        %v400 = vld [vmem:[#allocation2 + $0x40] sm:$0xff]
        %v401 = vld [vmem:[#allocation2 + $0x48] sm:$0xff]
        %v402 = vld [vmem:[#allocation2 + $0x50] sm:$0xff]
        %v403 = vld [vmem:[#allocation2 + $0x58] sm:$0xff]
        %v404 = vld [vmem:[#allocation2 + $0x60] sm:$0xff]
        %v405 = vld [vmem:[#allocation2 + $0x68] sm:$0xff]
        %v406 = vld [vmem:[#allocation2 + $0x70] sm:$0xff]
        %v407 = vld [vmem:[#allocation2 + $0x78] sm:$0xff]
        %v408 = vld [vmem:[#allocation2 + $0x80] sm:$0xff]
        %v409 = vld [vmem:[#allocation2 + $0x88] sm:$0xff]
        %v410 = vld [vmem:[#allocation2 + $0x90] sm:$0xff]
        %v411 = vld [vmem:[#allocation2 + $0x98] sm:$0xff]
        %v412 = vld [vmem:[#allocation2 + $0xa0] sm:$0xff]
        %v413 = vld [vmem:[#allocation2 + $0xa8] sm:$0xff]
        %v414 = vld [vmem:[#allocation2 + $0xb0] sm:$0xff]
        %v415 = vld [vmem:[#allocation2 + $0xb8] sm:$0xff]
        %v416 = vld [vmem:[#allocation2 + $0xc0] sm:$0xff]
        %v417 = vld [vmem:[#allocation2 + $0xc8] sm:$0xff]
        %v418 = vld [vmem:[#allocation2 + $0xd0] sm:$0xff]
        %v419 = vld [vmem:[#allocation2 + $0xd8] sm:$0xff]
        %v420 = vld [vmem:[#allocation2 + $0xe0] sm:$0xff]
        %v421 = vld [vmem:[#allocation2 + $0xe8] sm:$0xff]
        %v422 = vld [vmem:[#allocation2 + $0xf0] sm:$0xff]
        %v423 = vld [vmem:[#allocation2 + $0xf8] sm:$0xff]
        %v424 = vld [vmem:[#allocation2 + $0x100] sm:$0xff]
        %v425 = vld [vmem:[#allocation2 + $0x108] sm:$0xff]
        %v426 = vld [vmem:[#allocation2 + $0x110] sm:$0xff]
        %v427 = vld [vmem:[#allocation2 + $0x118] sm:$0xff]
        %v428 = vld [vmem:[#allocation2 + $0x120] sm:$0xff]
        %v429 = vld [vmem:[#allocation2 + $0x128] sm:$0xff]
        %v430 = vld [vmem:[#allocation2 + $0x130] sm:$0xff]
        %v431 = vld [vmem:[#allocation2 + $0x138] sm:$0xff]
        %v432 = vld [vmem:[#allocation2 + $0x140] sm:$0xff]
        %v433 = vld [vmem:[#allocation2 + $0x148] sm:$0xff]
        %v434 = vld [vmem:[#allocation2 + $0x150] sm:$0xff]
        %v435 = vld [vmem:[#allocation2 + $0x158] sm:$0xff]
        %v436 = vld [vmem:[#allocation2 + $0x160] sm:$0xff]
        %v437 = vld [vmem:[#allocation2 + $0x168] sm:$0xff]
        %v438 = vld [vmem:[#allocation2 + $0x170] sm:$0xff]
        %v439 = vld [vmem:[#allocation2 + $0x178] sm:$0xff]
        %v440 = vld [vmem:[#allocation2 + $0x180] sm:$0xff]
        %v441 = vld [vmem:[#allocation2 + $0x188] sm:$0xff]
        %v442 = vld [vmem:[#allocation2 + $0x190] sm:$0xff]
        %v443 = vld [vmem:[#allocation2 + $0x198] sm:$0xff]
        %v444 = vld [vmem:[#allocation2 + $0x1a0] sm:$0xff]
        %v445 = vld [vmem:[#allocation2 + $0x1a8] sm:$0xff]
        %v446 = vld [vmem:[#allocation2 + $0x1b0] sm:$0xff]
        %v447 = vld [vmem:[#allocation2 + $0x1b8] sm:$0xff]
        %v448 = vld [vmem:[#allocation2 + $0x1c0] sm:$0xff]
        %v449 = vld [vmem:[#allocation2 + $0x1c8] sm:$0xff]
        %v450 = vld [vmem:[#allocation2 + $0x1d0] sm:$0xff]
        %v451 = vld [vmem:[#allocation2 + $0x1d8] sm:$0xff]
        %v452 = vld [vmem:[#allocation2 + $0x1e0] sm:$0xff]
        %v453 = vld [vmem:[#allocation2 + $0x1e8] sm:$0xff]
        %v454 = vld [vmem:[#allocation2 + $0x1f0] sm:$0xff]
        %v455 = vld [vmem:[#allocation2 + $0x1f8] sm:$0xff]
        %v456 = vld [vmem:[%s361] sm:$0x3]
        %v458 = vperm.slane %v456, 0
        %v459 = vperm.slane %v456, 1
        %v526 = vunpack.c.l.b16 %v392
        %v527 = vunpack.c.h.b16 %v392
        %v528 = vunpack.c.l.b16 %v393
        %v529 = vunpack.c.h.b16 %v393
        %v530 = vunpack.c.l.b16 %v394
        %v531 = vunpack.c.h.b16 %v394
        %v532 = vunpack.c.l.b16 %v395
        %v533 = vunpack.c.h.b16 %v395
        %v534 = vunpack.c.l.b16 %v396
        %v535 = vunpack.c.h.b16 %v396
        %v536 = vunpack.c.l.b16 %v397
        %v537 = vunpack.c.h.b16 %v397
        %v538 = vunpack.c.l.b16 %v398
        %v539 = vunpack.c.h.b16 %v398
        %v540 = vunpack.c.l.b16 %v399
        %v541 = vunpack.c.h.b16 %v399
        %v542 = vunpack.c.l.b16 %v400
        %v543 = vunpack.c.h.b16 %v400
        %v544 = vunpack.c.l.b16 %v401
        %v545 = vunpack.c.h.b16 %v401
        %v546 = vunpack.c.l.b16 %v402
        %v547 = vunpack.c.h.b16 %v402
        %v548 = vunpack.c.l.b16 %v403
        %v549 = vunpack.c.h.b16 %v403
        %v550 = vunpack.c.l.b16 %v404
        %v551 = vunpack.c.h.b16 %v404
        %v552 = vunpack.c.l.b16 %v405
        %v553 = vunpack.c.h.b16 %v405
        %v554 = vunpack.c.l.b16 %v406
        %v555 = vunpack.c.h.b16 %v406
        %v556 = vunpack.c.l.b16 %v407
        %v557 = vunpack.c.h.b16 %v407
        %v558 = vunpack.c.l.b16 %v408
        %v559 = vunpack.c.h.b16 %v408
        %v560 = vunpack.c.l.b16 %v409
        %v561 = vunpack.c.h.b16 %v409
        %v562 = vunpack.c.l.b16 %v410
        %v563 = vunpack.c.h.b16 %v410
        %v564 = vunpack.c.l.b16 %v411
        %v565 = vunpack.c.h.b16 %v411
        %v566 = vunpack.c.l.b16 %v412
        %v567 = vunpack.c.h.b16 %v412
        %v568 = vunpack.c.l.b16 %v413
        %v569 = vunpack.c.h.b16 %v413
        %v570 = vunpack.c.l.b16 %v414
        %v571 = vunpack.c.h.b16 %v414
        %v572 = vunpack.c.l.b16 %v415
        %v573 = vunpack.c.h.b16 %v415
        %v574 = vunpack.c.l.b16 %v416
        %v575 = vunpack.c.h.b16 %v416
        %v576 = vunpack.c.l.b16 %v417
        %v577 = vunpack.c.h.b16 %v417
        %v578 = vunpack.c.l.b16 %v418
        %v579 = vunpack.c.h.b16 %v418
        %v580 = vunpack.c.l.b16 %v419
        %v581 = vunpack.c.h.b16 %v419
        %v582 = vunpack.c.l.b16 %v420
        %v583 = vunpack.c.h.b16 %v420
        %v584 = vunpack.c.l.b16 %v421
        %v585 = vunpack.c.h.b16 %v421
        %v586 = vunpack.c.l.b16 %v422
        %v587 = vunpack.c.h.b16 %v422
        %v588 = vunpack.c.l.b16 %v423
        %v589 = vunpack.c.h.b16 %v423
        %v590 = vunpack.c.l.b16 %v424
        %v591 = vunpack.c.h.b16 %v424
        %v592 = vunpack.c.l.b16 %v425
        %v593 = vunpack.c.h.b16 %v425
        %v594 = vunpack.c.l.b16 %v426
        %v595 = vunpack.c.h.b16 %v426
        %v596 = vunpack.c.l.b16 %v427
        %v597 = vunpack.c.h.b16 %v427
        %v598 = vunpack.c.l.b16 %v428
        %v599 = vunpack.c.h.b16 %v428
        %v600 = vunpack.c.l.b16 %v429
        %v601 = vunpack.c.h.b16 %v429
        %v602 = vunpack.c.l.b16 %v430
        %v603 = vunpack.c.h.b16 %v430
        %v604 = vunpack.c.l.b16 %v431
        %v605 = vunpack.c.h.b16 %v431
        %v606 = vunpack.c.l.b16 %v432
        %v607 = vunpack.c.h.b16 %v432
        %v608 = vunpack.c.l.b16 %v433
        %v609 = vunpack.c.h.b16 %v433
        %v610 = vunpack.c.l.b16 %v434
        %v611 = vunpack.c.h.b16 %v434
        %v612 = vunpack.c.l.b16 %v435
        %v613 = vunpack.c.h.b16 %v435
        %v614 = vunpack.c.l.b16 %v436
        %v615 = vunpack.c.h.b16 %v436
        %v616 = vunpack.c.l.b16 %v437
        %v617 = vunpack.c.h.b16 %v437
        %v618 = vunpack.c.l.b16 %v438
        %v619 = vunpack.c.h.b16 %v438
        %v620 = vunpack.c.l.b16 %v439
        %v621 = vunpack.c.h.b16 %v439
        %v622 = vunpack.c.l.b16 %v440
        %v623 = vunpack.c.h.b16 %v440
        %v624 = vunpack.c.l.b16 %v441
        %v625 = vunpack.c.h.b16 %v441
        %v626 = vunpack.c.l.b16 %v442
        %v627 = vunpack.c.h.b16 %v442
        %v628 = vunpack.c.l.b16 %v443
        %v629 = vunpack.c.h.b16 %v443
        %v630 = vunpack.c.l.b16 %v444
        %v631 = vunpack.c.h.b16 %v444
        %v632 = vunpack.c.l.b16 %v445
        %v633 = vunpack.c.h.b16 %v445
        %v634 = vunpack.c.l.b16 %v446
        %v635 = vunpack.c.h.b16 %v446
        %v636 = vunpack.c.l.b16 %v447
        %v637 = vunpack.c.h.b16 %v447
        %v638 = vunpack.c.l.b16 %v448
        %v639 = vunpack.c.h.b16 %v448
        %v640 = vunpack.c.l.b16 %v449
        %v641 = vunpack.c.h.b16 %v449
        %v642 = vunpack.c.l.b16 %v450
        %v643 = vunpack.c.h.b16 %v450
        %v644 = vunpack.c.l.b16 %v451
        %v645 = vunpack.c.h.b16 %v451
        %v646 = vunpack.c.l.b16 %v452
        %v647 = vunpack.c.h.b16 %v452
        %v648 = vunpack.c.l.b16 %v453
        %v649 = vunpack.c.h.b16 %v453
        %v650 = vunpack.c.l.b16 %v454
        %v651 = vunpack.c.h.b16 %v454
        %v652 = vunpack.c.l.b16 %v455
        %v653 = vunpack.c.h.b16 %v455
        %v654 = vpack.c.b16 %v528, %v526
        %v655 = vpack.c.b16 %v529, %v527
        %v656 = vpack.c.b16 %v532, %v530
        %v657 = vpack.c.b16 %v533, %v531
        %v658 = vpack.c.b16 %v536, %v534
        %v659 = vpack.c.b16 %v537, %v535
        %v660 = vpack.c.b16 %v540, %v538
        %v661 = vpack.c.b16 %v541, %v539
        %v662 = vpack.c.b16 %v544, %v542
        %v663 = vpack.c.b16 %v545, %v543
        %v664 = vpack.c.b16 %v548, %v546
        %v665 = vpack.c.b16 %v549, %v547
        %v666 = vpack.c.b16 %v552, %v550
        %v667 = vpack.c.b16 %v553, %v551
        %v668 = vpack.c.b16 %v556, %v554
        %v669 = vpack.c.b16 %v557, %v555
        %v670 = vpack.c.b16 %v560, %v558
        %v671 = vpack.c.b16 %v561, %v559
        %v672 = vpack.c.b16 %v564, %v562
        %v673 = vpack.c.b16 %v565, %v563
        %v674 = vpack.c.b16 %v568, %v566
        %v675 = vpack.c.b16 %v569, %v567
        %v676 = vpack.c.b16 %v572, %v570
        %v677 = vpack.c.b16 %v573, %v571
        %v678 = vpack.c.b16 %v576, %v574
        %v679 = vpack.c.b16 %v577, %v575
        %v680 = vpack.c.b16 %v580, %v578
        %v681 = vpack.c.b16 %v581, %v579
        %v682 = vpack.c.b16 %v584, %v582
        %v683 = vpack.c.b16 %v585, %v583
        %v684 = vpack.c.b16 %v588, %v586
        %v685 = vpack.c.b16 %v589, %v587
        %v686 = vpack.c.b16 %v592, %v590
        %v687 = vpack.c.b16 %v593, %v591
        %v688 = vpack.c.b16 %v596, %v594
        %v689 = vpack.c.b16 %v597, %v595
        %v690 = vpack.c.b16 %v600, %v598
        %v691 = vpack.c.b16 %v601, %v599
        %v692 = vpack.c.b16 %v604, %v602
        %v693 = vpack.c.b16 %v605, %v603
        %v694 = vpack.c.b16 %v608, %v606
        %v695 = vpack.c.b16 %v609, %v607
        %v696 = vpack.c.b16 %v612, %v610
        %v697 = vpack.c.b16 %v613, %v611
        %v698 = vpack.c.b16 %v616, %v614
        %v699 = vpack.c.b16 %v617, %v615
        %v700 = vpack.c.b16 %v620, %v618
        %v701 = vpack.c.b16 %v621, %v619
        %v702 = vpack.c.b16 %v624, %v622
        %v703 = vpack.c.b16 %v625, %v623
        %v704 = vpack.c.b16 %v628, %v626
        %v705 = vpack.c.b16 %v629, %v627
        %v706 = vpack.c.b16 %v632, %v630
        %v707 = vpack.c.b16 %v633, %v631
        %v708 = vpack.c.b16 %v636, %v634
        %v709 = vpack.c.b16 %v637, %v635
        %v710 = vpack.c.b16 %v640, %v638
        %v711 = vpack.c.b16 %v641, %v639
        %v712 = vpack.c.b16 %v644, %v642
        %v713 = vpack.c.b16 %v645, %v643
        %v714 = vpack.c.b16 %v648, %v646
        %v715 = vpack.c.b16 %v649, %v647
        %v716 = vpack.c.b16 %v652, %v650
        %v717 = vpack.c.b16 %v653, %v651
        %782 = vmatpush.bf16.msra.mxu0 %v668
        %783 = vmatpush.bf16.msra.mxu0 %v666
        %784 = vmatpush.bf16.msra.mxu0 %v664
        %785 = vmatpush.bf16.msra.mxu0 %v662
        %786 = vmatpush.bf16.msra.mxu0 %v660
        %787 = vmatpush.bf16.msra.mxu0 %v658
        %788 = vmatpush.bf16.msra.mxu0 %v656
        %789 = vmatpush.bf16.msra.mxu0 %v654
        %790 = vmatmul.bf16.gmra.mxu0 %v388
        %v791 = vpop.f32.mrf.mxu0
        %v792 = vadd.f32 %v458, %v791
        %v793 = vpop.f32.mrf.mxu0
        %794 = vdwg.mxu0
        %795 = vmatpush.bf16.msra.mxu0 %v684
        %796 = vmatpush.bf16.msra.mxu0 %v682
        %797 = vmatpush.bf16.msra.mxu0 %v680
        %798 = vmatpush.bf16.msra.mxu0 %v678
        %799 = vmatpush.bf16.msra.mxu0 %v676
        %800 = vmatpush.bf16.msra.mxu0 %v674
        %801 = vmatpush.bf16.msra.mxu0 %v672
        %802 = vmatpush.bf16.msra.mxu0 %v670
        %803 = vmatmul.bf16.gmra.mxu0 %v389
        %v804 = vpop.f32.mrf.mxu0
        %v805 = vadd.f32 %v792, %v804
        %v806 = vpop.f32.mrf.mxu0
        %807 = vdwg.mxu0
        %808 = vmatpush.bf16.msra.mxu0 %v700
        %809 = vmatpush.bf16.msra.mxu0 %v698
        %810 = vmatpush.bf16.msra.mxu0 %v696
        %811 = vmatpush.bf16.msra.mxu0 %v694
        %812 = vmatpush.bf16.msra.mxu0 %v692
        %813 = vmatpush.bf16.msra.mxu0 %v690
        %814 = vmatpush.bf16.msra.mxu0 %v688
        %815 = vmatpush.bf16.msra.mxu0 %v686
        %816 = vmatmul.bf16.gmra.mxu0 %v390
        %v817 = vpop.f32.mrf.mxu0
        %v818 = vadd.f32 %v805, %v817
        %v819 = vpop.f32.mrf.mxu0
        %820 = vdwg.mxu0
        %821 = vmatpush.bf16.msra.mxu0 %v716
        %822 = vmatpush.bf16.msra.mxu0 %v714
        %823 = vmatpush.bf16.msra.mxu0 %v712
        %824 = vmatpush.bf16.msra.mxu0 %v710
        %825 = vmatpush.bf16.msra.mxu0 %v708
        %826 = vmatpush.bf16.msra.mxu0 %v706
        %827 = vmatpush.bf16.msra.mxu0 %v704
        %828 = vmatpush.bf16.msra.mxu0 %v702
        %829 = vmatmul.bf16.gmra.mxu0 %v391
        %v830 = vpop.f32.mrf.mxu0
        %v831 = vadd.f32 %v818, %v830
        %v832 = vpop.f32.mrf.mxu0
        %833 = vdwg.mxu0
        %834 = vmatpush.bf16.msra.mxu0 %v669
        %835 = vmatpush.bf16.msra.mxu0 %v667
        %836 = vmatpush.bf16.msra.mxu0 %v665
        %837 = vmatpush.bf16.msra.mxu0 %v663
        %838 = vmatpush.bf16.msra.mxu0 %v661
        %839 = vmatpush.bf16.msra.mxu0 %v659
        %840 = vmatpush.bf16.msra.mxu0 %v657
        %841 = vmatpush.bf16.msra.mxu0 %v655
        %842 = vmatmul.bf16.gmra.mxu0 %v388
        %v843 = vpop.f32.mrf.mxu0
        %v844 = vadd.f32 %v459, %v843
        %v845 = vpop.f32.mrf.mxu0
        %846 = vdwg.mxu0
        %847 = vmatpush.bf16.msra.mxu0 %v685
        %848 = vmatpush.bf16.msra.mxu0 %v683
        %849 = vmatpush.bf16.msra.mxu0 %v681
        %850 = vmatpush.bf16.msra.mxu0 %v679
        %851 = vmatpush.bf16.msra.mxu0 %v677
        %852 = vmatpush.bf16.msra.mxu0 %v675
        %853 = vmatpush.bf16.msra.mxu0 %v673
        %854 = vmatpush.bf16.msra.mxu0 %v671
        %855 = vmatmul.bf16.gmra.mxu0 %v389
        %v856 = vpop.f32.mrf.mxu0
        %v857 = vadd.f32 %v844, %v856
        %v858 = vpop.f32.mrf.mxu0
        %859 = vdwg.mxu0
        %860 = vmatpush.bf16.msra.mxu0 %v701
        %861 = vmatpush.bf16.msra.mxu0 %v699
        %862 = vmatpush.bf16.msra.mxu0 %v697
        %863 = vmatpush.bf16.msra.mxu0 %v695
        %864 = vmatpush.bf16.msra.mxu0 %v693
        %865 = vmatpush.bf16.msra.mxu0 %v691
        %866 = vmatpush.bf16.msra.mxu0 %v689
        %867 = vmatpush.bf16.msra.mxu0 %v687
        %868 = vmatmul.bf16.gmra.mxu0 %v390
        %v869 = vpop.f32.mrf.mxu0
        %v870 = vadd.f32 %v857, %v869
        %v871 = vpop.f32.mrf.mxu0
        %872 = vdwg.mxu0
        %873 = vmatpush.bf16.msra.mxu0 %v717
        %874 = vmatpush.bf16.msra.mxu0 %v715
        %875 = vmatpush.bf16.msra.mxu0 %v713
        %876 = vmatpush.bf16.msra.mxu0 %v711
        %877 = vmatpush.bf16.msra.mxu0 %v709
        %878 = vmatpush.bf16.msra.mxu0 %v707
        %879 = vmatpush.bf16.msra.mxu0 %v705
        %880 = vmatpush.bf16.msra.mxu0 %v703
        %881 = vmatmul.bf16.gmra.mxu0 %v391
        %v882 = vpop.f32.mrf.mxu0
        %v883 = vadd.f32 %v870, %v882
        %v884 = vpop.f32.mrf.mxu0
        %885 = vdwg.mxu0
        %v886 = vld [vmem:[%s371] sm:$0xff]
        %v887 = vld [vmem:[%s371 + $0x8] sm:$0xff]
        %v888 = vadd.f32 %v831, %v886
        %v889 = vadd.f32 %v883, %v887
        %v890 = vld [vmem:[%s376] sm:$0x3]
        %v891 = vld [vmem:[%s381] sm:$0x3]
        %v892 = vadd.f32 %v888, %v889
        %893 = vadd.xlane.f32.xlu0 %v892
        %v894 = vpop.xlane.xlu0 %893
        %v895 = vrcp.pop 256.0
        %v896 = vmul.f32 256.0, %v895
        %v897 = vsub.f32 1.0, %v896
        %v898 = vmul.f32 %v895, %v897
        %v899 = vadd.f32 %v895, %v898
        %vm900 = vweird.f32 %v895
        %v901 = vsel %vm900, %v895, %v899
        %v902 = vmul.f32 %v894, %v901
        %v903 = vsub.f32 %v888, %v902
        %v904 = vsub.f32 %v889, %v902
        %v905 = vmul.f32 %v903, %v903
        %v906 = vmul.f32 %v904, %v904
        %v907 = vadd.f32 %v905, %v906
        %908 = vadd.xlane.f32.xlu0 %v907
        %v909 = vpop.xlane.xlu0 %908
        %v910 = vmul.f32 %v909, %v901
        %v911 = vadd.f32 %v910, 1e-12
        %v912 = vrsqrt.pop %v911
        %v913 = vmul.f32 %v912, %v911
        %v914 = vmul.f32 %v913, %v912
        %v915 = vmul.f32 0.5, %v914
        %v916 = vsub.f32 1.5, %v915
        %v917 = vmul.f32 %v912, %v916
        %vm918 = vweird.f32 %v911
        %vm919 = vweird.f32 %v912
        %vm920 = vmor %vm918, %vm919
        %v921 = vsel %vm920, %v912, %v917
        %v922 = vmul.f32 %v903, %v921
        %v923 = vmul.f32 %v904, %v921
        %v925 = vperm.slane %v890, 0
        %v926 = vperm.slane %v890, 1
        %v929 = vmul.f32 %v922, %v925
        %v930 = vmul.f32 %v923, %v926
        %v932 = vperm.slane %v891, 0
        %v933 = vperm.slane %v891, 1
        %v936 = vadd.f32 %v929, %v932
        %v937 = vadd.f32 %v930, %v933
        %938 = vst [vmem:[%s351] sm:$0xff] %v936
        %939 = vst [vmem:[%s351 + $0x8] sm:$0xff] %v937
        %s940 = sand.u32 %s201, 1
        %s941 = scalar_lea.sflag [#allocation4], %s940
        %s942 = sand.u32 %s201, 1
        %s943 = smul.addr %s942, 16
        %s944 = scalar_lea.vmem [#allocation5], %s943
        // Predicated region
        $region49: #{midibert_back_forward.15} parent=43 // pred_check
          %p945 = pneg %p211
        $region50: #{midibert_back_forward.15} parent=43 // pred_check_branch
          %947 = sbr.rel (%p945) target = $region52
        $region51: #{midibert_back_forward.15} parent=43 // pred_region
          %s948 = smul.u32 2, %s26
          %950 = vsyncadd %s941, 0
          %s951 = smul.addr %s25, 2
          %s952 = sadd.s32 %s948, %s951
          %s953 = smul.addr %s952, 8
          %s954 = scalar_lea.hbm %s6, %s953
          %s956 = sshll.u32 %s944, 4
          %s957 = int_to_ptr.vmem [resolvable:$true] %s956
          %s958 = sshll.u32 %s954, 4
          %s959 = int_to_ptr.hbm [resolvable:$true] %s958
          %961 = dma.vmem_to_hbm [thread:$0]  %s957, 256, %s959, %s941
        $region52: #{midibert_back_forward.15} parent=43 // pred_fallthru
          _
      $region44: #{midibert_back_forward.15} parent=5 // pred_fallthru
        _
      %p962 = scmp.le.s32.totalorder 2, %s16
      // Predicated region
      $region53: #{midibert_back_forward.15} parent=5 // pred_check
        %p963 = pneg %p962
      $region54: #{midibert_back_forward.15} parent=5 // pred_check_branch
        %965 = sbr.rel (%p963) target = $region56
      $region55: #{midibert_back_forward.15} parent=5 // pred_region
        %s966 = ssub.s32 %s16, 2
        // Predicated region
        $region57: #{midibert_back_forward.15} parent=55 // pred_check
          %p967 = pneg %p217
        $region58: #{midibert_back_forward.15} parent=55 // pred_check_branch
          %969 = sbr.rel (%p967) target = $region60
        $region59: #{midibert_back_forward.15} parent=55 // pred_region
          %s970 = sand.u32 %s202, 1
          %s971 = scalar_lea.sflag [#allocation4], %s970
          %s972 = sand.u32 %s202, 1
          %s973 = smul.addr %s972, 16
          %s974 = scalar_lea.vmem [#allocation5], %s973
          %976 = dma.done %s971, 256
        $region60: #{midibert_back_forward.15} parent=55 // pred_fallthru
          _
      $region56: #{midibert_back_forward.15} parent=5 // pred_fallthru
        _
    $region6: #{midibert_back_forward.15} parent=1 // loop_footer
      %s20 = sadd.s32 1, %s16
    $region7: #{midibert_back_forward.15} parent=1 // loop_footer_branch
      %15 = sbr.rel target = $region3
    $region8: #{midibert_back_forward.15} parent=1 // loop_exit
      _
    %977 = vsyncpa [#allocation3], 1
    %s978 = scalar_lea.sflag [#allocation3], 1
    %979 = vsyncpa %s978, 1
    %980 = vsyncpa [#allocation4], 1
    %s981 = scalar_lea.sflag [#allocation4], 1
    %982 = vsyncpa %s981, 1

// kernel: midibert_back_forward.13
$region0: #{midibert_back_forward.13}
  #allocation0 [shape = 'u32[]', space=smem, size = 0x4, offset = 0x4, fixed_abs, tag = 'smem constant byte address 0x4 - core index']
  #allocation1 [shape = 'u32[72,128]{1,0:T(1,128)}', space=vmem, size = 0x9000, scoped, tag = 'internal scratch']
  %s0 = inlined_call_operand.vmem [shape: bf16[2,8,768], index: 0, kind: input, shape index: {}]
  %s1 = inlined_call_operand.vmem [shape: f32[2,1,8], index: 1, kind: input, shape index: {}]
  %s2 = inlined_call_operand.hbm [shape: bf16[2,128,256], index: 2, kind: input, shape index: {}]
  %s3 = inlined_call_operand.vmem [shape: f32[1,256], index: 3, kind: input, shape index: {}]
  %s4 = inlined_call_operand.vmem [shape: f32[2,8,256], index: 4, kind: input, shape index: {}]
  %s5 = inlined_call_operand.vmem [shape: f32[1,256], index: 5, kind: input, shape index: {}]
  %s6 = inlined_call_operand.vmem [shape: f32[1,256], index: 6, kind: input, shape index: {}]
  %s7 = inlined_call_operand.vmem [shape: f32[2,8,256], index: 7, kind: output, shape index: {}]
  %s8 = sld [smem:[#allocation0]]
  $region65: #{midibert_back_forward.13} parent=0
    _
  %s10 = ssub.s32 1, %s8
  %s11 = scalar_select 0, %s10, %s8
  $region1: #{midibert_back_forward.13} parent=0
    #allocation2 [shape = 'u8[131072]{0}', space=vmem, size = 0x20000, scoped, tag = 'input window, operand 2, single buffered']
    #allocation3 [shape = 's32[2]{0}', space=sflag, size = 0x8, scoped, tag = 'scoped memory for midibert_back_forward.13']
    %12 = vsyncpa [#allocation3], 0
    loop: start=0, step=1, limit=4
    $region2: #{midibert_back_forward.13} parent=1 // loop_pre_header
      _
    $region3: #{midibert_back_forward.13} parent=1 // loop_header
      %s14 = sphi 0, %s18
      %p15 = scmp.ge.s32.totalorder %s14, 4
      %s24 = sphi 0, %s26
      %s27 = sphi 0, %s24
      %s28 = sphi 0, %s27
      %s44 = sphi 0, %s28
      %s50 = sphi 0, %s52
      %s53 = sphi 0, %s50
      %s54 = sphi 0, %s53
      %s70 = sphi 0, %s54
      %s74 = sphi 0, %s74
      %s76 = sphi 0, %s74
      %s77 = sphi 0, %s76
      %s91 = sphi 0, %s77
      %s95 = sphi 0, %s95
      %s97 = sphi 0, %s95
      %s98 = sphi 0, %s97
      %s112 = sphi 0, %s98
      %s118 = sphi 0, %s120
      %s121 = sphi 0, %s118
      %s122 = sphi 0, %s121
      %s138 = sphi 0, %s122
      %s142 = sphi 0, %s142
      %s144 = sphi 0, %s142
      %s145 = sphi 0, %s144
      %s159 = sphi 0, %s145
      %s163 = sphi 0, %s163
      %s165 = sphi 0, %s163
      %s166 = sphi 0, %s165
      %s180 = sphi 0, %s166
      %s186 = sphi 0, %s188
      %s189 = sphi 0, %s186
      %s190 = sphi 0, %s189
      %s206 = sphi 0, %s190
    $region4: #{midibert_back_forward.13} parent=1 // loop_header_branch
      %17 = sbr.rel (%p15) target = $region8
    $region5: #{midibert_back_forward.13} parent=1 // loop_body
      %s19 = ssub.s32 %s14, 1
      %s20 = ssub.s32 %s14, 2
      %s21 = sadd.s32 %s14, 1
      %s22 = ssub.s32 %s14, %s21
      %p23 = scmp.eq.s32.totalorder %s22, 0
      %s25 = sadd.s32 %s24, 1
      %s26 = scalar_select %p23, %s24, %s25
      %p29 = pneg %p23
      %p30 = scmp.eq.s32.totalorder %s14, 1
      %p31 = por %p29, %p30
      %p32 = scmp.ne.s32.totalorder %s24, %s27
      %p33 = scmp.eq.s32.totalorder %s14, 0
      %p34 = por %p32, %p33
      %p35 = scmp.ne.s32.totalorder %s24, %s27
      %p36 = scmp.eq.s32.totalorder %s19, 1
      %p37 = por %p35, %p36
      %p38 = scmp.ne.s32.totalorder %s27, %s28
      %p39 = scmp.eq.s32.totalorder %s19, 0
      %p40 = por %p38, %p39
      %p41 = scmp.ne.s32.totalorder %s27, %s28
      %p42 = scmp.eq.s32.totalorder %s20, 1
      %p43 = por %p41, %p42
      %p45 = scmp.ne.s32.totalorder %s28, %s44
      %p46 = scmp.eq.s32.totalorder %s20, 0
      %p47 = por %p45, %p46
      %s48 = ssub.s32 %s14, %s21
      %p49 = scmp.eq.s32.totalorder %s48, 0
      %s51 = sadd.s32 %s50, 1
      %s52 = scalar_select %p49, %s50, %s51
      %p55 = pneg %p49
      %p56 = scmp.eq.s32.totalorder %s14, 1
      %p57 = por %p55, %p56
      %p58 = scmp.ne.s32.totalorder %s50, %s53
      %p59 = scmp.eq.s32.totalorder %s14, 0
      %p60 = por %p58, %p59
      %p61 = scmp.ne.s32.totalorder %s50, %s53
      %p62 = scmp.eq.s32.totalorder %s19, 1
      %p63 = por %p61, %p62
      %p64 = scmp.ne.s32.totalorder %s53, %s54
      %p65 = scmp.eq.s32.totalorder %s19, 0
      %p66 = por %p64, %p65
      %p67 = scmp.ne.s32.totalorder %s53, %s54
      %p68 = scmp.eq.s32.totalorder %s20, 1
      %p69 = por %p67, %p68
      %p71 = scmp.ne.s32.totalorder %s54, %s70
      %p72 = scmp.eq.s32.totalorder %s20, 0
      %p73 = por %p71, %p72
      %s75 = sadd.s32 %s74, 1
      %p78 = scmp.eq.s32.totalorder %s14, 1
      %p79 = scmp.ne.s32.totalorder %s74, %s76
      %p80 = scmp.eq.s32.totalorder %s14, 0
      %p81 = por %p79, %p80
      %p82 = scmp.ne.s32.totalorder %s74, %s76
      %p83 = scmp.eq.s32.totalorder %s19, 1
      %p84 = por %p82, %p83
      %p85 = scmp.ne.s32.totalorder %s76, %s77
      %p86 = scmp.eq.s32.totalorder %s19, 0
      %p87 = por %p85, %p86
      %p88 = scmp.ne.s32.totalorder %s76, %s77
      %p89 = scmp.eq.s32.totalorder %s20, 1
      %p90 = por %p88, %p89
      %p92 = scmp.ne.s32.totalorder %s77, %s91
      %p93 = scmp.eq.s32.totalorder %s20, 0
      %p94 = por %p92, %p93
      %s96 = sadd.s32 %s95, 1
      %p99 = scmp.eq.s32.totalorder %s14, 1
      %p100 = scmp.ne.s32.totalorder %s95, %s97
      %p101 = scmp.eq.s32.totalorder %s14, 0
      %p102 = por %p100, %p101
      %p103 = scmp.ne.s32.totalorder %s95, %s97
      %p104 = scmp.eq.s32.totalorder %s19, 1
      %p105 = por %p103, %p104
      %p106 = scmp.ne.s32.totalorder %s97, %s98
      %p107 = scmp.eq.s32.totalorder %s19, 0
      %p108 = por %p106, %p107
      %p109 = scmp.ne.s32.totalorder %s97, %s98
      %p110 = scmp.eq.s32.totalorder %s20, 1
      %p111 = por %p109, %p110
      %p113 = scmp.ne.s32.totalorder %s98, %s112
      %p114 = scmp.eq.s32.totalorder %s20, 0
      %p115 = por %p113, %p114
      %s116 = ssub.s32 %s14, %s21
      %p117 = scmp.eq.s32.totalorder %s116, 0
      %s119 = sadd.s32 %s118, 1
      %s120 = scalar_select %p117, %s118, %s119
      %p123 = pneg %p117
      %p124 = scmp.eq.s32.totalorder %s14, 1
      %p125 = por %p123, %p124
      %p126 = scmp.ne.s32.totalorder %s118, %s121
      %p127 = scmp.eq.s32.totalorder %s14, 0
      %p128 = por %p126, %p127
      %p129 = scmp.ne.s32.totalorder %s118, %s121
      %p130 = scmp.eq.s32.totalorder %s19, 1
      %p131 = por %p129, %p130
      %p132 = scmp.ne.s32.totalorder %s121, %s122
      %p133 = scmp.eq.s32.totalorder %s19, 0
      %p134 = por %p132, %p133
      %p135 = scmp.ne.s32.totalorder %s121, %s122
      %p136 = scmp.eq.s32.totalorder %s20, 1
      %p137 = por %p135, %p136
      %p139 = scmp.ne.s32.totalorder %s122, %s138
      %p140 = scmp.eq.s32.totalorder %s20, 0
      %p141 = por %p139, %p140
      %s143 = sadd.s32 %s142, 1
      %p146 = scmp.eq.s32.totalorder %s14, 1
      %p147 = scmp.ne.s32.totalorder %s142, %s144
      %p148 = scmp.eq.s32.totalorder %s14, 0
      %p149 = por %p147, %p148
      %p150 = scmp.ne.s32.totalorder %s142, %s144
      %p151 = scmp.eq.s32.totalorder %s19, 1
      %p152 = por %p150, %p151
      %p153 = scmp.ne.s32.totalorder %s144, %s145
      %p154 = scmp.eq.s32.totalorder %s19, 0
      %p155 = por %p153, %p154
      %p156 = scmp.ne.s32.totalorder %s144, %s145
      %p157 = scmp.eq.s32.totalorder %s20, 1
      %p158 = por %p156, %p157
      %p160 = scmp.ne.s32.totalorder %s145, %s159
      %p161 = scmp.eq.s32.totalorder %s20, 0
      %p162 = por %p160, %p161
      %s164 = sadd.s32 %s163, 1
      %p167 = scmp.eq.s32.totalorder %s14, 1
      %p168 = scmp.ne.s32.totalorder %s163, %s165
      %p169 = scmp.eq.s32.totalorder %s14, 0
      %p170 = por %p168, %p169
      %p171 = scmp.ne.s32.totalorder %s163, %s165
      %p172 = scmp.eq.s32.totalorder %s19, 1
      %p173 = por %p171, %p172
      %p174 = scmp.ne.s32.totalorder %s165, %s166
      %p175 = scmp.eq.s32.totalorder %s19, 0
      %p176 = por %p174, %p175
      %p177 = scmp.ne.s32.totalorder %s165, %s166
      %p178 = scmp.eq.s32.totalorder %s20, 1
      %p179 = por %p177, %p178
      %p181 = scmp.ne.s32.totalorder %s166, %s180
      %p182 = scmp.eq.s32.totalorder %s20, 0
      %p183 = por %p181, %p182
      %s184 = ssub.s32 %s14, %s21
      %p185 = scmp.eq.s32.totalorder %s184, 0
      %s187 = sadd.s32 %s186, 1
      %s188 = scalar_select %p185, %s186, %s187
      %p191 = pneg %p185
      %p192 = scmp.eq.s32.totalorder %s14, 1
      %p193 = por %p191, %p192
      %p194 = scmp.ne.s32.totalorder %s186, %s189
      %p195 = scmp.eq.s32.totalorder %s14, 0
      %p196 = por %p194, %p195
      %p197 = scmp.ne.s32.totalorder %s186, %s189
      %p198 = scmp.eq.s32.totalorder %s19, 1
      %p199 = por %p197, %p198
      %p200 = scmp.ne.s32.totalorder %s189, %s190
      %p201 = scmp.eq.s32.totalorder %s19, 0
      %p202 = por %p200, %p201
      %p203 = scmp.ne.s32.totalorder %s189, %s190
      %p204 = scmp.eq.s32.totalorder %s20, 1
      %p205 = por %p203, %p204
      %p207 = scmp.ne.s32.totalorder %s190, %s206
      %p208 = scmp.eq.s32.totalorder %s20, 0
      %p209 = por %p207, %p208
      %p210 = scmp.le.s32.totalorder 1, %s14
      %p211 = scmp.lt.s32.totalorder %s14, 3
      %p212 = pnand %p210, %p211
      %p213 = pneg %p212
      // Predicated region
      $region9: #{midibert_back_forward.13} parent=5 // pred_check
        _
      $region10: #{midibert_back_forward.13} parent=5 // pred_check_branch
        %215 = sbr.rel (%p212) target = $region12
      $region11: #{midibert_back_forward.13} parent=5 // pred_region
        %s216 = ssub.s32 %s14, 1
        // Predicated region
        $region13: #{midibert_back_forward.13} parent=11 // pred_check
          %p217 = pneg %p87
        $region14: #{midibert_back_forward.13} parent=11 // pred_check_branch
          %219 = sbr.rel (%p217) target = $region16
        $region15: #{midibert_back_forward.13} parent=11 // pred_region
          %221 = vsyncadd [#allocation3], 0
          %s222 = sshll.u32 %s2, 4
          %s223 = int_to_ptr.hbm [resolvable:$true] %s222
          %s224 = sshll.u32 [#allocation2], 4
          %s225 = int_to_ptr.vmem [resolvable:$true] %s224
          %230 = dma.hbm_to_vmem [thread:$0]  %s223, 4096, %s225, [#allocation3], 128, 128, 8
        $region16: #{midibert_back_forward.13} parent=11 // pred_fallthru
          _
        // Predicated region
        $region17: #{midibert_back_forward.13} parent=11 // pred_check
          %p231 = pneg %p108
        $region18: #{midibert_back_forward.13} parent=11 // pred_check_branch
          %233 = sbr.rel (%p231) target = $region20
        $region19: #{midibert_back_forward.13} parent=11 // pred_region
          _
        $region20: #{midibert_back_forward.13} parent=11 // pred_fallthru
          _
        // Predicated region
        $region21: #{midibert_back_forward.13} parent=11 // pred_check
          %p234 = pneg %p155
        $region22: #{midibert_back_forward.13} parent=11 // pred_check_branch
          %236 = sbr.rel (%p234) target = $region24
        $region23: #{midibert_back_forward.13} parent=11 // pred_region
          _
        $region24: #{midibert_back_forward.13} parent=11 // pred_fallthru
          _
        // Predicated region
        $region25: #{midibert_back_forward.13} parent=11 // pred_check
          %p237 = pneg %p176
        $region26: #{midibert_back_forward.13} parent=11 // pred_check_branch
          %239 = sbr.rel (%p237) target = $region28
        $region27: #{midibert_back_forward.13} parent=11 // pred_region
          _
        $region28: #{midibert_back_forward.13} parent=11 // pred_fallthru
          _
      $region12: #{midibert_back_forward.13} parent=5 // pred_fallthru
        _
      %p240 = scmp.lt.s32.totalorder %s14, 2
      // Predicated region
      $region29: #{midibert_back_forward.13} parent=5 // pred_check
        %p241 = pneg %p240
      $region30: #{midibert_back_forward.13} parent=5 // pred_check_branch
        %243 = sbr.rel (%p241) target = $region32
      $region31: #{midibert_back_forward.13} parent=5 // pred_region
        // Predicated region
        $region33: #{midibert_back_forward.13} parent=31 // pred_check
          %p244 = pneg %p34
        $region34: #{midibert_back_forward.13} parent=31 // pred_check_branch
          %246 = sbr.rel (%p244) target = $region36
        $region35: #{midibert_back_forward.13} parent=31 // pred_region
          %p247 = scmp.lt.s32.totalorder %s14, 1
          %s248 = scalar_select %p247, %s14, 1
          %s249 = smul.addr %s248, 6
          %s250 = smul.addr %s249, 4
          %s251 = scalar_lea.vmem %s0, %s250
        $region36: #{midibert_back_forward.13} parent=31 // pred_fallthru
          _
        // Predicated region
        $region37: #{midibert_back_forward.13} parent=31 // pred_check
          %p252 = pneg %p60
        $region38: #{midibert_back_forward.13} parent=31 // pred_check_branch
          %254 = sbr.rel (%p252) target = $region40
        $region39: #{midibert_back_forward.13} parent=31 // pred_region
          %p255 = scmp.lt.s32.totalorder %s14, 1
          %s256 = scalar_select %p255, %s14, 1
          %s257 = scalar_lea.vmem %s1, %s256
        $region40: #{midibert_back_forward.13} parent=31 // pred_fallthru
          _
        // Predicated region
        $region41: #{midibert_back_forward.13} parent=31 // pred_check
          %p258 = pneg %p128
        $region42: #{midibert_back_forward.13} parent=31 // pred_check_branch
          %260 = sbr.rel (%p258) target = $region44
        $region43: #{midibert_back_forward.13} parent=31 // pred_region
          %p261 = scmp.lt.s32.totalorder %s14, 1
          %s262 = scalar_select %p261, %s14, 1
          %s263 = smul.addr %s262, 2
          %s264 = smul.addr %s263, 8
          %s265 = scalar_lea.vmem %s4, %s264
        $region44: #{midibert_back_forward.13} parent=31 // pred_fallthru
          _
      $region32: #{midibert_back_forward.13} parent=5 // pred_fallthru
        _
      %p266 = scmp.le.s32.totalorder 1, %s14
      %p267 = scmp.lt.s32.totalorder %s14, 3
      %p268 = pnand %p266, %p267
      %p269 = pneg %p268
      // Predicated region
      $region45: #{midibert_back_forward.13} parent=5 // pred_check
        _
      $region46: #{midibert_back_forward.13} parent=5 // pred_check_branch
        %271 = sbr.rel (%p268) target = $region48
      $region47: #{midibert_back_forward.13} parent=5 // pred_region
        %s272 = ssub.s32 %s14, 1
        // Predicated region
        $region49: #{midibert_back_forward.13} parent=47 // pred_check
          %p273 = pneg %p87
        $region50: #{midibert_back_forward.13} parent=47 // pred_check_branch
          %275 = sbr.rel (%p273) target = $region52
        $region51: #{midibert_back_forward.13} parent=47 // pred_region
          %277 = dma.done [#allocation3], 4096
        $region52: #{midibert_back_forward.13} parent=47 // pred_fallthru
          _
        %p278 = scmp.lt.s32.totalorder %s19, 1
        %s279 = scalar_select %p278, %s19, 1
        %s280 = smul.addr %s279, 6
        %s281 = smul.addr %s280, 4
        %s282 = scalar_lea.vmem %s0, %s281
        %p283 = pneg %p40
        %p284 = pneg %p37
        %p285 = scmp.lt.s32.totalorder %s19, 1
        %s286 = scalar_select %p285, %s19, 1
        %s287 = scalar_lea.vmem %s1, %s286
        %p288 = pneg %p66
        %p289 = pneg %p63
        %p290 = pneg %p87
        %p291 = pneg %p84
        %p292 = pneg %p108
        %p293 = pneg %p105
        %p294 = scmp.lt.s32.totalorder %s19, 1
        %s295 = scalar_select %p294, %s19, 1
        %s296 = smul.addr %s295, 2
        %s297 = smul.addr %s296, 8
        %s298 = scalar_lea.vmem %s4, %s297
        %p299 = pneg %p134
        %p300 = pneg %p131
        %p301 = pneg %p155
        %p302 = pneg %p152
        %p303 = pneg %p176
        %p304 = pneg %p173
        %p305 = pneg %p202
        %p306 = pneg %p199
        %p307 = scmp.lt.s32.totalorder %s19, 1
        %s308 = scalar_select %p307, %s19, 1
        %s309 = smul.addr %s308, 2
        %s310 = smul.addr %s309, 8
        %s311 = scalar_lea.vmem %s7, %s310
        %p312 = scmp.lt.s32.totalorder %s19, 1
        %s313 = scalar_select %p312, %s19, 1
        %s314 = smul.addr %s313, 6
        %s315 = smul.addr %s314, 4
        %s316 = scalar_lea.vmem %s0, %s315
        %p317 = scmp.lt.s32.totalorder %s19, 1
        %s318 = scalar_select %p317, %s19, 1
        %s319 = scalar_lea.vmem %s1, %s318
        %p320 = scmp.lt.s32.totalorder %s19, 1
        %s321 = scalar_select %p320, %s19, 1
        %s322 = smul.addr %s321, 2
        %s323 = smul.addr %s322, 8
        %s324 = scalar_lea.vmem %s4, %s323
        %p325 = scmp.lt.s32.totalorder %s19, 1
        %s326 = scalar_select %p325, %s19, 1
        %s327 = smul.addr %s326, 2
        %s328 = smul.addr %s327, 8
        %s329 = scalar_lea.vmem %s7, %s328
        %v331 = vld [vmem:[%s316] sm:$0xff]
        %v332 = vld [vmem:[%s316 + $0x8] sm:$0xff]
        %v333 = vld [vmem:[%s316 + $0x10] sm:$0xff]
        %v334 = vld [vmem:[%s319] sm:$0x1]
        %v335 = vunpack.c.l.bf16 %v331
        %v336 = vmul.f32 %v335, 0.088388346
        %v337 = vunpack.c.l.bf16 %v332
        %v339 = vperm.slane %v334, 0
        %341 = vmatpush.xpose.msra.mxu0 0.0
        %342 = vmatpush.xpose.msra.mxu0 0.0
        %343 = vmatpush.xpose.msra.mxu0 0.0
        %344 = vmatpush.xpose.msra.mxu0 0.0
        %345 = vmatpush.xpose.msra.mxu0 0.0
        %346 = vmatpush.xpose.msra.mxu0 0.0
        %347 = vmatpush.xpose.msra.mxu0 0.0
        %348 = vmatpush.xpose.msra.mxu0 0.0
        %349 = vmatpush.xpose.msra.mxu0 0.0
        %350 = vmatpush.xpose.msra.mxu0 0.0
        %351 = vmatpush.xpose.msra.mxu0 0.0
        %352 = vmatpush.xpose.msra.mxu0 0.0
        %353 = vmatpush.xpose.msra.mxu0 0.0
        %354 = vmatpush.xpose.msra.mxu0 0.0
        %355 = vmatpush.xpose.msra.mxu0 0.0
        %356 = vmatpush.xpose.msra.mxu0 %v337
        %357 = vmatmul.f32.gmra.mxu0 %v336
        %v358 = vpop.f32.mrf.mxu0
        %v359 = vadd.f32 %v339, %v358
        %360 = vdwg.mxu0
        %vm361 = vcmask 64512
        %v362 = vsel %vm361, %v359, -inf
        %363 = vmax.xlane.f32.xlu0 %v362
        %v364 = vpop.xlane.xlu0 %363
        %v365 = vsub.f32 %v359, %v364
        %v366 = vmul.f32 %v365, 1.442695
        %v367 = vpow.pop %v366
        %v368 = vsel %vm361, %v367, 0.0
        %369 = vadd.xlane.f32.xlu0 %v368
        %v370 = vpop.xlane.xlu0 %369
        %v371 = vrcp.pop %v370
        %v372 = vmul.f32 %v367, %v371
        %v373 = vpack.c.bf16 %v372, %v372
        %v375 = vsel %vm361, %v373, 0
        %vm377 = vcmask 1043456
        %v379 = vsel %vm377, %v333, 0
        %381 = vmatpush.bf16.msra.mxu0 0
        %382 = vmatpush.bf16.msra.mxu0 0
        %383 = vmatpush.bf16.msra.mxu0 0
        %384 = vmatpush.bf16.msra.mxu0 0
        %385 = vmatpush.bf16.msra.mxu0 0
        %386 = vmatpush.bf16.msra.mxu0 0
        %387 = vmatpush.bf16.msra.mxu0 0
        %388 = vmatpush.bf16.msra.mxu0 %v379
        %389 = vmatmul.bf16.gmra.mxu0 %v375
        %v390 = vpop.f32.mrf.mxu0
        %v391 = vadd.f32 0.0, %v390
        %v392 = vpop.f32.mrf.mxu0
        %393 = vdwg.mxu0
        %v394 = vpack.c.bf16 %v391, %v391
        %v395 = vld [vmem:[#allocation2] sm:$0xff]
        %v396 = vld [vmem:[#allocation2 + $0x8] sm:$0xff]
        %v397 = vld [vmem:[#allocation2 + $0x10] sm:$0xff]
        %v398 = vld [vmem:[#allocation2 + $0x18] sm:$0xff]
        %v399 = vld [vmem:[#allocation2 + $0x20] sm:$0xff]
        %v400 = vld [vmem:[#allocation2 + $0x28] sm:$0xff]
        %v401 = vld [vmem:[#allocation2 + $0x30] sm:$0xff]
        %v402 = vld [vmem:[#allocation2 + $0x38] sm:$0xff]
        %v403 = vld [vmem:[#allocation2 + $0x40] sm:$0xff]
        %v404 = vld [vmem:[#allocation2 + $0x48] sm:$0xff]
        %v405 = vld [vmem:[#allocation2 + $0x50] sm:$0xff]
        %v406 = vld [vmem:[#allocation2 + $0x58] sm:$0xff]
        %v407 = vld [vmem:[#allocation2 + $0x60] sm:$0xff]
        %v408 = vld [vmem:[#allocation2 + $0x68] sm:$0xff]
        %v409 = vld [vmem:[#allocation2 + $0x70] sm:$0xff]
        %v410 = vld [vmem:[#allocation2 + $0x78] sm:$0xff]
        %v412 = vrot.slane %v331, 4
        %v414 = vunpack.c.l.bf16 %v412
        %v415 = vmul.f32 %v414, 0.088388346
        %v417 = vrot.slane %v332, 4
        %v419 = vunpack.c.l.bf16 %v417
        %420 = vmatpush.xpose.msra.mxu0 0.0
        %421 = vmatpush.xpose.msra.mxu0 0.0
        %422 = vmatpush.xpose.msra.mxu0 0.0
        %423 = vmatpush.xpose.msra.mxu0 0.0
        %424 = vmatpush.xpose.msra.mxu0 0.0
        %425 = vmatpush.xpose.msra.mxu0 0.0
        %426 = vmatpush.xpose.msra.mxu0 0.0
        %427 = vmatpush.xpose.msra.mxu0 0.0
        %428 = vmatpush.xpose.msra.mxu0 0.0
        %429 = vmatpush.xpose.msra.mxu0 0.0
        %430 = vmatpush.xpose.msra.mxu0 0.0
        %431 = vmatpush.xpose.msra.mxu0 0.0
        %432 = vmatpush.xpose.msra.mxu0 0.0
        %433 = vmatpush.xpose.msra.mxu0 0.0
        %434 = vmatpush.xpose.msra.mxu0 0.0
        %435 = vmatpush.xpose.msra.mxu0 %v419
        %436 = vmatmul.f32.gmra.mxu0 %v415
        %v437 = vpop.f32.mrf.mxu0
        %v438 = vadd.f32 %v339, %v437
        %439 = vdwg.mxu0
        %v440 = vsel %vm361, %v438, -inf
        %441 = vmax.xlane.f32.xlu0 %v440
        %v442 = vpop.xlane.xlu0 %441
        %v443 = vsub.f32 %v438, %v442
        %v444 = vmul.f32 %v443, 1.442695
        %v445 = vpow.pop %v444
        %v446 = vsel %vm361, %v445, 0.0
        %447 = vadd.xlane.f32.xlu0 %v446
        %v448 = vpop.xlane.xlu0 %447
        %v449 = vrcp.pop %v448
        %v450 = vmul.f32 %v445, %v449
        %v451 = vpack.c.bf16 %v450, %v450
        %v453 = vunpack.c.h.b16 %v333
        %v454 = vpack.c.b16 %v453, %v453
        %v456 = vsel %vm361, %v451, 0
        %v459 = vsel %vm377, %v454, 0
        %461 = vmatpush.bf16.msra.mxu0 0
        %462 = vmatpush.bf16.msra.mxu0 0
        %463 = vmatpush.bf16.msra.mxu0 0
        %464 = vmatpush.bf16.msra.mxu0 0
        %465 = vmatpush.bf16.msra.mxu0 0
        %466 = vmatpush.bf16.msra.mxu0 0
        %467 = vmatpush.bf16.msra.mxu0 0
        %468 = vmatpush.bf16.msra.mxu0 %v459
        %469 = vmatmul.bf16.gmra.mxu0 %v456
        %v470 = vpop.f32.mrf.mxu0
        %v471 = vadd.f32 0.0, %v470
        %v472 = vpop.f32.mrf.mxu0
        %473 = vdwg.mxu0
        %v474 = vpack.c.bf16 %v471, %v471
        %s475 = scalar_lea.vmem [#allocation2], 128
        %v476 = vld [vmem:[%s475] sm:$0xff]
        %v477 = vld [vmem:[%s475 + $0x8] sm:$0xff]
        %v478 = vld [vmem:[%s475 + $0x10] sm:$0xff]
        %v479 = vld [vmem:[%s475 + $0x18] sm:$0xff]
        %v480 = vld [vmem:[%s475 + $0x20] sm:$0xff]
        %v481 = vld [vmem:[%s475 + $0x28] sm:$0xff]
        %v482 = vld [vmem:[%s475 + $0x30] sm:$0xff]
        %v483 = vld [vmem:[%s475 + $0x38] sm:$0xff]
        %v484 = vld [vmem:[%s475 + $0x40] sm:$0xff]
        %v485 = vld [vmem:[%s475 + $0x48] sm:$0xff]
        %v486 = vld [vmem:[%s475 + $0x50] sm:$0xff]
        %v487 = vld [vmem:[%s475 + $0x58] sm:$0xff]
        %v488 = vld [vmem:[%s475 + $0x60] sm:$0xff]
        %v489 = vld [vmem:[%s475 + $0x68] sm:$0xff]
        %v490 = vld [vmem:[%s475 + $0x70] sm:$0xff]
        %v491 = vld [vmem:[%s475 + $0x78] sm:$0xff]
        %v508 = vunpack.c.l.b16 %v476
        %v509 = vunpack.c.h.b16 %v476
        %v510 = vunpack.c.l.b16 %v477
        %v511 = vunpack.c.h.b16 %v477
        %v512 = vunpack.c.l.b16 %v478
        %v513 = vunpack.c.h.b16 %v478
        %v514 = vunpack.c.l.b16 %v479
        %v515 = vunpack.c.h.b16 %v479
        %v516 = vunpack.c.l.b16 %v480
        %v517 = vunpack.c.h.b16 %v480
        %v518 = vunpack.c.l.b16 %v481
        %v519 = vunpack.c.h.b16 %v481
        %v520 = vunpack.c.l.b16 %v482
        %v521 = vunpack.c.h.b16 %v482
        %v522 = vunpack.c.l.b16 %v483
        %v523 = vunpack.c.h.b16 %v483
        %v524 = vunpack.c.l.b16 %v484
        %v525 = vunpack.c.h.b16 %v484
        %v526 = vunpack.c.l.b16 %v485
        %v527 = vunpack.c.h.b16 %v485
        %v528 = vunpack.c.l.b16 %v486
        %v529 = vunpack.c.h.b16 %v486
        %v530 = vunpack.c.l.b16 %v487
        %v531 = vunpack.c.h.b16 %v487
        %v532 = vunpack.c.l.b16 %v488
        %v533 = vunpack.c.h.b16 %v488
        %v534 = vunpack.c.l.b16 %v489
        %v535 = vunpack.c.h.b16 %v489
        %v536 = vunpack.c.l.b16 %v490
        %v537 = vunpack.c.h.b16 %v490
        %v538 = vunpack.c.l.b16 %v491
        %v539 = vunpack.c.h.b16 %v491
        %v540 = vpack.c.b16 %v510, %v508
        %v541 = vpack.c.b16 %v511, %v509
        %v542 = vpack.c.b16 %v514, %v512
        %v543 = vpack.c.b16 %v515, %v513
        %v544 = vpack.c.b16 %v518, %v516
        %v545 = vpack.c.b16 %v519, %v517
        %v546 = vpack.c.b16 %v522, %v520
        %v547 = vpack.c.b16 %v523, %v521
        %v548 = vpack.c.b16 %v526, %v524
        %v549 = vpack.c.b16 %v527, %v525
        %v550 = vpack.c.b16 %v530, %v528
        %v551 = vpack.c.b16 %v531, %v529
        %v552 = vpack.c.b16 %v534, %v532
        %v553 = vpack.c.b16 %v535, %v533
        %v554 = vpack.c.b16 %v538, %v536
        %v555 = vpack.c.b16 %v539, %v537
        %572 = vmatpush.bf16.msra.mxu0 %v554
        %573 = vmatpush.bf16.msra.mxu0 %v552
        %574 = vmatpush.bf16.msra.mxu0 %v550
        %575 = vmatpush.bf16.msra.mxu0 %v548
        %576 = vmatpush.bf16.msra.mxu0 %v546
        %577 = vmatpush.bf16.msra.mxu0 %v544
        %578 = vmatpush.bf16.msra.mxu0 %v542
        %579 = vmatpush.bf16.msra.mxu0 %v540
        %580 = vmatmul.bf16.gmra.mxu0 %v474
        %v581 = vpop.f32.mrf.mxu0
        %v582 = vadd.f32 0.0, %v581
        %v583 = vpop.f32.mrf.mxu0
        %584 = vdwg.mxu0
        %585 = vmatpush.bf16.msra.mxu0 %v555
        %586 = vmatpush.bf16.msra.mxu0 %v553
        %587 = vmatpush.bf16.msra.mxu0 %v551
        %588 = vmatpush.bf16.msra.mxu0 %v549
        %589 = vmatpush.bf16.msra.mxu0 %v547
        %590 = vmatpush.bf16.msra.mxu0 %v545
        %591 = vmatpush.bf16.msra.mxu0 %v543
        %592 = vmatpush.bf16.msra.mxu0 %v541
        %593 = vmatmul.bf16.gmra.mxu0 %v474
        %v594 = vpop.f32.mrf.mxu0
        %v595 = vadd.f32 0.0, %v594
        %v596 = vpop.f32.mrf.mxu0
        %597 = vdwg.mxu0
        %v614 = vunpack.c.l.b16 %v395
        %v615 = vunpack.c.h.b16 %v395
        %v616 = vunpack.c.l.b16 %v396
        %v617 = vunpack.c.h.b16 %v396
        %v618 = vunpack.c.l.b16 %v397
        %v619 = vunpack.c.h.b16 %v397
        %v620 = vunpack.c.l.b16 %v398
        %v621 = vunpack.c.h.b16 %v398
        %v622 = vunpack.c.l.b16 %v399
        %v623 = vunpack.c.h.b16 %v399
        %v624 = vunpack.c.l.b16 %v400
        %v625 = vunpack.c.h.b16 %v400
        %v626 = vunpack.c.l.b16 %v401
        %v627 = vunpack.c.h.b16 %v401
        %v628 = vunpack.c.l.b16 %v402
        %v629 = vunpack.c.h.b16 %v402
        %v630 = vunpack.c.l.b16 %v403
        %v631 = vunpack.c.h.b16 %v403
        %v632 = vunpack.c.l.b16 %v404
        %v633 = vunpack.c.h.b16 %v404
        %v634 = vunpack.c.l.b16 %v405
        %v635 = vunpack.c.h.b16 %v405
        %v636 = vunpack.c.l.b16 %v406
        %v637 = vunpack.c.h.b16 %v406
        %v638 = vunpack.c.l.b16 %v407
        %v639 = vunpack.c.h.b16 %v407
        %v640 = vunpack.c.l.b16 %v408
        %v641 = vunpack.c.h.b16 %v408
        %v642 = vunpack.c.l.b16 %v409
        %v643 = vunpack.c.h.b16 %v409
        %v644 = vunpack.c.l.b16 %v410
        %v645 = vunpack.c.h.b16 %v410
        %v646 = vpack.c.b16 %v616, %v614
        %v647 = vpack.c.b16 %v617, %v615
        %v648 = vpack.c.b16 %v620, %v618
        %v649 = vpack.c.b16 %v621, %v619
        %v650 = vpack.c.b16 %v624, %v622
        %v651 = vpack.c.b16 %v625, %v623
        %v652 = vpack.c.b16 %v628, %v626
        %v653 = vpack.c.b16 %v629, %v627
        %v654 = vpack.c.b16 %v632, %v630
        %v655 = vpack.c.b16 %v633, %v631
        %v656 = vpack.c.b16 %v636, %v634
        %v657 = vpack.c.b16 %v637, %v635
        %v658 = vpack.c.b16 %v640, %v638
        %v659 = vpack.c.b16 %v641, %v639
        %v660 = vpack.c.b16 %v644, %v642
        %v661 = vpack.c.b16 %v645, %v643
        %678 = vmatpush.bf16.msra.mxu0 %v660
        %679 = vmatpush.bf16.msra.mxu0 %v658
        %680 = vmatpush.bf16.msra.mxu0 %v656
        %681 = vmatpush.bf16.msra.mxu0 %v654
        %682 = vmatpush.bf16.msra.mxu0 %v652
        %683 = vmatpush.bf16.msra.mxu0 %v650
        %684 = vmatpush.bf16.msra.mxu0 %v648
        %685 = vmatpush.bf16.msra.mxu0 %v646
        %686 = vmatmul.bf16.gmra.mxu0 %v394
        %v687 = vpop.f32.mrf.mxu0
        %v688 = vadd.f32 %v582, %v687
        %v689 = vpop.f32.mrf.mxu0
        %690 = vdwg.mxu0
        %691 = vmatpush.bf16.msra.mxu0 %v661
        %692 = vmatpush.bf16.msra.mxu0 %v659
        %693 = vmatpush.bf16.msra.mxu0 %v657
        %694 = vmatpush.bf16.msra.mxu0 %v655
        %695 = vmatpush.bf16.msra.mxu0 %v653
        %696 = vmatpush.bf16.msra.mxu0 %v651
        %697 = vmatpush.bf16.msra.mxu0 %v649
        %698 = vmatpush.bf16.msra.mxu0 %v647
        %699 = vmatmul.bf16.gmra.mxu0 %v394
        %v700 = vpop.f32.mrf.mxu0
        %v701 = vadd.f32 %v595, %v700
        %v702 = vpop.f32.mrf.mxu0
        %703 = vdwg.mxu0
        %v704 = vld [vmem:[%s3] sm:$0x3]
        %v706 = vperm.slane %v704, 0
        %v707 = vperm.slane %v704, 1
        %v710 = vadd.f32 %v688, %v706
        %v711 = vadd.f32 %v701, %v707
        %v712 = vld [vmem:[%s324] sm:$0xff]
        %v713 = vld [vmem:[%s324 + $0x8] sm:$0xff]
        %v714 = vadd.f32 %v710, %v712
        %v715 = vadd.f32 %v711, %v713
        %v716 = vld [vmem:[%s5] sm:$0x3]
        %v717 = vld [vmem:[%s6] sm:$0x3]
        %v718 = vadd.f32 %v714, %v715
        %719 = vadd.xlane.f32.xlu0 %v718
        %v720 = vpop.xlane.xlu0 %719
        %v721 = vrcp.pop 256.0
        %v722 = vmul.f32 256.0, %v721
        %v723 = vsub.f32 1.0, %v722
        %v724 = vmul.f32 %v721, %v723
        %v725 = vadd.f32 %v721, %v724
        %vm726 = vweird.f32 %v721
        %v727 = vsel %vm726, %v721, %v725
        %v728 = vmul.f32 %v720, %v727
        %v729 = vsub.f32 %v714, %v728
        %v730 = vsub.f32 %v715, %v728
        %v731 = vmul.f32 %v729, %v729
        %v732 = vmul.f32 %v730, %v730
        %v733 = vadd.f32 %v731, %v732
        %734 = vadd.xlane.f32.xlu0 %v733
        %v735 = vpop.xlane.xlu0 %734
        %v736 = vmul.f32 %v735, %v727
        %v737 = vadd.f32 %v736, 1e-12
        %v738 = vrsqrt.pop %v737
        %v739 = vmul.f32 %v738, %v737
        %v740 = vmul.f32 %v739, %v738
        %v741 = vmul.f32 0.5, %v740
        %v742 = vsub.f32 1.5, %v741
        %v743 = vmul.f32 %v738, %v742
        %vm744 = vweird.f32 %v737
        %vm745 = vweird.f32 %v738
        %vm746 = vmor %vm744, %vm745
        %v747 = vsel %vm746, %v738, %v743
        %v748 = vmul.f32 %v729, %v747
        %v749 = vmul.f32 %v730, %v747
        %v751 = vperm.slane %v716, 0
        %v752 = vperm.slane %v716, 1
        %v755 = vmul.f32 %v748, %v751
        %v756 = vmul.f32 %v749, %v752
        %v758 = vperm.slane %v717, 0
        %v759 = vperm.slane %v717, 1
        %v762 = vadd.f32 %v755, %v758
        %v763 = vadd.f32 %v756, %v759
        %764 = vst [vmem:[%s329] sm:$0xff] %v762
        %765 = vst [vmem:[%s329 + $0x8] sm:$0xff] %v763
        %p766 = scmp.lt.s32.totalorder %s19, 1
        %s767 = scalar_select %p766, %s19, 1
        %s768 = smul.addr %s767, 2
        %s769 = smul.addr %s768, 8
        %s770 = scalar_lea.vmem %s7, %s769
        // Predicated region
        $region53: #{midibert_back_forward.13} parent=47 // pred_check
          %p771 = pneg %p199
        $region54: #{midibert_back_forward.13} parent=47 // pred_check_branch
          %773 = sbr.rel (%p771) target = $region56
        $region55: #{midibert_back_forward.13} parent=47 // pred_region
          _
        $region56: #{midibert_back_forward.13} parent=47 // pred_fallthru
          _
      $region48: #{midibert_back_forward.13} parent=5 // pred_fallthru
        _
      %p774 = scmp.le.s32.totalorder 2, %s14
      // Predicated region
      $region57: #{midibert_back_forward.13} parent=5 // pred_check
        %p775 = pneg %p774
      $region58: #{midibert_back_forward.13} parent=5 // pred_check_branch
        %777 = sbr.rel (%p775) target = $region60
      $region59: #{midibert_back_forward.13} parent=5 // pred_region
        %s778 = ssub.s32 %s14, 2
        // Predicated region
        $region61: #{midibert_back_forward.13} parent=59 // pred_check
          %p779 = pneg %p205
        $region62: #{midibert_back_forward.13} parent=59 // pred_check_branch
          %781 = sbr.rel (%p779) target = $region64
        $region63: #{midibert_back_forward.13} parent=59 // pred_region
          %p782 = scmp.lt.s32.totalorder %s20, 1
          %s783 = scalar_select %p782, %s20, 1
          %s784 = smul.addr %s783, 2
          %s785 = smul.addr %s784, 8
          %s786 = scalar_lea.vmem %s7, %s785
        $region64: #{midibert_back_forward.13} parent=59 // pred_fallthru
          _
      $region60: #{midibert_back_forward.13} parent=5 // pred_fallthru
        _
    $region6: #{midibert_back_forward.13} parent=1 // loop_footer
      %s18 = sadd.s32 1, %s14
    $region7: #{midibert_back_forward.13} parent=1 // loop_footer_branch
      %13 = sbr.rel target = $region3
    $region8: #{midibert_back_forward.13} parent=1 // loop_exit
      _
    %787 = vsyncpa [#allocation3], 1
    %s788 = scalar_lea.sflag [#allocation3], 1
    %789 = vsyncpa %s788, 1

</llo_original>
